<compile_context>
chip_gen: v6e
topology: v6e:2x2x1
jax: 0.10.0
libtpu: 0.0.40
codegen_flags: <defaults>
</compile_context>

<pallas_src>
import jax
import jax.numpy as jnp
from jax.experimental import pallas as pl
from jax.experimental.pallas import tpu as pltpu


def _make_residual_block_kernel(H, W, Cin, Cout):
    HW = H * W

    def kernel(xp_ref, col_ref, w1_ref, w2_ref, s1_ref, b1_ref, s2_ref, b2_ref,
               out_ref):
        # xp_ref : (1, (H+2)*W, Cin) f32  H-padded input, spatial flattened row-major
        # col_ref: (HW, 1) int32          x-column index of every flattened pixel
        # w1_ref : (9*Cin, Cout)  bf16    conv1 taps, K ordered (dy, dx, cin)
        # w2_ref : (9*Cout, Cout) bf16    conv2 taps
        # s*_ref/b*_ref : (1, Cout) f32   folded BN scale / shift (incl. conv bias)
        # out_ref: (1, HW, Cout) f32
        xp = xp_ref[0]                       # ((H+2)*W, Cin) f32
        col = col_ref[...]                   # (HW, 1) int32
        ok_m1 = col >= 1                     # pixel has a valid left  neighbour (x-1)
        ok_p1 = col <= (W - 2)               # pixel has a valid right neighbour (x+1)

        def im2col(src):
            # src: ((H+2)*W, C) f32 with zero rows at top/bottom (H padding).
            # Returns the (HW, 9*C) bf16 patch slab for a 3x3 / pad=1 conv.
            parts = []
            for dy in range(3):
                # dy shift = W-aligned row slice (offset is a multiple of W).
                base = src[dy * W:dy * W + HW, :]
                for ox in (-1, 0, 1):
                    if ox == 0:
                        part = base
                    else:
                        # dx shift = jnp.roll (negative shift allowed; lowers
                        # to slice+concat).  Wrapped rows are exactly the
                        # masked-out boundary positions.
                        shifted = jnp.roll(base, -ox, axis=0)
                        mask = ok_m1 if ox == -1 else ok_p1
                        part = jnp.where(mask, shifted, 0.0)
                    parts.append(part.astype(jnp.bfloat16))
            return jnp.concatenate(parts, axis=1)        # (HW, 9*C) bf16

        # ---- conv1: single MXU matmul, K = 9*Cin, f32 accumulation ----
        slab1 = im2col(xp)                                       # (HW, 9*Cin) bf16
        acc1 = jnp.dot(slab1, w1_ref[...],
                       preferred_element_type=jnp.float32)       # (HW, Cout) f32
        # BN1 (folded) + ReLU in f32
        h = jnp.maximum(acc1 * s1_ref[...] + b1_ref[...], 0.0)

        # H-pad the intermediate with an aligned concatenate (no zero-filled
        # scratch buffer, no unaligned partial stores).
        zrow = jnp.zeros((W, Cout), jnp.float32)
        hp = jnp.concatenate([zrow, h, zrow], axis=0)            # ((H+2)*W, Cout)

        # ---- conv2: single MXU matmul, K = 9*Cout ----
        slab2 = im2col(hp)
        acc2 = jnp.dot(slab2, w2_ref[...],
                       preferred_element_type=jnp.float32)

        # BN2 (folded) + identity residual + ReLU
        residual = xp[W:W + HW, :]                               # aligned row slice
        y = jnp.maximum(acc2 * s2_ref[...] + b2_ref[...] + residual, 0.0)
        out_ref[0] = y.astype(out_ref.dtype)

    return kernel


def residual_block_forward(x_nchw, params, eps=1e-5):
    """x_nchw: (N, C, H, W) float32. Returns (N, C, H, W)."""
    N, C, H, W = x_nchw.shape
    Cout = params["w1"].shape[0]
    assert Cout == C, "identity residual requires in_channels == out_channels"
    HW = H * W

    # NCHW -> NHWC; pad H only (the dx halo is handled in-kernel with
    # rolls + masks); flatten spatial so every in-kernel shift is row-aligned.
    x = jnp.transpose(x_nchw, (0, 2, 3, 1)).astype(jnp.float32)
    xph = jnp.pad(x, ((0, 0), (1, 1), (0, 0), (0, 0)))
    xpf = xph.reshape(N, (H + 2) * W, C)

    # Column index of every flattened output pixel (for the dx boundary masks).
    col = (jnp.arange(HW, dtype=jnp.int32) % W).reshape(HW, 1)

    # Fold BN (eval mode) and conv bias into a per-channel scale / shift.
    def fold(gamma, beta, mean, var, conv_bias):
        scale = gamma / jnp.sqrt(var + eps)
        shift = beta + scale * (conv_bias - mean)
        return (scale.reshape(1, -1).astype(jnp.float32),
                shift.reshape(1, -1).astype(jnp.float32))

    s1, b1 = fold(params["bn1_gamma"], params["bn1_beta"],
                  params["bn1_mean"], params["bn1_var"], params["b1"])
    s2, b2 = fold(params["bn2_gamma"], params["bn2_beta"],
                  params["bn2_mean"], params["bn2_var"], params["b2"])

    # PyTorch conv weight (Cout, Cin, 3, 3) -> (dy, dx, cin, cout) -> (9*Cin, Cout).
    # bf16 weights: half the VMEM / DMA footprint and native MXU operand dtype.
    w1 = jnp.transpose(params["w1"], (2, 3, 1, 0)).reshape(9 * C, Cout)
    w1 = w1.astype(jnp.bfloat16)
    w2 = jnp.transpose(params["w2"], (2, 3, 1, 0)).reshape(9 * Cout, Cout)
    w2 = w2.astype(jnp.bfloat16)

    kernel = _make_residual_block_kernel(H, W, C, Cout)

    out_flat = pl.pallas_call(
        kernel,
        out_shape=jax.ShapeDtypeStruct((N, HW, Cout), jnp.float32),
        grid_spec=pltpu.PrefetchScalarGridSpec(
            num_scalar_prefetch=0,
            grid=(N,),
            in_specs=[
                pl.BlockSpec((1, (H + 2) * W, C), lambda n: (n, 0, 0)),
                pl.BlockSpec((HW, 1), lambda n: (0, 0)),
                pl.BlockSpec((9 * C, Cout), lambda n: (0, 0)),
                pl.BlockSpec((9 * Cout, Cout), lambda n: (0, 0)),
                pl.BlockSpec((1, Cout), lambda n: (0, 0)),
                pl.BlockSpec((1, Cout), lambda n: (0, 0)),
                pl.BlockSpec((1, Cout), lambda n: (0, 0)),
                pl.BlockSpec((1, Cout), lambda n: (0, 0)),
            ],
            out_specs=pl.BlockSpec((1, HW, Cout), lambda n: (n, 0, 0)),
        ),
        compiler_params=pltpu.CompilerParams(
            dimension_semantics=("parallel",),      # megacore: one image per core
            vmem_limit_bytes=32 * 1024 * 1024,
        ),
    )(xpf, col, w1, w2, s1, b1, s2, b2)

    out_nhwc = out_flat.reshape(N, H, W, Cout)
    return jnp.transpose(out_nhwc, (0, 3, 1, 2))       # back to NCHW


def _reference_forward(x_nchw, params, eps=1e-5):
    """Pure-JAX reference (lax conv, f32) for correctness checking."""
    def conv(x, w, b):
        y = jax.lax.conv_general_dilated(
            x, w, window_strides=(1, 1), padding=((1, 1), (1, 1)),
            dimension_numbers=("NCHW", "OIHW", "NCHW"))
        return y + b.reshape(1, -1, 1, 1)

    def bn(x, gamma, beta, mean, var):
        return (gamma.reshape(1, -1, 1, 1) * (x - mean.reshape(1, -1, 1, 1))
                / jnp.sqrt(var.reshape(1, -1, 1, 1) + eps)
                + beta.reshape(1, -1, 1, 1))

    out = jnp.maximum(bn(conv(x_nchw, params["w1"], params["b1"]),
                         params["bn1_gamma"], params["bn1_beta"],
                         params["bn1_mean"], params["bn1_var"]), 0.0)
    out = bn(conv(out, params["w2"], params["b2"]),
             params["bn2_gamma"], params["bn2_beta"],
             params["bn2_mean"], params["bn2_var"])
    return jnp.maximum(out + x_nchw, 0.0)


def make_params(key, channels):
    ks = jax.random.split(key, 10)
    C = channels
    return {
        "w1": 0.1 * jax.random.normal(ks[0], (C, C, 3, 3), jnp.float32),
        "b1": 0.1 * jax.random.normal(ks[1], (C,), jnp.float32),
        "w2": 0.1 * jax.random.normal(ks[2], (C, C, 3, 3), jnp.float32),
        "b2": 0.1 * jax.random.normal(ks[3], (C,), jnp.float32),
        "bn1_gamma": 1.0 + 0.1 * jax.random.normal(ks[4], (C,), jnp.float32),
        "bn1_beta": 0.1 * jax.random.normal(ks[5], (C,), jnp.float32),
        "bn1_mean": 0.1 * jax.random.normal(ks[6], (C,), jnp.float32),
        "bn1_var": jnp.abs(1.0 + 0.1 * jax.random.normal(ks[7], (C,), jnp.float32)),
        "bn2_gamma": 1.0 + 0.1 * jax.random.normal(ks[8], (C,), jnp.float32),
        "bn2_beta": 0.1 * jax.random.normal(ks[9], (C,), jnp.float32),
        "bn2_mean": jnp.zeros((C,), jnp.float32),
        "bn2_var": jnp.ones((C,), jnp.float32),
    }


if __name__ == "__main__":
    key = jax.random.PRNGKey(0)
    k_x, k_p = jax.random.split(key)

    N, C, H, W = 2, 8, 16, 16
    x = jax.random.normal(k_x, (N, C, H, W), jnp.float32)
    params = make_params(k_p, C)

    out = jax.block_until_ready(residual_block_forward(x, params))

    ref = _reference_forward(x, params)
    assert out.shape == (N, C, H, W)
    # bf16 MXU operands (f32 accumulation) -> slightly looser tolerance than f32.
    max_err = float(jnp.max(jnp.abs(out - ref)))
    assert jnp.allclose(out, ref, atol=5e-2, rtol=5e-2), \
        f"mismatch vs reference (max abs err {max_err})"

    print("KERNEL_OK")
</pallas_src>

<mosaic_0001>
module attributes {stable_mosaic.version = 11 : i64} {
  func.func @kernel(%arg0: i32, %arg1: memref<1x288x8xf32, #tpu.memory_space<vmem>>, %arg2: memref<256x1xi32, #tpu.memory_space<vmem>>, %arg3: memref<72x8xbf16, #tpu.memory_space<vmem>>, %arg4: memref<72x8xbf16, #tpu.memory_space<vmem>>, %arg5: memref<1x8xf32, #tpu.memory_space<vmem>>, %arg6: memref<1x8xf32, #tpu.memory_space<vmem>>, %arg7: memref<1x8xf32, #tpu.memory_space<vmem>>, %arg8: memref<1x8xf32, #tpu.memory_space<vmem>>, %arg9: memref<1x256x8xf32, #tpu.memory_space<vmem>>) attributes {dimension_semantics = [#tpu.dimension_semantics<parallel>], iteration_bounds = array<i64: 2>, scalar_prefetch = 0 : i64, scratch_operands = 0 : i64, tpu.core_type = #tpu.core_type<tc>, window_params = [{transform_indices = @transform_0, window_bounds = array<i64: 1, 288, 8>}, {pipeline_mode = #tpu.pipeline_mode<synchronous>, transform_indices = @transform_1, window_bounds = array<i64: 256, 1>}, {pipeline_mode = #tpu.pipeline_mode<synchronous>, transform_indices = @transform_2, window_bounds = array<i64: 72, 8>}, {pipeline_mode = #tpu.pipeline_mode<synchronous>, transform_indices = @transform_3, window_bounds = array<i64: 72, 8>}, {pipeline_mode = #tpu.pipeline_mode<synchronous>, transform_indices = @transform_4, window_bounds = array<i64: 1, 8>}, {pipeline_mode = #tpu.pipeline_mode<synchronous>, transform_indices = @transform_5, window_bounds = array<i64: 1, 8>}, {pipeline_mode = #tpu.pipeline_mode<synchronous>, transform_indices = @transform_6, window_bounds = array<i64: 1, 8>}, {pipeline_mode = #tpu.pipeline_mode<synchronous>, transform_indices = @transform_7, window_bounds = array<i64: 1, 8>}, {transform_indices = @transform_8, window_bounds = array<i64: 1, 256, 8>}]} {
    %c0 = arith.constant 0 : index
    %c0_0 = arith.constant 0 : index
    %c0_1 = arith.constant 0 : index
    %0 = vector.load %arg1[%c0, %c0_0, %c0_1] : memref<1x288x8xf32, #tpu.memory_space<vmem>>, vector<1x288x8xf32>
    %1 = vector.shape_cast %0 : vector<1x288x8xf32> to vector<288x8xf32>
    %c0_2 = arith.constant 0 : index
    %c0_3 = arith.constant 0 : index
    %2 = vector.load %arg2[%c0_2, %c0_3] : memref<256x1xi32, #tpu.memory_space<vmem>>, vector<256x1xi32>
    %c1_i32 = arith.constant 1 : i32
    %3 = vector.broadcast %c1_i32 : i32 to vector<256x1xi32>
    %4 = arith.cmpi sge, %2, %3 : vector<256x1xi32>
    %c14_i32 = arith.constant 14 : i32
    %5 = vector.broadcast %c14_i32 : i32 to vector<256x1xi32>
    %6 = arith.cmpi sle, %2, %5 : vector<256x1xi32>
    %7 = vector.extract_strided_slice %1 {offsets = [0, 0], sizes = [256, 8], strides = [1, 1]} : vector<288x8xf32> to vector<256x8xf32>
    %8 = vector.extract_strided_slice %7 {offsets = [255, 0], sizes = [1, 8], strides = [1, 1]} : vector<256x8xf32> to vector<1x8xf32>
    %9 = vector.extract_strided_slice %7 {offsets = [0, 0], sizes = [255, 8], strides = [1, 1]} : vector<256x8xf32> to vector<255x8xf32>
    %10 = tpu.concatenate %8, %9 in 0 : vector<1x8xf32>, vector<255x8xf32> -> vector<256x8xf32>
    %cst = arith.constant 0.000000e+00 : f32
    %11 = vector.shape_cast %4 : vector<256x1xi1> to vector<256x1xi1>
    %12 = vector.broadcast %11 : vector<256x1xi1> to vector<256x8xi1>
    %13 = vector.broadcast %cst : f32 to vector<256x8xf32>
    %14 = arith.select %12, %10, %13 : vector<256x8xi1>, vector<256x8xf32>
    %15 = arith.truncf %14 : vector<256x8xf32> to vector<256x8xbf16>
    %16 = arith.truncf %7 : vector<256x8xf32> to vector<256x8xbf16>
    %17 = vector.extract_strided_slice %7 {offsets = [1, 0], sizes = [255, 8], strides = [1, 1]} : vector<256x8xf32> to vector<255x8xf32>
    %18 = vector.extract_strided_slice %7 {offsets = [0, 0], sizes = [1, 8], strides = [1, 1]} : vector<256x8xf32> to vector<1x8xf32>
    %19 = tpu.concatenate %17, %18 in 0 : vector<255x8xf32>, vector<1x8xf32> -> vector<256x8xf32>
    %cst_4 = arith.constant 0.000000e+00 : f32
    %20 = vector.shape_cast %6 : vector<256x1xi1> to vector<256x1xi1>
    %21 = vector.broadcast %20 : vector<256x1xi1> to vector<256x8xi1>
    %22 = vector.broadcast %cst_4 : f32 to vector<256x8xf32>
    %23 = arith.select %21, %19, %22 : vector<256x8xi1>, vector<256x8xf32>
    %24 = arith.truncf %23 : vector<256x8xf32> to vector<256x8xbf16>
    %25 = vector.extract_strided_slice %1 {offsets = [16, 0], sizes = [256, 8], strides = [1, 1]} : vector<288x8xf32> to vector<256x8xf32>
    %26 = vector.extract_strided_slice %25 {offsets = [255, 0], sizes = [1, 8], strides = [1, 1]} : vector<256x8xf32> to vector<1x8xf32>
    %27 = vector.extract_strided_slice %25 {offsets = [0, 0], sizes = [255, 8], strides = [1, 1]} : vector<256x8xf32> to vector<255x8xf32>
    %28 = tpu.concatenate %26, %27 in 0 : vector<1x8xf32>, vector<255x8xf32> -> vector<256x8xf32>
    %cst_5 = arith.constant 0.000000e+00 : f32
    %29 = vector.shape_cast %4 : vector<256x1xi1> to vector<256x1xi1>
    %30 = vector.broadcast %29 : vector<256x1xi1> to vector<256x8xi1>
    %31 = vector.broadcast %cst_5 : f32 to vector<256x8xf32>
    %32 = arith.select %30, %28, %31 : vector<256x8xi1>, vector<256x8xf32>
    %33 = arith.truncf %32 : vector<256x8xf32> to vector<256x8xbf16>
    %34 = arith.truncf %25 : vector<256x8xf32> to vector<256x8xbf16>
    %35 = vector.extract_strided_slice %25 {offsets = [1, 0], sizes = [255, 8], strides = [1, 1]} : vector<256x8xf32> to vector<255x8xf32>
    %36 = vector.extract_strided_slice %25 {offsets = [0, 0], sizes = [1, 8], strides = [1, 1]} : vector<256x8xf32> to vector<1x8xf32>
    %37 = tpu.concatenate %35, %36 in 0 : vector<255x8xf32>, vector<1x8xf32> -> vector<256x8xf32>
    %cst_6 = arith.constant 0.000000e+00 : f32
    %38 = vector.shape_cast %6 : vector<256x1xi1> to vector<256x1xi1>
    %39 = vector.broadcast %38 : vector<256x1xi1> to vector<256x8xi1>
    %40 = vector.broadcast %cst_6 : f32 to vector<256x8xf32>
    %41 = arith.select %39, %37, %40 : vector<256x8xi1>, vector<256x8xf32>
    %42 = arith.truncf %41 : vector<256x8xf32> to vector<256x8xbf16>
    %43 = vector.extract_strided_slice %1 {offsets = [32, 0], sizes = [256, 8], strides = [1, 1]} : vector<288x8xf32> to vector<256x8xf32>
    %44 = vector.extract_strided_slice %43 {offsets = [255, 0], sizes = [1, 8], strides = [1, 1]} : vector<256x8xf32> to vector<1x8xf32>
    %45 = vector.extract_strided_slice %43 {offsets = [0, 0], sizes = [255, 8], strides = [1, 1]} : vector<256x8xf32> to vector<255x8xf32>
    %46 = tpu.concatenate %44, %45 in 0 : vector<1x8xf32>, vector<255x8xf32> -> vector<256x8xf32>
    %cst_7 = arith.constant 0.000000e+00 : f32
    %47 = vector.shape_cast %4 : vector<256x1xi1> to vector<256x1xi1>
    %48 = vector.broadcast %47 : vector<256x1xi1> to vector<256x8xi1>
    %49 = vector.broadcast %cst_7 : f32 to vector<256x8xf32>
    %50 = arith.select %48, %46, %49 : vector<256x8xi1>, vector<256x8xf32>
    %51 = arith.truncf %50 : vector<256x8xf32> to vector<256x8xbf16>
    %52 = arith.truncf %43 : vector<256x8xf32> to vector<256x8xbf16>
    %53 = vector.extract_strided_slice %43 {offsets = [1, 0], sizes = [255, 8], strides = [1, 1]} : vector<256x8xf32> to vector<255x8xf32>
    %54 = vector.extract_strided_slice %43 {offsets = [0, 0], sizes = [1, 8], strides = [1, 1]} : vector<256x8xf32> to vector<1x8xf32>
    %55 = tpu.concatenate %53, %54 in 0 : vector<255x8xf32>, vector<1x8xf32> -> vector<256x8xf32>
    %cst_8 = arith.constant 0.000000e+00 : f32
    %56 = vector.shape_cast %6 : vector<256x1xi1> to vector<256x1xi1>
    %57 = vector.broadcast %56 : vector<256x1xi1> to vector<256x8xi1>
    %58 = vector.broadcast %cst_8 : f32 to vector<256x8xf32>
    %59 = arith.select %57, %55, %58 : vector<256x8xi1>, vector<256x8xf32>
    %60 = arith.truncf %59 : vector<256x8xf32> to vector<256x8xbf16>
    %61 = tpu.concatenate %15, %16, %24, %33, %34, %42, %51, %52, %60 in 1 : vector<256x8xbf16>, vector<256x8xbf16>, vector<256x8xbf16>, vector<256x8xbf16>, vector<256x8xbf16>, vector<256x8xbf16>, vector<256x8xbf16>, vector<256x8xbf16>, vector<256x8xbf16> -> vector<256x72xbf16>
    %c0_9 = arith.constant 0 : index
    %c0_10 = arith.constant 0 : index
    %62 = vector.load %arg3[%c0_9, %c0_10] : memref<72x8xbf16, #tpu.memory_space<vmem>>, vector<72x8xbf16>
    %cst_11 = arith.constant dense<0.000000e+00> : vector<256x8xf32>
    %63 = tpu.matmul %61, %62, %cst_11 {dimension_numbers = #tpu.dot_dimension_numbers<[1], [0], [0], [1], [0, 0, 1, 1], [], []>} : vector<256x72xbf16>, vector<72x8xbf16>, vector<256x8xf32> -> vector<256x8xf32>
    %c0_12 = arith.constant 0 : index
    %c0_13 = arith.constant 0 : index
    %64 = vector.load %arg5[%c0_12, %c0_13] : memref<1x8xf32, #tpu.memory_space<vmem>>, vector<1x8xf32>
    %65 = vector.broadcast %64 : vector<1x8xf32> to vector<256x8xf32>
    %66 = arith.mulf %63, %65 : vector<256x8xf32>
    %c0_14 = arith.constant 0 : index
    %c0_15 = arith.constant 0 : index
    %67 = vector.load %arg6[%c0_14, %c0_15] : memref<1x8xf32, #tpu.memory_space<vmem>>, vector<1x8xf32>
    %68 = vector.broadcast %67 : vector<1x8xf32> to vector<256x8xf32>
    %69 = arith.addf %66, %68 : vector<256x8xf32>
    %cst_16 = arith.constant 0.000000e+00 : f32
    %70 = vector.broadcast %cst_16 : f32 to vector<256x8xf32>
    %71 = arith.maximumf %69, %70 : vector<256x8xf32>
    %cst_17 = arith.constant 0.000000e+00 : f32
    %72 = vector.broadcast %cst_17 : f32 to vector<16x8xf32>
    %73 = tpu.concatenate %72, %71, %72 in 0 : vector<16x8xf32>, vector<256x8xf32>, vector<16x8xf32> -> vector<288x8xf32>
    %74 = vector.extract_strided_slice %73 {offsets = [0, 0], sizes = [256, 8], strides = [1, 1]} : vector<288x8xf32> to vector<256x8xf32>
    %75 = vector.extract_strided_slice %74 {offsets = [255, 0], sizes = [1, 8], strides = [1, 1]} : vector<256x8xf32> to vector<1x8xf32>
    %76 = vector.extract_strided_slice %74 {offsets = [0, 0], sizes = [255, 8], strides = [1, 1]} : vector<256x8xf32> to vector<255x8xf32>
    %77 = tpu.concatenate %75, %76 in 0 : vector<1x8xf32>, vector<255x8xf32> -> vector<256x8xf32>
    %cst_18 = arith.constant 0.000000e+00 : f32
    %78 = vector.shape_cast %4 : vector<256x1xi1> to vector<256x1xi1>
    %79 = vector.broadcast %78 : vector<256x1xi1> to vector<256x8xi1>
    %80 = vector.broadcast %cst_18 : f32 to vector<256x8xf32>
    %81 = arith.select %79, %77, %80 : vector<256x8xi1>, vector<256x8xf32>
    %82 = arith.truncf %81 : vector<256x8xf32> to vector<256x8xbf16>
    %83 = arith.truncf %74 : vector<256x8xf32> to vector<256x8xbf16>
    %84 = vector.extract_strided_slice %74 {offsets = [1, 0], sizes = [255, 8], strides = [1, 1]} : vector<256x8xf32> to vector<255x8xf32>
    %85 = vector.extract_strided_slice %74 {offsets = [0, 0], sizes = [1, 8], strides = [1, 1]} : vector<256x8xf32> to vector<1x8xf32>
    %86 = tpu.concatenate %84, %85 in 0 : vector<255x8xf32>, vector<1x8xf32> -> vector<256x8xf32>
    %cst_19 = arith.constant 0.000000e+00 : f32
    %87 = vector.shape_cast %6 : vector<256x1xi1> to vector<256x1xi1>
    %88 = vector.broadcast %87 : vector<256x1xi1> to vector<256x8xi1>
    %89 = vector.broadcast %cst_19 : f32 to vector<256x8xf32>
    %90 = arith.select %88, %86, %89 : vector<256x8xi1>, vector<256x8xf32>
    %91 = arith.truncf %90 : vector<256x8xf32> to vector<256x8xbf16>
    %92 = vector.extract_strided_slice %73 {offsets = [16, 0], sizes = [256, 8], strides = [1, 1]} : vector<288x8xf32> to vector<256x8xf32>
    %93 = vector.extract_strided_slice %92 {offsets = [255, 0], sizes = [1, 8], strides = [1, 1]} : vector<256x8xf32> to vector<1x8xf32>
    %94 = vector.extract_strided_slice %92 {offsets = [0, 0], sizes = [255, 8], strides = [1, 1]} : vector<256x8xf32> to vector<255x8xf32>
    %95 = tpu.concatenate %93, %94 in 0 : vector<1x8xf32>, vector<255x8xf32> -> vector<256x8xf32>
    %cst_20 = arith.constant 0.000000e+00 : f32
    %96 = vector.shape_cast %4 : vector<256x1xi1> to vector<256x1xi1>
    %97 = vector.broadcast %96 : vector<256x1xi1> to vector<256x8xi1>
    %98 = vector.broadcast %cst_20 : f32 to vector<256x8xf32>
    %99 = arith.select %97, %95, %98 : vector<256x8xi1>, vector<256x8xf32>
    %100 = arith.truncf %99 : vector<256x8xf32> to vector<256x8xbf16>
    %101 = arith.truncf %92 : vector<256x8xf32> to vector<256x8xbf16>
    %102 = vector.extract_strided_slice %92 {offsets = [1, 0], sizes = [255, 8], strides = [1, 1]} : vector<256x8xf32> to vector<255x8xf32>
    %103 = vector.extract_strided_slice %92 {offsets = [0, 0], sizes = [1, 8], strides = [1, 1]} : vector<256x8xf32> to vector<1x8xf32>
    %104 = tpu.concatenate %102, %103 in 0 : vector<255x8xf32>, vector<1x8xf32> -> vector<256x8xf32>
    %cst_21 = arith.constant 0.000000e+00 : f32
    %105 = vector.shape_cast %6 : vector<256x1xi1> to vector<256x1xi1>
    %106 = vector.broadcast %105 : vector<256x1xi1> to vector<256x8xi1>
    %107 = vector.broadcast %cst_21 : f32 to vector<256x8xf32>
    %108 = arith.select %106, %104, %107 : vector<256x8xi1>, vector<256x8xf32>
    %109 = arith.truncf %108 : vector<256x8xf32> to vector<256x8xbf16>
    %110 = vector.extract_strided_slice %73 {offsets = [32, 0], sizes = [256, 8], strides = [1, 1]} : vector<288x8xf32> to vector<256x8xf32>
    %111 = vector.extract_strided_slice %110 {offsets = [255, 0], sizes = [1, 8], strides = [1, 1]} : vector<256x8xf32> to vector<1x8xf32>
    %112 = vector.extract_strided_slice %110 {offsets = [0, 0], sizes = [255, 8], strides = [1, 1]} : vector<256x8xf32> to vector<255x8xf32>
    %113 = tpu.concatenate %111, %112 in 0 : vector<1x8xf32>, vector<255x8xf32> -> vector<256x8xf32>
    %cst_22 = arith.constant 0.000000e+00 : f32
    %114 = vector.shape_cast %4 : vector<256x1xi1> to vector<256x1xi1>
    %115 = vector.broadcast %114 : vector<256x1xi1> to vector<256x8xi1>
    %116 = vector.broadcast %cst_22 : f32 to vector<256x8xf32>
    %117 = arith.select %115, %113, %116 : vector<256x8xi1>, vector<256x8xf32>
    %118 = arith.truncf %117 : vector<256x8xf32> to vector<256x8xbf16>
    %119 = arith.truncf %110 : vector<256x8xf32> to vector<256x8xbf16>
    %120 = vector.extract_strided_slice %110 {offsets = [1, 0], sizes = [255, 8], strides = [1, 1]} : vector<256x8xf32> to vector<255x8xf32>
    %121 = vector.extract_strided_slice %110 {offsets = [0, 0], sizes = [1, 8], strides = [1, 1]} : vector<256x8xf32> to vector<1x8xf32>
    %122 = tpu.concatenate %120, %121 in 0 : vector<255x8xf32>, vector<1x8xf32> -> vector<256x8xf32>
    %cst_23 = arith.constant 0.000000e+00 : f32
    %123 = vector.shape_cast %6 : vector<256x1xi1> to vector<256x1xi1>
    %124 = vector.broadcast %123 : vector<256x1xi1> to vector<256x8xi1>
    %125 = vector.broadcast %cst_23 : f32 to vector<256x8xf32>
    %126 = arith.select %124, %122, %125 : vector<256x8xi1>, vector<256x8xf32>
    %127 = arith.truncf %126 : vector<256x8xf32> to vector<256x8xbf16>
    %128 = tpu.concatenate %82, %83, %91, %100, %101, %109, %118, %119, %127 in 1 : vector<256x8xbf16>, vector<256x8xbf16>, vector<256x8xbf16>, vector<256x8xbf16>, vector<256x8xbf16>, vector<256x8xbf16>, vector<256x8xbf16>, vector<256x8xbf16>, vector<256x8xbf16> -> vector<256x72xbf16>
    %c0_24 = arith.constant 0 : index
    %c0_25 = arith.constant 0 : index
    %129 = vector.load %arg4[%c0_24, %c0_25] : memref<72x8xbf16, #tpu.memory_space<vmem>>, vector<72x8xbf16>
    %cst_26 = arith.constant dense<0.000000e+00> : vector<256x8xf32>
    %130 = tpu.matmul %128, %129, %cst_26 {dimension_numbers = #tpu.dot_dimension_numbers<[1], [0], [0], [1], [0, 0, 1, 1], [], []>} : vector<256x72xbf16>, vector<72x8xbf16>, vector<256x8xf32> -> vector<256x8xf32>
    %131 = vector.extract_strided_slice %1 {offsets = [16, 0], sizes = [256, 8], strides = [1, 1]} : vector<288x8xf32> to vector<256x8xf32>
    %c0_27 = arith.constant 0 : index
    %c0_28 = arith.constant 0 : index
    %132 = vector.load %arg7[%c0_27, %c0_28] : memref<1x8xf32, #tpu.memory_space<vmem>>, vector<1x8xf32>
    %133 = vector.broadcast %132 : vector<1x8xf32> to vector<256x8xf32>
    %134 = arith.mulf %130, %133 : vector<256x8xf32>
    %c0_29 = arith.constant 0 : index
    %c0_30 = arith.constant 0 : index
    %135 = vector.load %arg8[%c0_29, %c0_30] : memref<1x8xf32, #tpu.memory_space<vmem>>, vector<1x8xf32>
    %136 = vector.broadcast %135 : vector<1x8xf32> to vector<256x8xf32>
    %137 = arith.addf %134, %136 : vector<256x8xf32>
    %138 = arith.addf %137, %131 : vector<256x8xf32>
    %cst_31 = arith.constant 0.000000e+00 : f32
    %139 = vector.broadcast %cst_31 : f32 to vector<256x8xf32>
    %140 = arith.maximumf %138, %139 : vector<256x8xf32>
    %c0_32 = arith.constant 0 : index
    %c0_33 = arith.constant 0 : index
    %c0_34 = arith.constant 0 : index
    %141 = vector.load %arg9[%c0_32, %c0_33, %c0_34] : memref<1x256x8xf32, #tpu.memory_space<vmem>>, vector<1x256x8xf32>
    %142 = vector.shape_cast %141 : vector<1x256x8xf32> to vector<256x8xf32>
    %143 = vector.shape_cast %140 : vector<256x8xf32> to vector<1x256x8xf32>
    tpu.vector_store %arg9[%c0_32, %c0_33, %c0_34], %143 {strides = array<i32>} : memref<1x256x8xf32, #tpu.memory_space<vmem>>, vector<1x256x8xf32>,
    return
  }
  func.func @transform_0(%arg0: i32) -> (i32, i32, i32) {
    %c0_i32 = arith.constant 0 : i32
    %c0_i32_0 = arith.constant 0 : i32
    %c0_i32_1 = arith.constant 0 : i32
    return %arg0, %c0_i32, %c0_i32_0 : i32, i32, i32
  }
  func.func @transform_1(%arg0: i32) -> (i32, i32) {
    %c0_i32 = arith.constant 0 : i32
    %c0_i32_0 = arith.constant 0 : i32
    %c0_i32_1 = arith.constant 0 : i32
    return %c0_i32, %c0_i32_0 : i32, i32
  }
  func.func @transform_2(%arg0: i32) -> (i32, i32) {
    %c0_i32 = arith.constant 0 : i32
    %c0_i32_0 = arith.constant 0 : i32
    %c0_i32_1 = arith.constant 0 : i32
    return %c0_i32, %c0_i32_0 : i32, i32
  }
  func.func @transform_3(%arg0: i32) -> (i32, i32) {
    %c0_i32 = arith.constant 0 : i32
    %c0_i32_0 = arith.constant 0 : i32
    %c0_i32_1 = arith.constant 0 : i32
    return %c0_i32, %c0_i32_0 : i32, i32
  }
  func.func @transform_4(%arg0: i32) -> (i32, i32) {
    %c0_i32 = arith.constant 0 : i32
    %c0_i32_0 = arith.constant 0 : i32
    %c0_i32_1 = arith.constant 0 : i32
    return %c0_i32, %c0_i32_0 : i32, i32
  }
  func.func @transform_5(%arg0: i32) -> (i32, i32) {
    %c0_i32 = arith.constant 0 : i32
    %c0_i32_0 = arith.constant 0 : i32
    %c0_i32_1 = arith.constant 0 : i32
    return %c0_i32, %c0_i32_0 : i32, i32
  }
  func.func @transform_6(%arg0: i32) -> (i32, i32) {
    %c0_i32 = arith.constant 0 : i32
    %c0_i32_0 = arith.constant 0 : i32
    %c0_i32_1 = arith.constant 0 : i32
    return %c0_i32, %c0_i32_0 : i32, i32
  }
  func.func @transform_7(%arg0: i32) -> (i32, i32) {
    %c0_i32 = arith.constant 0 : i32
    %c0_i32_0 = arith.constant 0 : i32
    %c0_i32_1 = arith.constant 0 : i32
    return %c0_i32, %c0_i32_0 : i32, i32
  }
  func.func @transform_8(%arg0: i32) -> (i32, i32, i32) {
    %c0_i32 = arith.constant 0 : i32
    %c0_i32_0 = arith.constant 0 : i32
    %c0_i32_1 = arith.constant 0 : i32
    return %arg0, %c0_i32, %c0_i32_0 : i32, i32, i32
  }
}

</mosaic_0001>

<llo_original>
// kernel: tpu_custom_call.1
$region0: #{tpu_custom_call.1}
  #allocation0 [shape = 'u32[]', space=smem, size = 0x4, offset = 0x4, fixed_abs, tag = 'smem constant byte address 0x4 - core index']
  #allocation1 [shape = 'u32[144,128]{1,0:T(1,128)}', space=vmem, size = 0x12000, scoped, tag = 'internal scratch']
  %s0 = inlined_call_operand.vmem [shape: f32[2,288,8], index: 0, kind: input, shape index: {}]
  %s1 = inlined_call_operand.vmem [shape: s32[256,1], index: 1, kind: input, shape index: {}]
  %s2 = inlined_call_operand.vmem [shape: bf16[72,8], index: 2, kind: input, shape index: {}]
  %s3 = inlined_call_operand.vmem [shape: bf16[72,8], index: 3, kind: input, shape index: {}]
  %s4 = inlined_call_operand.vmem [shape: f32[1,8], index: 4, kind: input, shape index: {}]
  %s5 = inlined_call_operand.vmem [shape: f32[1,8], index: 5, kind: input, shape index: {}]
  %s6 = inlined_call_operand.vmem [shape: f32[1,8], index: 6, kind: input, shape index: {}]
  %s7 = inlined_call_operand.vmem [shape: f32[1,8], index: 7, kind: input, shape index: {}]
  %s8 = inlined_call_operand.vmem [shape: f32[2,256,8], index: 8, kind: output, shape index: {}]
  %s9 = sld [smem:[#allocation0]]
  $region65: #{tpu_custom_call.1} parent=0
    _
  %s11 = ssub.s32 1, %s9
  %s12 = scalar_select 0, %s11, %s9
  loop: start=0, step=1, limit=4
  $region2: #{tpu_custom_call.1} parent=0 // loop_pre_header
    _
  $region3: #{tpu_custom_call.1} parent=0 // loop_header
    %s14 = sphi 0, %s18
    %p15 = scmp.ge.s32.totalorder %s14, 4
    %s24 = sphi 0, %s26
    %s27 = sphi 0, %s24
    %s28 = sphi 0, %s27
    %s44 = sphi 0, %s28
    %s48 = sphi 0, %s48
    %s50 = sphi 0, %s48
    %s51 = sphi 0, %s50
    %s65 = sphi 0, %s51
    %s69 = sphi 0, %s69
    %s71 = sphi 0, %s69
    %s72 = sphi 0, %s71
    %s86 = sphi 0, %s72
    %s90 = sphi 0, %s90
    %s92 = sphi 0, %s90
    %s93 = sphi 0, %s92
    %s107 = sphi 0, %s93
    %s111 = sphi 0, %s111
    %s113 = sphi 0, %s111
    %s114 = sphi 0, %s113
    %s128 = sphi 0, %s114
    %s132 = sphi 0, %s132
    %s134 = sphi 0, %s132
    %s135 = sphi 0, %s134
    %s149 = sphi 0, %s135
    %s153 = sphi 0, %s153
    %s155 = sphi 0, %s153
    %s156 = sphi 0, %s155
    %s170 = sphi 0, %s156
    %s174 = sphi 0, %s174
    %s176 = sphi 0, %s174
    %s177 = sphi 0, %s176
    %s191 = sphi 0, %s177
    %s197 = sphi 0, %s199
    %s200 = sphi 0, %s197
    %s201 = sphi 0, %s200
    %s217 = sphi 0, %s201
  $region4: #{tpu_custom_call.1} parent=0 // loop_header_branch
    %17 = sbr.rel (%p15) target = $region8
  $region5: #{tpu_custom_call.1} parent=0 // loop_body
    %s19 = ssub.s32 %s14, 1
    %s20 = ssub.s32 %s14, 2
    %s21 = sadd.s32 %s14, 1
    %s22 = ssub.s32 %s14, %s21
    %p23 = scmp.eq.s32.totalorder %s22, 0
    %s25 = sadd.s32 %s24, 1
    %s26 = scalar_select %p23, %s24, %s25
    %p29 = pneg %p23
    %p30 = scmp.eq.s32.totalorder %s14, 1
    %p31 = por %p29, %p30
    %p32 = scmp.ne.s32.totalorder %s24, %s27
    %p33 = scmp.eq.s32.totalorder %s14, 0
    %p34 = por %p32, %p33
    %p35 = scmp.ne.s32.totalorder %s24, %s27
    %p36 = scmp.eq.s32.totalorder %s19, 1
    %p37 = por %p35, %p36
    %p38 = scmp.ne.s32.totalorder %s27, %s28
    %p39 = scmp.eq.s32.totalorder %s19, 0
    %p40 = por %p38, %p39
    %p41 = scmp.ne.s32.totalorder %s27, %s28
    %p42 = scmp.eq.s32.totalorder %s20, 1
    %p43 = por %p41, %p42
    %p45 = scmp.ne.s32.totalorder %s28, %s44
    %p46 = scmp.eq.s32.totalorder %s20, 0
    %p47 = por %p45, %p46
    %s49 = sadd.s32 %s48, 1
    %p52 = scmp.eq.s32.totalorder %s14, 1
    %p53 = scmp.ne.s32.totalorder %s48, %s50
    %p54 = scmp.eq.s32.totalorder %s14, 0
    %p55 = por %p53, %p54
    %p56 = scmp.ne.s32.totalorder %s48, %s50
    %p57 = scmp.eq.s32.totalorder %s19, 1
    %p58 = por %p56, %p57
    %p59 = scmp.ne.s32.totalorder %s50, %s51
    %p60 = scmp.eq.s32.totalorder %s19, 0
    %p61 = por %p59, %p60
    %p62 = scmp.ne.s32.totalorder %s50, %s51
    %p63 = scmp.eq.s32.totalorder %s20, 1
    %p64 = por %p62, %p63
    %p66 = scmp.ne.s32.totalorder %s51, %s65
    %p67 = scmp.eq.s32.totalorder %s20, 0
    %p68 = por %p66, %p67
    %s70 = sadd.s32 %s69, 1
    %p73 = scmp.eq.s32.totalorder %s14, 1
    %p74 = scmp.ne.s32.totalorder %s69, %s71
    %p75 = scmp.eq.s32.totalorder %s14, 0
    %p76 = por %p74, %p75
    %p77 = scmp.ne.s32.totalorder %s69, %s71
    %p78 = scmp.eq.s32.totalorder %s19, 1
    %p79 = por %p77, %p78
    %p80 = scmp.ne.s32.totalorder %s71, %s72
    %p81 = scmp.eq.s32.totalorder %s19, 0
    %p82 = por %p80, %p81
    %p83 = scmp.ne.s32.totalorder %s71, %s72
    %p84 = scmp.eq.s32.totalorder %s20, 1
    %p85 = por %p83, %p84
    %p87 = scmp.ne.s32.totalorder %s72, %s86
    %p88 = scmp.eq.s32.totalorder %s20, 0
    %p89 = por %p87, %p88
    %s91 = sadd.s32 %s90, 1
    %p94 = scmp.eq.s32.totalorder %s14, 1
    %p95 = scmp.ne.s32.totalorder %s90, %s92
    %p96 = scmp.eq.s32.totalorder %s14, 0
    %p97 = por %p95, %p96
    %p98 = scmp.ne.s32.totalorder %s90, %s92
    %p99 = scmp.eq.s32.totalorder %s19, 1
    %p100 = por %p98, %p99
    %p101 = scmp.ne.s32.totalorder %s92, %s93
    %p102 = scmp.eq.s32.totalorder %s19, 0
    %p103 = por %p101, %p102
    %p104 = scmp.ne.s32.totalorder %s92, %s93
    %p105 = scmp.eq.s32.totalorder %s20, 1
    %p106 = por %p104, %p105
    %p108 = scmp.ne.s32.totalorder %s93, %s107
    %p109 = scmp.eq.s32.totalorder %s20, 0
    %p110 = por %p108, %p109
    %s112 = sadd.s32 %s111, 1
    %p115 = scmp.eq.s32.totalorder %s14, 1
    %p116 = scmp.ne.s32.totalorder %s111, %s113
    %p117 = scmp.eq.s32.totalorder %s14, 0
    %p118 = por %p116, %p117
    %p119 = scmp.ne.s32.totalorder %s111, %s113
    %p120 = scmp.eq.s32.totalorder %s19, 1
    %p121 = por %p119, %p120
    %p122 = scmp.ne.s32.totalorder %s113, %s114
    %p123 = scmp.eq.s32.totalorder %s19, 0
    %p124 = por %p122, %p123
    %p125 = scmp.ne.s32.totalorder %s113, %s114
    %p126 = scmp.eq.s32.totalorder %s20, 1
    %p127 = por %p125, %p126
    %p129 = scmp.ne.s32.totalorder %s114, %s128
    %p130 = scmp.eq.s32.totalorder %s20, 0
    %p131 = por %p129, %p130
    %s133 = sadd.s32 %s132, 1
    %p136 = scmp.eq.s32.totalorder %s14, 1
    %p137 = scmp.ne.s32.totalorder %s132, %s134
    %p138 = scmp.eq.s32.totalorder %s14, 0
    %p139 = por %p137, %p138
    %p140 = scmp.ne.s32.totalorder %s132, %s134
    %p141 = scmp.eq.s32.totalorder %s19, 1
    %p142 = por %p140, %p141
    %p143 = scmp.ne.s32.totalorder %s134, %s135
    %p144 = scmp.eq.s32.totalorder %s19, 0
    %p145 = por %p143, %p144
    %p146 = scmp.ne.s32.totalorder %s134, %s135
    %p147 = scmp.eq.s32.totalorder %s20, 1
    %p148 = por %p146, %p147
    %p150 = scmp.ne.s32.totalorder %s135, %s149
    %p151 = scmp.eq.s32.totalorder %s20, 0
    %p152 = por %p150, %p151
    %s154 = sadd.s32 %s153, 1
    %p157 = scmp.eq.s32.totalorder %s14, 1
    %p158 = scmp.ne.s32.totalorder %s153, %s155
    %p159 = scmp.eq.s32.totalorder %s14, 0
    %p160 = por %p158, %p159
    %p161 = scmp.ne.s32.totalorder %s153, %s155
    %p162 = scmp.eq.s32.totalorder %s19, 1
    %p163 = por %p161, %p162
    %p164 = scmp.ne.s32.totalorder %s155, %s156
    %p165 = scmp.eq.s32.totalorder %s19, 0
    %p166 = por %p164, %p165
    %p167 = scmp.ne.s32.totalorder %s155, %s156
    %p168 = scmp.eq.s32.totalorder %s20, 1
    %p169 = por %p167, %p168
    %p171 = scmp.ne.s32.totalorder %s156, %s170
    %p172 = scmp.eq.s32.totalorder %s20, 0
    %p173 = por %p171, %p172
    %s175 = sadd.s32 %s174, 1
    %p178 = scmp.eq.s32.totalorder %s14, 1
    %p179 = scmp.ne.s32.totalorder %s174, %s176
    %p180 = scmp.eq.s32.totalorder %s14, 0
    %p181 = por %p179, %p180
    %p182 = scmp.ne.s32.totalorder %s174, %s176
    %p183 = scmp.eq.s32.totalorder %s19, 1
    %p184 = por %p182, %p183
    %p185 = scmp.ne.s32.totalorder %s176, %s177
    %p186 = scmp.eq.s32.totalorder %s19, 0
    %p187 = por %p185, %p186
    %p188 = scmp.ne.s32.totalorder %s176, %s177
    %p189 = scmp.eq.s32.totalorder %s20, 1
    %p190 = por %p188, %p189
    %p192 = scmp.ne.s32.totalorder %s177, %s191
    %p193 = scmp.eq.s32.totalorder %s20, 0
    %p194 = por %p192, %p193
    %s195 = ssub.s32 %s14, %s21
    %p196 = scmp.eq.s32.totalorder %s195, 0
    %s198 = sadd.s32 %s197, 1
    %s199 = scalar_select %p196, %s197, %s198
    %p202 = pneg %p196
    %p203 = scmp.eq.s32.totalorder %s14, 1
    %p204 = por %p202, %p203
    %p205 = scmp.ne.s32.totalorder %s197, %s200
    %p206 = scmp.eq.s32.totalorder %s14, 0
    %p207 = por %p205, %p206
    %p208 = scmp.ne.s32.totalorder %s197, %s200
    %p209 = scmp.eq.s32.totalorder %s19, 1
    %p210 = por %p208, %p209
    %p211 = scmp.ne.s32.totalorder %s200, %s201
    %p212 = scmp.eq.s32.totalorder %s19, 0
    %p213 = por %p211, %p212
    %p214 = scmp.ne.s32.totalorder %s200, %s201
    %p215 = scmp.eq.s32.totalorder %s20, 1
    %p216 = por %p214, %p215
    %p218 = scmp.ne.s32.totalorder %s201, %s217
    %p219 = scmp.eq.s32.totalorder %s20, 0
    %p220 = por %p218, %p219
    %p221 = scmp.le.s32.totalorder 1, %s14
    %p222 = scmp.lt.s32.totalorder %s14, 3
    %p223 = pnand %p221, %p222
    %p224 = pneg %p223
    // Predicated region
    $region9: #{tpu_custom_call.1} parent=5 // pred_check
      _
    $region10: #{tpu_custom_call.1} parent=5 // pred_check_branch
      %226 = sbr.rel (%p223) target = $region12
    $region11: #{tpu_custom_call.1} parent=5 // pred_region
      %s227 = ssub.s32 %s14, 1
      // Predicated region
      $region13: #{tpu_custom_call.1} parent=11 // pred_check
        %p228 = pneg %p61
      $region14: #{tpu_custom_call.1} parent=11 // pred_check_branch
        %230 = sbr.rel (%p228) target = $region16
      $region15: #{tpu_custom_call.1} parent=11 // pred_region
        _
      $region16: #{tpu_custom_call.1} parent=11 // pred_fallthru
        _
      // Predicated region
      $region17: #{tpu_custom_call.1} parent=11 // pred_check
        %p231 = pneg %p82
      $region18: #{tpu_custom_call.1} parent=11 // pred_check_branch
        %233 = sbr.rel (%p231) target = $region20
      $region19: #{tpu_custom_call.1} parent=11 // pred_region
        _
      $region20: #{tpu_custom_call.1} parent=11 // pred_fallthru
        _
      // Predicated region
      $region21: #{tpu_custom_call.1} parent=11 // pred_check
        %p234 = pneg %p103
      $region22: #{tpu_custom_call.1} parent=11 // pred_check_branch
        %236 = sbr.rel (%p234) target = $region24
      $region23: #{tpu_custom_call.1} parent=11 // pred_region
        _
      $region24: #{tpu_custom_call.1} parent=11 // pred_fallthru
        _
      // Predicated region
      $region25: #{tpu_custom_call.1} parent=11 // pred_check
        %p237 = pneg %p124
      $region26: #{tpu_custom_call.1} parent=11 // pred_check_branch
        %239 = sbr.rel (%p237) target = $region28
      $region27: #{tpu_custom_call.1} parent=11 // pred_region
        _
      $region28: #{tpu_custom_call.1} parent=11 // pred_fallthru
        _
      // Predicated region
      $region29: #{tpu_custom_call.1} parent=11 // pred_check
        %p240 = pneg %p145
      $region30: #{tpu_custom_call.1} parent=11 // pred_check_branch
        %242 = sbr.rel (%p240) target = $region32
      $region31: #{tpu_custom_call.1} parent=11 // pred_region
        _
      $region32: #{tpu_custom_call.1} parent=11 // pred_fallthru
        _
      // Predicated region
      $region33: #{tpu_custom_call.1} parent=11 // pred_check
        %p243 = pneg %p166
      $region34: #{tpu_custom_call.1} parent=11 // pred_check_branch
        %245 = sbr.rel (%p243) target = $region36
      $region35: #{tpu_custom_call.1} parent=11 // pred_region
        _
      $region36: #{tpu_custom_call.1} parent=11 // pred_fallthru
        _
      // Predicated region
      $region37: #{tpu_custom_call.1} parent=11 // pred_check
        %p246 = pneg %p187
      $region38: #{tpu_custom_call.1} parent=11 // pred_check_branch
        %248 = sbr.rel (%p246) target = $region40
      $region39: #{tpu_custom_call.1} parent=11 // pred_region
        _
      $region40: #{tpu_custom_call.1} parent=11 // pred_fallthru
        _
    $region12: #{tpu_custom_call.1} parent=5 // pred_fallthru
      _
    %p249 = scmp.lt.s32.totalorder %s14, 2
    // Predicated region
    $region41: #{tpu_custom_call.1} parent=5 // pred_check
      %p250 = pneg %p249
    $region42: #{tpu_custom_call.1} parent=5 // pred_check_branch
      %252 = sbr.rel (%p250) target = $region44
    $region43: #{tpu_custom_call.1} parent=5 // pred_region
      // Predicated region
      $region45: #{tpu_custom_call.1} parent=43 // pred_check
        %p253 = pneg %p34
      $region46: #{tpu_custom_call.1} parent=43 // pred_check_branch
        %255 = sbr.rel (%p253) target = $region48
      $region47: #{tpu_custom_call.1} parent=43 // pred_region
        %p256 = scmp.lt.s32.totalorder %s14, 1
        %s257 = scalar_select %p256, %s14, 1
        %s258 = smul.addr %s257, 36
        %s259 = smul.addr %s258, 8
        %s260 = scalar_lea.vmem %s0, %s259
      $region48: #{tpu_custom_call.1} parent=43 // pred_fallthru
        _
    $region44: #{tpu_custom_call.1} parent=5 // pred_fallthru
      _
    %p261 = scmp.le.s32.totalorder 1, %s14
    %p262 = scmp.lt.s32.totalorder %s14, 3
    %p263 = pnand %p261, %p262
    %p264 = pneg %p263
    // Predicated region
    $region49: #{tpu_custom_call.1} parent=5 // pred_check
      _
    $region50: #{tpu_custom_call.1} parent=5 // pred_check_branch
      %266 = sbr.rel (%p263) target = $region52
    $region51: #{tpu_custom_call.1} parent=5 // pred_region
      %s267 = ssub.s32 %s14, 1
      %p268 = scmp.lt.s32.totalorder %s19, 1
      %s269 = scalar_select %p268, %s19, 1
      %s270 = smul.addr %s269, 36
      %s271 = smul.addr %s270, 8
      %s272 = scalar_lea.vmem %s0, %s271
      %p273 = pneg %p40
      %p274 = pneg %p37
      %p275 = pneg %p61
      %p276 = pneg %p58
      %p277 = pneg %p82
      %p278 = pneg %p79
      %p279 = pneg %p103
      %p280 = pneg %p100
      %p281 = pneg %p124
      %p282 = pneg %p121
      %p283 = pneg %p145
      %p284 = pneg %p142
      %p285 = pneg %p166
      %p286 = pneg %p163
      %p287 = pneg %p187
      %p288 = pneg %p184
      %p289 = pneg %p213
      %p290 = pneg %p210
      %p291 = scmp.lt.s32.totalorder %s19, 1
      %s292 = scalar_select %p291, %s19, 1
      %s293 = smul.addr %s292, 32
      %s294 = smul.addr %s293, 8
      %s295 = scalar_lea.vmem %s8, %s294
      %p296 = scmp.lt.s32.totalorder %s19, 1
      %s297 = scalar_select %p296, %s19, 1
      %s298 = smul.addr %s297, 36
      %s299 = smul.addr %s298, 8
      %s300 = scalar_lea.vmem %s0, %s299
      %p301 = scmp.lt.s32.totalorder %s19, 1
      %s302 = scalar_select %p301, %s19, 1
      %s303 = smul.addr %s302, 32
      %s304 = smul.addr %s303, 8
      %s305 = scalar_lea.vmem %s8, %s304
      %v307 = vld [vmem:[%s300] sm:$0xff]
      %v308 = vld [vmem:[%s300 + $0x8] sm:$0xff]
      %v309 = vld [vmem:[%s300 + $0x10] sm:$0xff]
      %v310 = vld [vmem:[%s300 + $0x18] sm:$0xff]
      %v311 = vld [vmem:[%s300 + $0x20] sm:$0xff]
      %v312 = vld [vmem:[%s300 + $0x28] sm:$0xff]
      %v313 = vld [vmem:[%s300 + $0x30] sm:$0xff]
      %v314 = vld [vmem:[%s300 + $0x38] sm:$0xff]
      %v315 = vld [vmem:[%s300 + $0x40] sm:$0xff]
      %v316 = vld [vmem:[%s300 + $0x48] sm:$0xff]
      %v317 = vld [vmem:[%s300 + $0x50] sm:$0xff]
      %v318 = vld [vmem:[%s300 + $0x58] sm:$0xff]
      %v319 = vld [vmem:[%s300 + $0x60] sm:$0xff]
      %v320 = vld [vmem:[%s300 + $0x68] sm:$0xff]
      %v321 = vld [vmem:[%s300 + $0x70] sm:$0xff]
      %v322 = vld [vmem:[%s300 + $0x78] sm:$0xff]
      %v323 = vld [vmem:[%s300 + $0x80] sm:$0xff]
      %v324 = vld [vmem:[%s300 + $0x88] sm:$0xff]
      %v325 = vld [vmem:[%s300 + $0x90] sm:$0xff]
      %v326 = vld [vmem:[%s300 + $0x98] sm:$0xff]
      %v327 = vld [vmem:[%s300 + $0xa0] sm:$0xff]
      %v328 = vld [vmem:[%s300 + $0xa8] sm:$0xff]
      %v329 = vld [vmem:[%s300 + $0xb0] sm:$0xff]
      %v330 = vld [vmem:[%s300 + $0xb8] sm:$0xff]
      %v331 = vld [vmem:[%s300 + $0xc0] sm:$0xff]
      %v332 = vld [vmem:[%s300 + $0xc8] sm:$0xff]
      %v333 = vld [vmem:[%s300 + $0xd0] sm:$0xff]
      %v334 = vld [vmem:[%s300 + $0xd8] sm:$0xff]
      %v335 = vld [vmem:[%s300 + $0xe0] sm:$0xff]
      %v336 = vld [vmem:[%s300 + $0xe8] sm:$0xff]
      %v337 = vld [vmem:[%s300 + $0xf0] sm:$0xff]
      %v338 = vld [vmem:[%s300 + $0xf8] sm:$0xff]
      %v339 = vld [vmem:[%s300 + $0x100] sm:$0xff]
      %v340 = vld [vmem:[%s300 + $0x108] sm:$0xff]
      %v341 = vld [vmem:[%s300 + $0x110] sm:$0xff]
      %v342 = vld [vmem:[%s300 + $0x118] sm:$0xff]
      %v343 = vld [vmem:[%s1] sm:$0xff]
      %v344 = vld [vmem:[%s1 + $0x8] sm:$0xff]
      %v345 = vld [vmem:[%s1 + $0x10] sm:$0xff]
      %v346 = vld [vmem:[%s1 + $0x18] sm:$0xff]
      %v347 = vld [vmem:[%s1 + $0x20] sm:$0xff]
      %v348 = vld [vmem:[%s1 + $0x28] sm:$0xff]
      %v349 = vld [vmem:[%s1 + $0x30] sm:$0xff]
      %v350 = vld [vmem:[%s1 + $0x38] sm:$0xff]
      %v351 = vld [vmem:[%s1 + $0x40] sm:$0xff]
      %v352 = vld [vmem:[%s1 + $0x48] sm:$0xff]
      %v353 = vld [vmem:[%s1 + $0x50] sm:$0xff]
      %v354 = vld [vmem:[%s1 + $0x58] sm:$0xff]
      %v355 = vld [vmem:[%s1 + $0x60] sm:$0xff]
      %v356 = vld [vmem:[%s1 + $0x68] sm:$0xff]
      %v357 = vld [vmem:[%s1 + $0x70] sm:$0xff]
      %v358 = vld [vmem:[%s1 + $0x78] sm:$0xff]
      %v359 = vld [vmem:[%s1 + $0x80] sm:$0xff]
      %v360 = vld [vmem:[%s1 + $0x88] sm:$0xff]
      %v361 = vld [vmem:[%s1 + $0x90] sm:$0xff]
      %v362 = vld [vmem:[%s1 + $0x98] sm:$0xff]
      %v363 = vld [vmem:[%s1 + $0xa0] sm:$0xff]
      %v364 = vld [vmem:[%s1 + $0xa8] sm:$0xff]
      %v365 = vld [vmem:[%s1 + $0xb0] sm:$0xff]
      %v366 = vld [vmem:[%s1 + $0xb8] sm:$0xff]
      %v367 = vld [vmem:[%s1 + $0xc0] sm:$0xff]
      %v368 = vld [vmem:[%s1 + $0xc8] sm:$0xff]
      %v369 = vld [vmem:[%s1 + $0xd0] sm:$0xff]
      %v370 = vld [vmem:[%s1 + $0xd8] sm:$0xff]
      %v371 = vld [vmem:[%s1 + $0xe0] sm:$0xff]
      %v372 = vld [vmem:[%s1 + $0xe8] sm:$0xff]
      %v373 = vld [vmem:[%s1 + $0xf0] sm:$0xff]
      %v374 = vld [vmem:[%s1 + $0xf8] sm:$0xff]
      %vm375 = vcmp.ge.s32.totalorder %v343, 1
      %vm376 = vcmp.ge.s32.totalorder %v344, 1
      %vm377 = vcmp.ge.s32.totalorder %v345, 1
      %vm378 = vcmp.ge.s32.totalorder %v346, 1
      %vm379 = vcmp.ge.s32.totalorder %v347, 1
      %vm380 = vcmp.ge.s32.totalorder %v348, 1
      %vm381 = vcmp.ge.s32.totalorder %v349, 1
      %vm382 = vcmp.ge.s32.totalorder %v350, 1
      %vm383 = vcmp.ge.s32.totalorder %v351, 1
      %vm384 = vcmp.ge.s32.totalorder %v352, 1
      %vm385 = vcmp.ge.s32.totalorder %v353, 1
      %vm386 = vcmp.ge.s32.totalorder %v354, 1
      %vm387 = vcmp.ge.s32.totalorder %v355, 1
      %vm388 = vcmp.ge.s32.totalorder %v356, 1
      %vm389 = vcmp.ge.s32.totalorder %v357, 1
      %vm390 = vcmp.ge.s32.totalorder %v358, 1
      %vm391 = vcmp.ge.s32.totalorder %v359, 1
      %vm392 = vcmp.ge.s32.totalorder %v360, 1
      %vm393 = vcmp.ge.s32.totalorder %v361, 1
      %vm394 = vcmp.ge.s32.totalorder %v362, 1
      %vm395 = vcmp.ge.s32.totalorder %v363, 1
      %vm396 = vcmp.ge.s32.totalorder %v364, 1
      %vm397 = vcmp.ge.s32.totalorder %v365, 1
      %vm398 = vcmp.ge.s32.totalorder %v366, 1
      %vm399 = vcmp.ge.s32.totalorder %v367, 1
      %vm400 = vcmp.ge.s32.totalorder %v368, 1
      %vm401 = vcmp.ge.s32.totalorder %v369, 1
      %vm402 = vcmp.ge.s32.totalorder %v370, 1
      %vm403 = vcmp.ge.s32.totalorder %v371, 1
      %vm404 = vcmp.ge.s32.totalorder %v372, 1
      %vm405 = vcmp.ge.s32.totalorder %v373, 1
      %vm406 = vcmp.ge.s32.totalorder %v374, 1
      %vm407 = vcmp.le.s32.totalorder %v343, 14
      %vm408 = vcmp.le.s32.totalorder %v344, 14
      %vm409 = vcmp.le.s32.totalorder %v345, 14
      %vm410 = vcmp.le.s32.totalorder %v346, 14
      %vm411 = vcmp.le.s32.totalorder %v347, 14
      %vm412 = vcmp.le.s32.totalorder %v348, 14
      %vm413 = vcmp.le.s32.totalorder %v349, 14
      %vm414 = vcmp.le.s32.totalorder %v350, 14
      %vm415 = vcmp.le.s32.totalorder %v351, 14
      %vm416 = vcmp.le.s32.totalorder %v352, 14
      %vm417 = vcmp.le.s32.totalorder %v353, 14
      %vm418 = vcmp.le.s32.totalorder %v354, 14
      %vm419 = vcmp.le.s32.totalorder %v355, 14
      %vm420 = vcmp.le.s32.totalorder %v356, 14
      %vm421 = vcmp.le.s32.totalorder %v357, 14
      %vm422 = vcmp.le.s32.totalorder %v358, 14
      %vm423 = vcmp.le.s32.totalorder %v359, 14
      %vm424 = vcmp.le.s32.totalorder %v360, 14
      %vm425 = vcmp.le.s32.totalorder %v361, 14
      %vm426 = vcmp.le.s32.totalorder %v362, 14
      %vm427 = vcmp.le.s32.totalorder %v363, 14
      %vm428 = vcmp.le.s32.totalorder %v364, 14
      %vm429 = vcmp.le.s32.totalorder %v365, 14
      %vm430 = vcmp.le.s32.totalorder %v366, 14
      %vm431 = vcmp.le.s32.totalorder %v367, 14
      %vm432 = vcmp.le.s32.totalorder %v368, 14
      %vm433 = vcmp.le.s32.totalorder %v369, 14
      %vm434 = vcmp.le.s32.totalorder %v370, 14
      %vm435 = vcmp.le.s32.totalorder %v371, 14
      %vm436 = vcmp.le.s32.totalorder %v372, 14
      %vm437 = vcmp.le.s32.totalorder %v373, 14
      %vm438 = vcmp.le.s32.totalorder %v374, 14
      %v440 = vrot.slane %v338, 7
      %vm473 = vcmask 1040384
      %v474 = vrot.slane %v307, 7
      %v475 = vrot.slane %v308, 7
      %v476 = vsel %vm473, %v474, %v475
      %v477 = vrot.slane %v309, 7
      %v478 = vsel %vm473, %v475, %v477
      %v479 = vrot.slane %v310, 7
      %v480 = vsel %vm473, %v477, %v479
      %v481 = vrot.slane %v311, 7
      %v482 = vsel %vm473, %v479, %v481
      %v483 = vrot.slane %v312, 7
      %v484 = vsel %vm473, %v481, %v483
      %v485 = vrot.slane %v313, 7
      %v486 = vsel %vm473, %v483, %v485
      %v487 = vrot.slane %v314, 7
      %v488 = vsel %vm473, %v485, %v487
      %v489 = vrot.slane %v315, 7
      %v490 = vsel %vm473, %v487, %v489
      %v491 = vrot.slane %v316, 7
      %v492 = vsel %vm473, %v489, %v491
      %v493 = vrot.slane %v317, 7
      %v494 = vsel %vm473, %v491, %v493
      %v495 = vrot.slane %v318, 7
      %v496 = vsel %vm473, %v493, %v495
      %v497 = vrot.slane %v319, 7
      %v498 = vsel %vm473, %v495, %v497
      %v499 = vrot.slane %v320, 7
      %v500 = vsel %vm473, %v497, %v499
      %v501 = vrot.slane %v321, 7
      %v502 = vsel %vm473, %v499, %v501
      %v503 = vrot.slane %v322, 7
      %v504 = vsel %vm473, %v501, %v503
      %v505 = vrot.slane %v323, 7
      %v506 = vsel %vm473, %v503, %v505
      %v507 = vrot.slane %v324, 7
      %v508 = vsel %vm473, %v505, %v507
      %v509 = vrot.slane %v325, 7
      %v510 = vsel %vm473, %v507, %v509
      %v511 = vrot.slane %v326, 7
      %v512 = vsel %vm473, %v509, %v511
      %v513 = vrot.slane %v327, 7
      %v514 = vsel %vm473, %v511, %v513
      %v515 = vrot.slane %v328, 7
      %v516 = vsel %vm473, %v513, %v515
      %v517 = vrot.slane %v329, 7
      %v518 = vsel %vm473, %v515, %v517
      %v519 = vrot.slane %v330, 7
      %v520 = vsel %vm473, %v517, %v519
      %v521 = vrot.slane %v331, 7
      %v522 = vsel %vm473, %v519, %v521
      %v523 = vrot.slane %v332, 7
      %v524 = vsel %vm473, %v521, %v523
      %v525 = vrot.slane %v333, 7
      %v526 = vsel %vm473, %v523, %v525
      %v527 = vrot.slane %v334, 7
      %v528 = vsel %vm473, %v525, %v527
      %v529 = vrot.slane %v335, 7
      %v530 = vsel %vm473, %v527, %v529
      %v531 = vrot.slane %v336, 7
      %v532 = vsel %vm473, %v529, %v531
      %v533 = vrot.slane %v337, 7
      %v534 = vsel %vm473, %v531, %v533
      %v535 = vsel %vm473, %v533, %v440
      %v568 = vsel %vm473, %v440, %v474
      %v569 = vsel %vm375, 1, 0
      %v570 = vsel %vm376, 1, 0
      %v571 = vsel %vm377, 1, 0
      %v572 = vsel %vm378, 1, 0
      %v573 = vsel %vm379, 1, 0
      %v574 = vsel %vm380, 1, 0
      %v575 = vsel %vm381, 1, 0
      %v576 = vsel %vm382, 1, 0
      %v577 = vsel %vm383, 1, 0
      %v578 = vsel %vm384, 1, 0
      %v579 = vsel %vm385, 1, 0
      %v580 = vsel %vm386, 1, 0
      %v581 = vsel %vm387, 1, 0
      %v582 = vsel %vm388, 1, 0
      %v583 = vsel %vm389, 1, 0
      %v584 = vsel %vm390, 1, 0
      %v585 = vsel %vm391, 1, 0
      %v586 = vsel %vm392, 1, 0
      %v587 = vsel %vm393, 1, 0
      %v588 = vsel %vm394, 1, 0
      %v589 = vsel %vm395, 1, 0
      %v590 = vsel %vm396, 1, 0
      %v591 = vsel %vm397, 1, 0
      %v592 = vsel %vm398, 1, 0
      %v593 = vsel %vm399, 1, 0
      %v594 = vsel %vm400, 1, 0
      %v595 = vsel %vm401, 1, 0
      %v596 = vsel %vm402, 1, 0
      %v597 = vsel %vm403, 1, 0
      %v598 = vsel %vm404, 1, 0
      %v599 = vsel %vm405, 1, 0
      %v600 = vsel %vm406, 1, 0
      %601 = vset.pattern.permute.xlu0 0
      %602 = vperm.xlu0 %601, %v569
      %v603 = vpop.permute.xlu0 %602
      %604 = vset.pattern.permute.xlu0 0
      %605 = vperm.xlu0 %604, %v570
      %v606 = vpop.permute.xlu0 %605
      %607 = vset.pattern.permute.xlu0 0
      %608 = vperm.xlu0 %607, %v571
      %v609 = vpop.permute.xlu0 %608
      %610 = vset.pattern.permute.xlu0 0
      %611 = vperm.xlu0 %610, %v572
      %v612 = vpop.permute.xlu0 %611
      %613 = vset.pattern.permute.xlu0 0
      %614 = vperm.xlu0 %613, %v573
      %v615 = vpop.permute.xlu0 %614
      %616 = vset.pattern.permute.xlu0 0
      %617 = vperm.xlu0 %616, %v574
      %v618 = vpop.permute.xlu0 %617
      %619 = vset.pattern.permute.xlu0 0
      %620 = vperm.xlu0 %619, %v575
      %v621 = vpop.permute.xlu0 %620
      %622 = vset.pattern.permute.xlu0 0
      %623 = vperm.xlu0 %622, %v576
      %v624 = vpop.permute.xlu0 %623
      %625 = vset.pattern.permute.xlu0 0
      %626 = vperm.xlu0 %625, %v577
      %v627 = vpop.permute.xlu0 %626
      %628 = vset.pattern.permute.xlu0 0
      %629 = vperm.xlu0 %628, %v578
      %v630 = vpop.permute.xlu0 %629
      %631 = vset.pattern.permute.xlu0 0
      %632 = vperm.xlu0 %631, %v579
      %v633 = vpop.permute.xlu0 %632
      %634 = vset.pattern.permute.xlu0 0
      %635 = vperm.xlu0 %634, %v580
      %v636 = vpop.permute.xlu0 %635
      %637 = vset.pattern.permute.xlu0 0
      %638 = vperm.xlu0 %637, %v581
      %v639 = vpop.permute.xlu0 %638
      %640 = vset.pattern.permute.xlu0 0
      %641 = vperm.xlu0 %640, %v582
      %v642 = vpop.permute.xlu0 %641
      %643 = vset.pattern.permute.xlu0 0
      %644 = vperm.xlu0 %643, %v583
      %v645 = vpop.permute.xlu0 %644
      %646 = vset.pattern.permute.xlu0 0
      %647 = vperm.xlu0 %646, %v584
      %v648 = vpop.permute.xlu0 %647
      %649 = vset.pattern.permute.xlu0 0
      %650 = vperm.xlu0 %649, %v585
      %v651 = vpop.permute.xlu0 %650
      %652 = vset.pattern.permute.xlu0 0
      %653 = vperm.xlu0 %652, %v586
      %v654 = vpop.permute.xlu0 %653
      %655 = vset.pattern.permute.xlu0 0
      %656 = vperm.xlu0 %655, %v587
      %v657 = vpop.permute.xlu0 %656
      %658 = vset.pattern.permute.xlu0 0
      %659 = vperm.xlu0 %658, %v588
      %v660 = vpop.permute.xlu0 %659
      %661 = vset.pattern.permute.xlu0 0
      %662 = vperm.xlu0 %661, %v589
      %v663 = vpop.permute.xlu0 %662
      %664 = vset.pattern.permute.xlu0 0
      %665 = vperm.xlu0 %664, %v590
      %v666 = vpop.permute.xlu0 %665
      %667 = vset.pattern.permute.xlu0 0
      %668 = vperm.xlu0 %667, %v591
      %v669 = vpop.permute.xlu0 %668
      %670 = vset.pattern.permute.xlu0 0
      %671 = vperm.xlu0 %670, %v592
      %v672 = vpop.permute.xlu0 %671
      %673 = vset.pattern.permute.xlu0 0
      %674 = vperm.xlu0 %673, %v593
      %v675 = vpop.permute.xlu0 %674
      %676 = vset.pattern.permute.xlu0 0
      %677 = vperm.xlu0 %676, %v594
      %v678 = vpop.permute.xlu0 %677
      %679 = vset.pattern.permute.xlu0 0
      %680 = vperm.xlu0 %679, %v595
      %v681 = vpop.permute.xlu0 %680
      %682 = vset.pattern.permute.xlu0 0
      %683 = vperm.xlu0 %682, %v596
      %v684 = vpop.permute.xlu0 %683
      %685 = vset.pattern.permute.xlu0 0
      %686 = vperm.xlu0 %685, %v597
      %v687 = vpop.permute.xlu0 %686
      %688 = vset.pattern.permute.xlu0 0
      %689 = vperm.xlu0 %688, %v598
      %v690 = vpop.permute.xlu0 %689
      %691 = vset.pattern.permute.xlu0 0
      %692 = vperm.xlu0 %691, %v599
      %v693 = vpop.permute.xlu0 %692
      %694 = vset.pattern.permute.xlu0 0
      %695 = vperm.xlu0 %694, %v600
      %v696 = vpop.permute.xlu0 %695
      %vm697 = vcmp.eq.s32.totalorder %v603, 1
      %vm698 = vcmp.eq.s32.totalorder %v606, 1
      %vm699 = vcmp.eq.s32.totalorder %v609, 1
      %vm700 = vcmp.eq.s32.totalorder %v612, 1
      %vm701 = vcmp.eq.s32.totalorder %v615, 1
      %vm702 = vcmp.eq.s32.totalorder %v618, 1
      %vm703 = vcmp.eq.s32.totalorder %v621, 1
      %vm704 = vcmp.eq.s32.totalorder %v624, 1
      %vm705 = vcmp.eq.s32.totalorder %v627, 1
      %vm706 = vcmp.eq.s32.totalorder %v630, 1
      %vm707 = vcmp.eq.s32.totalorder %v633, 1
      %vm708 = vcmp.eq.s32.totalorder %v636, 1
      %vm709 = vcmp.eq.s32.totalorder %v639, 1
      %vm710 = vcmp.eq.s32.totalorder %v642, 1
      %vm711 = vcmp.eq.s32.totalorder %v645, 1
      %vm712 = vcmp.eq.s32.totalorder %v648, 1
      %vm713 = vcmp.eq.s32.totalorder %v651, 1
      %vm714 = vcmp.eq.s32.totalorder %v654, 1
      %vm715 = vcmp.eq.s32.totalorder %v657, 1
      %vm716 = vcmp.eq.s32.totalorder %v660, 1
      %vm717 = vcmp.eq.s32.totalorder %v663, 1
      %vm718 = vcmp.eq.s32.totalorder %v666, 1
      %vm719 = vcmp.eq.s32.totalorder %v669, 1
      %vm720 = vcmp.eq.s32.totalorder %v672, 1
      %vm721 = vcmp.eq.s32.totalorder %v675, 1
      %vm722 = vcmp.eq.s32.totalorder %v678, 1
      %vm723 = vcmp.eq.s32.totalorder %v681, 1
      %vm724 = vcmp.eq.s32.totalorder %v684, 1
      %vm725 = vcmp.eq.s32.totalorder %v687, 1
      %vm726 = vcmp.eq.s32.totalorder %v690, 1
      %vm727 = vcmp.eq.s32.totalorder %v693, 1
      %vm728 = vcmp.eq.s32.totalorder %v696, 1
      %v729 = vsel %vm697, %v568, 0.0
      %v730 = vsel %vm698, %v476, 0.0
      %v731 = vsel %vm699, %v478, 0.0
      %v732 = vsel %vm700, %v480, 0.0
      %v733 = vsel %vm701, %v482, 0.0
      %v734 = vsel %vm702, %v484, 0.0
      %v735 = vsel %vm703, %v486, 0.0
      %v736 = vsel %vm704, %v488, 0.0
      %v737 = vsel %vm705, %v490, 0.0
      %v738 = vsel %vm706, %v492, 0.0
      %v739 = vsel %vm707, %v494, 0.0
      %v740 = vsel %vm708, %v496, 0.0
      %v741 = vsel %vm709, %v498, 0.0
      %v742 = vsel %vm710, %v500, 0.0
      %v743 = vsel %vm711, %v502, 0.0
      %v744 = vsel %vm712, %v504, 0.0
      %v745 = vsel %vm713, %v506, 0.0
      %v746 = vsel %vm714, %v508, 0.0
      %v747 = vsel %vm715, %v510, 0.0
      %v748 = vsel %vm716, %v512, 0.0
      %v749 = vsel %vm717, %v514, 0.0
      %v750 = vsel %vm718, %v516, 0.0
      %v751 = vsel %vm719, %v518, 0.0
      %v752 = vsel %vm720, %v520, 0.0
      %v753 = vsel %vm721, %v522, 0.0
      %v754 = vsel %vm722, %v524, 0.0
      %v755 = vsel %vm723, %v526, 0.0
      %v756 = vsel %vm724, %v528, 0.0
      %v757 = vsel %vm725, %v530, 0.0
      %v758 = vsel %vm726, %v532, 0.0
      %v759 = vsel %vm727, %v534, 0.0
      %v760 = vsel %vm728, %v535, 0.0
      %v761 = vpack.c.bf16 %v730, %v729
      %v762 = vpack.c.bf16 %v732, %v731
      %v763 = vpack.c.bf16 %v734, %v733
      %v764 = vpack.c.bf16 %v736, %v735
      %v765 = vpack.c.bf16 %v738, %v737
      %v766 = vpack.c.bf16 %v740, %v739
      %v767 = vpack.c.bf16 %v742, %v741
      %v768 = vpack.c.bf16 %v744, %v743
      %v769 = vpack.c.bf16 %v746, %v745
      %v770 = vpack.c.bf16 %v748, %v747
      %v771 = vpack.c.bf16 %v750, %v749
      %v772 = vpack.c.bf16 %v752, %v751
      %v773 = vpack.c.bf16 %v754, %v753
      %v774 = vpack.c.bf16 %v756, %v755
      %v775 = vpack.c.bf16 %v758, %v757
      %v776 = vpack.c.bf16 %v760, %v759
      %v777 = vpack.c.bf16 %v308, %v307
      %v778 = vpack.c.bf16 %v310, %v309
      %v779 = vpack.c.bf16 %v312, %v311
      %v780 = vpack.c.bf16 %v314, %v313
      %v781 = vpack.c.bf16 %v316, %v315
      %v782 = vpack.c.bf16 %v318, %v317
      %v783 = vpack.c.bf16 %v320, %v319
      %v784 = vpack.c.bf16 %v322, %v321
      %v785 = vpack.c.bf16 %v324, %v323
      %v786 = vpack.c.bf16 %v326, %v325
      %v787 = vpack.c.bf16 %v328, %v327
      %v788 = vpack.c.bf16 %v330, %v329
      %v789 = vpack.c.bf16 %v332, %v331
      %v790 = vpack.c.bf16 %v334, %v333
      %v791 = vpack.c.bf16 %v336, %v335
      %v792 = vpack.c.bf16 %v338, %v337
      %vm793 = vcmask 1046528
      %v794 = vrot.slane %v307, 1
      %v795 = vrot.slane %v308, 1
      %v796 = vsel %vm793, %v794, %v795
      %v797 = vrot.slane %v309, 1
      %v798 = vsel %vm793, %v795, %v797
      %v799 = vrot.slane %v310, 1
      %v800 = vsel %vm793, %v797, %v799
      %v801 = vrot.slane %v311, 1
      %v802 = vsel %vm793, %v799, %v801
      %v803 = vrot.slane %v312, 1
      %v804 = vsel %vm793, %v801, %v803
      %v805 = vrot.slane %v313, 1
      %v806 = vsel %vm793, %v803, %v805
      %v807 = vrot.slane %v314, 1
      %v808 = vsel %vm793, %v805, %v807
      %v809 = vrot.slane %v315, 1
      %v810 = vsel %vm793, %v807, %v809
      %v811 = vrot.slane %v316, 1
      %v812 = vsel %vm793, %v809, %v811
      %v813 = vrot.slane %v317, 1
      %v814 = vsel %vm793, %v811, %v813
      %v815 = vrot.slane %v318, 1
      %v816 = vsel %vm793, %v813, %v815
      %v817 = vrot.slane %v319, 1
      %v818 = vsel %vm793, %v815, %v817
      %v819 = vrot.slane %v320, 1
      %v820 = vsel %vm793, %v817, %v819
      %v821 = vrot.slane %v321, 1
      %v822 = vsel %vm793, %v819, %v821
      %v823 = vrot.slane %v322, 1
      %v824 = vsel %vm793, %v821, %v823
      %v825 = vrot.slane %v323, 1
      %v826 = vsel %vm793, %v823, %v825
      %v827 = vrot.slane %v324, 1
      %v828 = vsel %vm793, %v825, %v827
      %v829 = vrot.slane %v325, 1
      %v830 = vsel %vm793, %v827, %v829
      %v831 = vrot.slane %v326, 1
      %v832 = vsel %vm793, %v829, %v831
      %v833 = vrot.slane %v327, 1
      %v834 = vsel %vm793, %v831, %v833
      %v835 = vrot.slane %v328, 1
      %v836 = vsel %vm793, %v833, %v835
      %v837 = vrot.slane %v329, 1
      %v838 = vsel %vm793, %v835, %v837
      %v839 = vrot.slane %v330, 1
      %v840 = vsel %vm793, %v837, %v839
      %v841 = vrot.slane %v331, 1
      %v842 = vsel %vm793, %v839, %v841
      %v843 = vrot.slane %v332, 1
      %v844 = vsel %vm793, %v841, %v843
      %v845 = vrot.slane %v333, 1
      %v846 = vsel %vm793, %v843, %v845
      %v847 = vrot.slane %v334, 1
      %v848 = vsel %vm793, %v845, %v847
      %v849 = vrot.slane %v335, 1
      %v850 = vsel %vm793, %v847, %v849
      %v851 = vrot.slane %v336, 1
      %v852 = vsel %vm793, %v849, %v851
      %v853 = vrot.slane %v337, 1
      %v854 = vsel %vm793, %v851, %v853
      %v855 = vrot.slane %v338, 1
      %v856 = vsel %vm793, %v853, %v855
      %v890 = vsel %vm793, %v855, %v794
      %v891 = vsel %vm407, 1, 0
      %v892 = vsel %vm408, 1, 0
      %v893 = vsel %vm409, 1, 0
      %v894 = vsel %vm410, 1, 0
      %v895 = vsel %vm411, 1, 0
      %v896 = vsel %vm412, 1, 0
      %v897 = vsel %vm413, 1, 0
      %v898 = vsel %vm414, 1, 0
      %v899 = vsel %vm415, 1, 0
      %v900 = vsel %vm416, 1, 0
      %v901 = vsel %vm417, 1, 0
      %v902 = vsel %vm418, 1, 0
      %v903 = vsel %vm419, 1, 0
      %v904 = vsel %vm420, 1, 0
      %v905 = vsel %vm421, 1, 0
      %v906 = vsel %vm422, 1, 0
      %v907 = vsel %vm423, 1, 0
      %v908 = vsel %vm424, 1, 0
      %v909 = vsel %vm425, 1, 0
      %v910 = vsel %vm426, 1, 0
      %v911 = vsel %vm427, 1, 0
      %v912 = vsel %vm428, 1, 0
      %v913 = vsel %vm429, 1, 0
      %v914 = vsel %vm430, 1, 0
      %v915 = vsel %vm431, 1, 0
      %v916 = vsel %vm432, 1, 0
      %v917 = vsel %vm433, 1, 0
      %v918 = vsel %vm434, 1, 0
      %v919 = vsel %vm435, 1, 0
      %v920 = vsel %vm436, 1, 0
      %v921 = vsel %vm437, 1, 0
      %v922 = vsel %vm438, 1, 0
      %923 = vset.pattern.permute.xlu0 0
      %924 = vperm.xlu0 %923, %v891
      %v925 = vpop.permute.xlu0 %924
      %926 = vset.pattern.permute.xlu0 0
      %927 = vperm.xlu0 %926, %v892
      %v928 = vpop.permute.xlu0 %927
      %929 = vset.pattern.permute.xlu0 0
      %930 = vperm.xlu0 %929, %v893
      %v931 = vpop.permute.xlu0 %930
      %932 = vset.pattern.permute.xlu0 0
      %933 = vperm.xlu0 %932, %v894
      %v934 = vpop.permute.xlu0 %933
      %935 = vset.pattern.permute.xlu0 0
      %936 = vperm.xlu0 %935, %v895
      %v937 = vpop.permute.xlu0 %936
      %938 = vset.pattern.permute.xlu0 0
      %939 = vperm.xlu0 %938, %v896
      %v940 = vpop.permute.xlu0 %939
      %941 = vset.pattern.permute.xlu0 0
      %942 = vperm.xlu0 %941, %v897
      %v943 = vpop.permute.xlu0 %942
      %944 = vset.pattern.permute.xlu0 0
      %945 = vperm.xlu0 %944, %v898
      %v946 = vpop.permute.xlu0 %945
      %947 = vset.pattern.permute.xlu0 0
      %948 = vperm.xlu0 %947, %v899
      %v949 = vpop.permute.xlu0 %948
      %950 = vset.pattern.permute.xlu0 0
      %951 = vperm.xlu0 %950, %v900
      %v952 = vpop.permute.xlu0 %951
      %953 = vset.pattern.permute.xlu0 0
      %954 = vperm.xlu0 %953, %v901
      %v955 = vpop.permute.xlu0 %954
      %956 = vset.pattern.permute.xlu0 0
      %957 = vperm.xlu0 %956, %v902
      %v958 = vpop.permute.xlu0 %957
      %959 = vset.pattern.permute.xlu0 0
      %960 = vperm.xlu0 %959, %v903
      %v961 = vpop.permute.xlu0 %960
      %962 = vset.pattern.permute.xlu0 0
      %963 = vperm.xlu0 %962, %v904
      %v964 = vpop.permute.xlu0 %963
      %965 = vset.pattern.permute.xlu0 0
      %966 = vperm.xlu0 %965, %v905
      %v967 = vpop.permute.xlu0 %966
      %968 = vset.pattern.permute.xlu0 0
      %969 = vperm.xlu0 %968, %v906
      %v970 = vpop.permute.xlu0 %969
      %971 = vset.pattern.permute.xlu0 0
      %972 = vperm.xlu0 %971, %v907
      %v973 = vpop.permute.xlu0 %972
      %974 = vset.pattern.permute.xlu0 0
      %975 = vperm.xlu0 %974, %v908
      %v976 = vpop.permute.xlu0 %975
      %977 = vset.pattern.permute.xlu0 0
      %978 = vperm.xlu0 %977, %v909
      %v979 = vpop.permute.xlu0 %978
      %980 = vset.pattern.permute.xlu0 0
      %981 = vperm.xlu0 %980, %v910
      %v982 = vpop.permute.xlu0 %981
      %983 = vset.pattern.permute.xlu0 0
      %984 = vperm.xlu0 %983, %v911
      %v985 = vpop.permute.xlu0 %984
      %986 = vset.pattern.permute.xlu0 0
      %987 = vperm.xlu0 %986, %v912
      %v988 = vpop.permute.xlu0 %987
      %989 = vset.pattern.permute.xlu0 0
      %990 = vperm.xlu0 %989, %v913
      %v991 = vpop.permute.xlu0 %990
      %992 = vset.pattern.permute.xlu0 0
      %993 = vperm.xlu0 %992, %v914
      %v994 = vpop.permute.xlu0 %993
      %995 = vset.pattern.permute.xlu0 0
      %996 = vperm.xlu0 %995, %v915
      %v997 = vpop.permute.xlu0 %996
      %998 = vset.pattern.permute.xlu0 0
      %999 = vperm.xlu0 %998, %v916
      %v1000 = vpop.permute.xlu0 %999
      %1001 = vset.pattern.permute.xlu0 0
      %1002 = vperm.xlu0 %1001, %v917
      %v1003 = vpop.permute.xlu0 %1002
      %1004 = vset.pattern.permute.xlu0 0
      %1005 = vperm.xlu0 %1004, %v918
      %v1006 = vpop.permute.xlu0 %1005
      %1007 = vset.pattern.permute.xlu0 0
      %1008 = vperm.xlu0 %1007, %v919
      %v1009 = vpop.permute.xlu0 %1008
      %1010 = vset.pattern.permute.xlu0 0
      %1011 = vperm.xlu0 %1010, %v920
      %v1012 = vpop.permute.xlu0 %1011
      %1013 = vset.pattern.permute.xlu0 0
      %1014 = vperm.xlu0 %1013, %v921
      %v1015 = vpop.permute.xlu0 %1014
      %1016 = vset.pattern.permute.xlu0 0
      %1017 = vperm.xlu0 %1016, %v922
      %v1018 = vpop.permute.xlu0 %1017
      %vm1019 = vcmp.eq.s32.totalorder %v925, 1
      %vm1020 = vcmp.eq.s32.totalorder %v928, 1
      %vm1021 = vcmp.eq.s32.totalorder %v931, 1
      %vm1022 = vcmp.eq.s32.totalorder %v934, 1
      %vm1023 = vcmp.eq.s32.totalorder %v937, 1
      %vm1024 = vcmp.eq.s32.totalorder %v940, 1
      %vm1025 = vcmp.eq.s32.totalorder %v943, 1
      %vm1026 = vcmp.eq.s32.totalorder %v946, 1
      %vm1027 = vcmp.eq.s32.totalorder %v949, 1
      %vm1028 = vcmp.eq.s32.totalorder %v952, 1
      %vm1029 = vcmp.eq.s32.totalorder %v955, 1
      %vm1030 = vcmp.eq.s32.totalorder %v958, 1
      %vm1031 = vcmp.eq.s32.totalorder %v961, 1
      %vm1032 = vcmp.eq.s32.totalorder %v964, 1
      %vm1033 = vcmp.eq.s32.totalorder %v967, 1
      %vm1034 = vcmp.eq.s32.totalorder %v970, 1
      %vm1035 = vcmp.eq.s32.totalorder %v973, 1
      %vm1036 = vcmp.eq.s32.totalorder %v976, 1
      %vm1037 = vcmp.eq.s32.totalorder %v979, 1
      %vm1038 = vcmp.eq.s32.totalorder %v982, 1
      %vm1039 = vcmp.eq.s32.totalorder %v985, 1
      %vm1040 = vcmp.eq.s32.totalorder %v988, 1
      %vm1041 = vcmp.eq.s32.totalorder %v991, 1
      %vm1042 = vcmp.eq.s32.totalorder %v994, 1
      %vm1043 = vcmp.eq.s32.totalorder %v997, 1
      %vm1044 = vcmp.eq.s32.totalorder %v1000, 1
      %vm1045 = vcmp.eq.s32.totalorder %v1003, 1
      %vm1046 = vcmp.eq.s32.totalorder %v1006, 1
      %vm1047 = vcmp.eq.s32.totalorder %v1009, 1
      %vm1048 = vcmp.eq.s32.totalorder %v1012, 1
      %vm1049 = vcmp.eq.s32.totalorder %v1015, 1
      %vm1050 = vcmp.eq.s32.totalorder %v1018, 1
      %v1051 = vsel %vm1019, %v796, 0.0
      %v1052 = vsel %vm1020, %v798, 0.0
      %v1053 = vsel %vm1021, %v800, 0.0
      %v1054 = vsel %vm1022, %v802, 0.0
      %v1055 = vsel %vm1023, %v804, 0.0
      %v1056 = vsel %vm1024, %v806, 0.0
      %v1057 = vsel %vm1025, %v808, 0.0
      %v1058 = vsel %vm1026, %v810, 0.0
      %v1059 = vsel %vm1027, %v812, 0.0
      %v1060 = vsel %vm1028, %v814, 0.0
      %v1061 = vsel %vm1029, %v816, 0.0
      %v1062 = vsel %vm1030, %v818, 0.0
      %v1063 = vsel %vm1031, %v820, 0.0
      %v1064 = vsel %vm1032, %v822, 0.0
      %v1065 = vsel %vm1033, %v824, 0.0
      %v1066 = vsel %vm1034, %v826, 0.0
      %v1067 = vsel %vm1035, %v828, 0.0
      %v1068 = vsel %vm1036, %v830, 0.0
      %v1069 = vsel %vm1037, %v832, 0.0
      %v1070 = vsel %vm1038, %v834, 0.0
      %v1071 = vsel %vm1039, %v836, 0.0
      %v1072 = vsel %vm1040, %v838, 0.0
      %v1073 = vsel %vm1041, %v840, 0.0
      %v1074 = vsel %vm1042, %v842, 0.0
      %v1075 = vsel %vm1043, %v844, 0.0
      %v1076 = vsel %vm1044, %v846, 0.0
      %v1077 = vsel %vm1045, %v848, 0.0
      %v1078 = vsel %vm1046, %v850, 0.0
      %v1079 = vsel %vm1047, %v852, 0.0
      %v1080 = vsel %vm1048, %v854, 0.0
      %v1081 = vsel %vm1049, %v856, 0.0
      %v1082 = vsel %vm1050, %v890, 0.0
      %v1083 = vpack.c.bf16 %v1052, %v1051
      %v1084 = vpack.c.bf16 %v1054, %v1053
      %v1085 = vpack.c.bf16 %v1056, %v1055
      %v1086 = vpack.c.bf16 %v1058, %v1057
      %v1087 = vpack.c.bf16 %v1060, %v1059
      %v1088 = vpack.c.bf16 %v1062, %v1061
      %v1089 = vpack.c.bf16 %v1064, %v1063
      %v1090 = vpack.c.bf16 %v1066, %v1065
      %v1091 = vpack.c.bf16 %v1068, %v1067
      %v1092 = vpack.c.bf16 %v1070, %v1069
      %v1093 = vpack.c.bf16 %v1072, %v1071
      %v1094 = vpack.c.bf16 %v1074, %v1073
      %v1095 = vpack.c.bf16 %v1076, %v1075
      %v1096 = vpack.c.bf16 %v1078, %v1077
      %v1097 = vpack.c.bf16 %v1080, %v1079
      %v1098 = vpack.c.bf16 %v1082, %v1081
      %v1100 = vrot.slane %v340, 7
      %v1103 = vrot.slane %v339, 7
      %v1104 = vsel %vm473, %v440, %v1103
      %v1105 = vsel %vm473, %v1103, %v1100
      %v1109 = vsel %vm473, %v1100, %v477
      %v1110 = vsel %vm697, %v1109, 0.0
      %v1111 = vsel %vm698, %v480, 0.0
      %v1112 = vsel %vm699, %v482, 0.0
      %v1113 = vsel %vm700, %v484, 0.0
      %v1114 = vsel %vm701, %v486, 0.0
      %v1115 = vsel %vm702, %v488, 0.0
      %v1116 = vsel %vm703, %v490, 0.0
      %v1117 = vsel %vm704, %v492, 0.0
      %v1118 = vsel %vm705, %v494, 0.0
      %v1119 = vsel %vm706, %v496, 0.0
      %v1120 = vsel %vm707, %v498, 0.0
      %v1121 = vsel %vm708, %v500, 0.0
      %v1122 = vsel %vm709, %v502, 0.0
      %v1123 = vsel %vm710, %v504, 0.0
      %v1124 = vsel %vm711, %v506, 0.0
      %v1125 = vsel %vm712, %v508, 0.0
      %v1126 = vsel %vm713, %v510, 0.0
      %v1127 = vsel %vm714, %v512, 0.0
      %v1128 = vsel %vm715, %v514, 0.0
      %v1129 = vsel %vm716, %v516, 0.0
      %v1130 = vsel %vm717, %v518, 0.0
      %v1131 = vsel %vm718, %v520, 0.0
      %v1132 = vsel %vm719, %v522, 0.0
      %v1133 = vsel %vm720, %v524, 0.0
      %v1134 = vsel %vm721, %v526, 0.0
      %v1135 = vsel %vm722, %v528, 0.0
      %v1136 = vsel %vm723, %v530, 0.0
      %v1137 = vsel %vm724, %v532, 0.0
      %v1138 = vsel %vm725, %v534, 0.0
      %v1139 = vsel %vm726, %v535, 0.0
      %v1140 = vsel %vm727, %v1104, 0.0
      %v1141 = vsel %vm728, %v1105, 0.0
      %v1142 = vpack.c.bf16 %v1111, %v1110
      %v1143 = vpack.c.bf16 %v1113, %v1112
      %v1144 = vpack.c.bf16 %v1115, %v1114
      %v1145 = vpack.c.bf16 %v1117, %v1116
      %v1146 = vpack.c.bf16 %v1119, %v1118
      %v1147 = vpack.c.bf16 %v1121, %v1120
      %v1148 = vpack.c.bf16 %v1123, %v1122
      %v1149 = vpack.c.bf16 %v1125, %v1124
      %v1150 = vpack.c.bf16 %v1127, %v1126
      %v1151 = vpack.c.bf16 %v1129, %v1128
      %v1152 = vpack.c.bf16 %v1131, %v1130
      %v1153 = vpack.c.bf16 %v1133, %v1132
      %v1154 = vpack.c.bf16 %v1135, %v1134
      %v1155 = vpack.c.bf16 %v1137, %v1136
      %v1156 = vpack.c.bf16 %v1139, %v1138
      %v1157 = vpack.c.bf16 %v1141, %v1140
      %v1158 = vpack.c.bf16 %v340, %v339
      %v1159 = vrot.slane %v339, 1
      %v1160 = vsel %vm793, %v855, %v1159
      %v1161 = vrot.slane %v340, 1
      %v1162 = vsel %vm793, %v1159, %v1161
      %v1167 = vsel %vm793, %v1161, %v797
      %v1168 = vsel %vm1019, %v800, 0.0
      %v1169 = vsel %vm1020, %v802, 0.0
      %v1170 = vsel %vm1021, %v804, 0.0
      %v1171 = vsel %vm1022, %v806, 0.0
      %v1172 = vsel %vm1023, %v808, 0.0
      %v1173 = vsel %vm1024, %v810, 0.0
      %v1174 = vsel %vm1025, %v812, 0.0
      %v1175 = vsel %vm1026, %v814, 0.0
      %v1176 = vsel %vm1027, %v816, 0.0
      %v1177 = vsel %vm1028, %v818, 0.0
      %v1178 = vsel %vm1029, %v820, 0.0
      %v1179 = vsel %vm1030, %v822, 0.0
      %v1180 = vsel %vm1031, %v824, 0.0
      %v1181 = vsel %vm1032, %v826, 0.0
      %v1182 = vsel %vm1033, %v828, 0.0
      %v1183 = vsel %vm1034, %v830, 0.0
      %v1184 = vsel %vm1035, %v832, 0.0
      %v1185 = vsel %vm1036, %v834, 0.0
      %v1186 = vsel %vm1037, %v836, 0.0
      %v1187 = vsel %vm1038, %v838, 0.0
      %v1188 = vsel %vm1039, %v840, 0.0
      %v1189 = vsel %vm1040, %v842, 0.0
      %v1190 = vsel %vm1041, %v844, 0.0
      %v1191 = vsel %vm1042, %v846, 0.0
      %v1192 = vsel %vm1043, %v848, 0.0
      %v1193 = vsel %vm1044, %v850, 0.0
      %v1194 = vsel %vm1045, %v852, 0.0
      %v1195 = vsel %vm1046, %v854, 0.0
      %v1196 = vsel %vm1047, %v856, 0.0
      %v1197 = vsel %vm1048, %v1160, 0.0
      %v1198 = vsel %vm1049, %v1162, 0.0
      %v1199 = vsel %vm1050, %v1167, 0.0
      %v1200 = vpack.c.bf16 %v1169, %v1168
      %v1201 = vpack.c.bf16 %v1171, %v1170
      %v1202 = vpack.c.bf16 %v1173, %v1172
      %v1203 = vpack.c.bf16 %v1175, %v1174
      %v1204 = vpack.c.bf16 %v1177, %v1176
      %v1205 = vpack.c.bf16 %v1179, %v1178
      %v1206 = vpack.c.bf16 %v1181, %v1180
      %v1207 = vpack.c.bf16 %v1183, %v1182
      %v1208 = vpack.c.bf16 %v1185, %v1184
      %v1209 = vpack.c.bf16 %v1187, %v1186
      %v1210 = vpack.c.bf16 %v1189, %v1188
      %v1211 = vpack.c.bf16 %v1191, %v1190
      %v1212 = vpack.c.bf16 %v1193, %v1192
      %v1213 = vpack.c.bf16 %v1195, %v1194
      %v1214 = vpack.c.bf16 %v1197, %v1196
      %v1215 = vpack.c.bf16 %v1199, %v1198
      %v1217 = vrot.slane %v342, 7
      %v1220 = vrot.slane %v341, 7
      %v1221 = vsel %vm473, %v1100, %v1220
      %v1222 = vsel %vm473, %v1220, %v1217
      %v1226 = vsel %vm473, %v1217, %v481
      %v1227 = vsel %vm697, %v1226, 0.0
      %v1228 = vsel %vm698, %v484, 0.0
      %v1229 = vsel %vm699, %v486, 0.0
      %v1230 = vsel %vm700, %v488, 0.0
      %v1231 = vsel %vm701, %v490, 0.0
      %v1232 = vsel %vm702, %v492, 0.0
      %v1233 = vsel %vm703, %v494, 0.0
      %v1234 = vsel %vm704, %v496, 0.0
      %v1235 = vsel %vm705, %v498, 0.0
      %v1236 = vsel %vm706, %v500, 0.0
      %v1237 = vsel %vm707, %v502, 0.0
      %v1238 = vsel %vm708, %v504, 0.0
      %v1239 = vsel %vm709, %v506, 0.0
      %v1240 = vsel %vm710, %v508, 0.0
      %v1241 = vsel %vm711, %v510, 0.0
      %v1242 = vsel %vm712, %v512, 0.0
      %v1243 = vsel %vm713, %v514, 0.0
      %v1244 = vsel %vm714, %v516, 0.0
      %v1245 = vsel %vm715, %v518, 0.0
      %v1246 = vsel %vm716, %v520, 0.0
      %v1247 = vsel %vm717, %v522, 0.0
      %v1248 = vsel %vm718, %v524, 0.0
      %v1249 = vsel %vm719, %v526, 0.0
      %v1250 = vsel %vm720, %v528, 0.0
      %v1251 = vsel %vm721, %v530, 0.0
      %v1252 = vsel %vm722, %v532, 0.0
      %v1253 = vsel %vm723, %v534, 0.0
      %v1254 = vsel %vm724, %v535, 0.0
      %v1255 = vsel %vm725, %v1104, 0.0
      %v1256 = vsel %vm726, %v1105, 0.0
      %v1257 = vsel %vm727, %v1221, 0.0
      %v1258 = vsel %vm728, %v1222, 0.0
      %v1259 = vpack.c.bf16 %v1228, %v1227
      %v1260 = vpack.c.bf16 %v1230, %v1229
      %v1261 = vpack.c.bf16 %v1232, %v1231
      %v1262 = vpack.c.bf16 %v1234, %v1233
      %v1263 = vpack.c.bf16 %v1236, %v1235
      %v1264 = vpack.c.bf16 %v1238, %v1237
      %v1265 = vpack.c.bf16 %v1240, %v1239
      %v1266 = vpack.c.bf16 %v1242, %v1241
      %v1267 = vpack.c.bf16 %v1244, %v1243
      %v1268 = vpack.c.bf16 %v1246, %v1245
      %v1269 = vpack.c.bf16 %v1248, %v1247
      %v1270 = vpack.c.bf16 %v1250, %v1249
      %v1271 = vpack.c.bf16 %v1252, %v1251
      %v1272 = vpack.c.bf16 %v1254, %v1253
      %v1273 = vpack.c.bf16 %v1256, %v1255
      %v1274 = vpack.c.bf16 %v1258, %v1257
      %v1275 = vpack.c.bf16 %v342, %v341
      %v1276 = vrot.slane %v341, 1
      %v1277 = vsel %vm793, %v1161, %v1276
      %v1278 = vrot.slane %v342, 1
      %v1279 = vsel %vm793, %v1276, %v1278
      %v1284 = vsel %vm793, %v1278, %v801
      %v1285 = vsel %vm1019, %v804, 0.0
      %v1286 = vsel %vm1020, %v806, 0.0
      %v1287 = vsel %vm1021, %v808, 0.0
      %v1288 = vsel %vm1022, %v810, 0.0
      %v1289 = vsel %vm1023, %v812, 0.0
      %v1290 = vsel %vm1024, %v814, 0.0
      %v1291 = vsel %vm1025, %v816, 0.0
      %v1292 = vsel %vm1026, %v818, 0.0
      %v1293 = vsel %vm1027, %v820, 0.0
      %v1294 = vsel %vm1028, %v822, 0.0
      %v1295 = vsel %vm1029, %v824, 0.0
      %v1296 = vsel %vm1030, %v826, 0.0
      %v1297 = vsel %vm1031, %v828, 0.0
      %v1298 = vsel %vm1032, %v830, 0.0
      %v1299 = vsel %vm1033, %v832, 0.0
      %v1300 = vsel %vm1034, %v834, 0.0
      %v1301 = vsel %vm1035, %v836, 0.0
      %v1302 = vsel %vm1036, %v838, 0.0
      %v1303 = vsel %vm1037, %v840, 0.0
      %v1304 = vsel %vm1038, %v842, 0.0
      %v1305 = vsel %vm1039, %v844, 0.0
      %v1306 = vsel %vm1040, %v846, 0.0
      %v1307 = vsel %vm1041, %v848, 0.0
      %v1308 = vsel %vm1042, %v850, 0.0
      %v1309 = vsel %vm1043, %v852, 0.0
      %v1310 = vsel %vm1044, %v854, 0.0
      %v1311 = vsel %vm1045, %v856, 0.0
      %v1312 = vsel %vm1046, %v1160, 0.0
      %v1313 = vsel %vm1047, %v1162, 0.0
      %v1314 = vsel %vm1048, %v1277, 0.0
      %v1315 = vsel %vm1049, %v1279, 0.0
      %v1316 = vsel %vm1050, %v1284, 0.0
      %v1317 = vpack.c.bf16 %v1286, %v1285
      %v1318 = vpack.c.bf16 %v1288, %v1287
      %v1319 = vpack.c.bf16 %v1290, %v1289
      %v1320 = vpack.c.bf16 %v1292, %v1291
      %v1321 = vpack.c.bf16 %v1294, %v1293
      %v1322 = vpack.c.bf16 %v1296, %v1295
      %v1323 = vpack.c.bf16 %v1298, %v1297
      %v1324 = vpack.c.bf16 %v1300, %v1299
      %v1325 = vpack.c.bf16 %v1302, %v1301
      %v1326 = vpack.c.bf16 %v1304, %v1303
      %v1327 = vpack.c.bf16 %v1306, %v1305
      %v1328 = vpack.c.bf16 %v1308, %v1307
      %v1329 = vpack.c.bf16 %v1310, %v1309
      %v1330 = vpack.c.bf16 %v1312, %v1311
      %v1331 = vpack.c.bf16 %v1314, %v1313
      %v1332 = vpack.c.bf16 %v1316, %v1315
      %1349 = vrot.lane.b32.xlu0 %v777, 8
      %v1350 = vpop.permute.xlu0 %1349
      %1351 = vrot.lane.b32.xlu0 %v778, 8
      %v1352 = vpop.permute.xlu0 %1351
      %1353 = vrot.lane.b32.xlu0 %v779, 8
      %v1354 = vpop.permute.xlu0 %1353
      %1355 = vrot.lane.b32.xlu0 %v780, 8
      %v1356 = vpop.permute.xlu0 %1355
      %1357 = vrot.lane.b32.xlu0 %v781, 8
      %v1358 = vpop.permute.xlu0 %1357
      %1359 = vrot.lane.b32.xlu0 %v782, 8
      %v1360 = vpop.permute.xlu0 %1359
      %1361 = vrot.lane.b32.xlu0 %v783, 8
      %v1362 = vpop.permute.xlu0 %1361
      %1363 = vrot.lane.b32.xlu0 %v784, 8
      %v1364 = vpop.permute.xlu0 %1363
      %1365 = vrot.lane.b32.xlu0 %v785, 8
      %v1366 = vpop.permute.xlu0 %1365
      %1367 = vrot.lane.b32.xlu0 %v786, 8
      %v1368 = vpop.permute.xlu0 %1367
      %1369 = vrot.lane.b32.xlu0 %v787, 8
      %v1370 = vpop.permute.xlu0 %1369
      %1371 = vrot.lane.b32.xlu0 %v788, 8
      %v1372 = vpop.permute.xlu0 %1371
      %1373 = vrot.lane.b32.xlu0 %v789, 8
      %v1374 = vpop.permute.xlu0 %1373
      %1375 = vrot.lane.b32.xlu0 %v790, 8
      %v1376 = vpop.permute.xlu0 %1375
      %1377 = vrot.lane.b32.xlu0 %v791, 8
      %v1378 = vpop.permute.xlu0 %1377
      %1379 = vrot.lane.b32.xlu0 %v792, 8
      %v1380 = vpop.permute.xlu0 %1379
      %1397 = vrot.lane.b32.xlu0 %v1083, 16
      %v1398 = vpop.permute.xlu0 %1397
      %1399 = vrot.lane.b32.xlu0 %v1084, 16
      %v1400 = vpop.permute.xlu0 %1399
      %1401 = vrot.lane.b32.xlu0 %v1085, 16
      %v1402 = vpop.permute.xlu0 %1401
      %1403 = vrot.lane.b32.xlu0 %v1086, 16
      %v1404 = vpop.permute.xlu0 %1403
      %1405 = vrot.lane.b32.xlu0 %v1087, 16
      %v1406 = vpop.permute.xlu0 %1405
      %1407 = vrot.lane.b32.xlu0 %v1088, 16
      %v1408 = vpop.permute.xlu0 %1407
      %1409 = vrot.lane.b32.xlu0 %v1089, 16
      %v1410 = vpop.permute.xlu0 %1409
      %1411 = vrot.lane.b32.xlu0 %v1090, 16
      %v1412 = vpop.permute.xlu0 %1411
      %1413 = vrot.lane.b32.xlu0 %v1091, 16
      %v1414 = vpop.permute.xlu0 %1413
      %1415 = vrot.lane.b32.xlu0 %v1092, 16
      %v1416 = vpop.permute.xlu0 %1415
      %1417 = vrot.lane.b32.xlu0 %v1093, 16
      %v1418 = vpop.permute.xlu0 %1417
      %1419 = vrot.lane.b32.xlu0 %v1094, 16
      %v1420 = vpop.permute.xlu0 %1419
      %1421 = vrot.lane.b32.xlu0 %v1095, 16
      %v1422 = vpop.permute.xlu0 %1421
      %1423 = vrot.lane.b32.xlu0 %v1096, 16
      %v1424 = vpop.permute.xlu0 %1423
      %1425 = vrot.lane.b32.xlu0 %v1097, 16
      %v1426 = vpop.permute.xlu0 %1425
      %1427 = vrot.lane.b32.xlu0 %v1098, 16
      %v1428 = vpop.permute.xlu0 %1427
      %1445 = vrot.lane.b32.xlu0 %v1142, 24
      %v1446 = vpop.permute.xlu0 %1445
      %1447 = vrot.lane.b32.xlu0 %v1143, 24
      %v1448 = vpop.permute.xlu0 %1447
      %1449 = vrot.lane.b32.xlu0 %v1144, 24
      %v1450 = vpop.permute.xlu0 %1449
      %1451 = vrot.lane.b32.xlu0 %v1145, 24
      %v1452 = vpop.permute.xlu0 %1451
      %1453 = vrot.lane.b32.xlu0 %v1146, 24
      %v1454 = vpop.permute.xlu0 %1453
      %1455 = vrot.lane.b32.xlu0 %v1147, 24
      %v1456 = vpop.permute.xlu0 %1455
      %1457 = vrot.lane.b32.xlu0 %v1148, 24
      %v1458 = vpop.permute.xlu0 %1457
      %1459 = vrot.lane.b32.xlu0 %v1149, 24
      %v1460 = vpop.permute.xlu0 %1459
      %1461 = vrot.lane.b32.xlu0 %v1150, 24
      %v1462 = vpop.permute.xlu0 %1461
      %1463 = vrot.lane.b32.xlu0 %v1151, 24
      %v1464 = vpop.permute.xlu0 %1463
      %1465 = vrot.lane.b32.xlu0 %v1152, 24
      %v1466 = vpop.permute.xlu0 %1465
      %1467 = vrot.lane.b32.xlu0 %v1153, 24
      %v1468 = vpop.permute.xlu0 %1467
      %1469 = vrot.lane.b32.xlu0 %v1154, 24
      %v1470 = vpop.permute.xlu0 %1469
      %1471 = vrot.lane.b32.xlu0 %v1155, 24
      %v1472 = vpop.permute.xlu0 %1471
      %1473 = vrot.lane.b32.xlu0 %v1156, 24
      %v1474 = vpop.permute.xlu0 %1473
      %1475 = vrot.lane.b32.xlu0 %v1157, 24
      %v1476 = vpop.permute.xlu0 %1475
      %1478 = vrot.lane.b32.xlu0 %v778, 32
      %v1479 = vpop.permute.xlu0 %1478
      %1480 = vrot.lane.b32.xlu0 %v779, 32
      %v1481 = vpop.permute.xlu0 %1480
      %1482 = vrot.lane.b32.xlu0 %v780, 32
      %v1483 = vpop.permute.xlu0 %1482
      %1484 = vrot.lane.b32.xlu0 %v781, 32
      %v1485 = vpop.permute.xlu0 %1484
      %1486 = vrot.lane.b32.xlu0 %v782, 32
      %v1487 = vpop.permute.xlu0 %1486
      %1488 = vrot.lane.b32.xlu0 %v783, 32
      %v1489 = vpop.permute.xlu0 %1488
      %1490 = vrot.lane.b32.xlu0 %v784, 32
      %v1491 = vpop.permute.xlu0 %1490
      %1492 = vrot.lane.b32.xlu0 %v785, 32
      %v1493 = vpop.permute.xlu0 %1492
      %1494 = vrot.lane.b32.xlu0 %v786, 32
      %v1495 = vpop.permute.xlu0 %1494
      %1496 = vrot.lane.b32.xlu0 %v787, 32
      %v1497 = vpop.permute.xlu0 %1496
      %1498 = vrot.lane.b32.xlu0 %v788, 32
      %v1499 = vpop.permute.xlu0 %1498
      %1500 = vrot.lane.b32.xlu0 %v789, 32
      %v1501 = vpop.permute.xlu0 %1500
      %1502 = vrot.lane.b32.xlu0 %v790, 32
      %v1503 = vpop.permute.xlu0 %1502
      %1504 = vrot.lane.b32.xlu0 %v791, 32
      %v1505 = vpop.permute.xlu0 %1504
      %1506 = vrot.lane.b32.xlu0 %v792, 32
      %v1507 = vpop.permute.xlu0 %1506
      %1508 = vrot.lane.b32.xlu0 %v1158, 32
      %v1509 = vpop.permute.xlu0 %1508
      %1526 = vrot.lane.b32.xlu0 %v1200, 40
      %v1527 = vpop.permute.xlu0 %1526
      %1528 = vrot.lane.b32.xlu0 %v1201, 40
      %v1529 = vpop.permute.xlu0 %1528
      %1530 = vrot.lane.b32.xlu0 %v1202, 40
      %v1531 = vpop.permute.xlu0 %1530
      %1532 = vrot.lane.b32.xlu0 %v1203, 40
      %v1533 = vpop.permute.xlu0 %1532
      %1534 = vrot.lane.b32.xlu0 %v1204, 40
      %v1535 = vpop.permute.xlu0 %1534
      %1536 = vrot.lane.b32.xlu0 %v1205, 40
      %v1537 = vpop.permute.xlu0 %1536
      %1538 = vrot.lane.b32.xlu0 %v1206, 40
      %v1539 = vpop.permute.xlu0 %1538
      %1540 = vrot.lane.b32.xlu0 %v1207, 40
      %v1541 = vpop.permute.xlu0 %1540
      %1542 = vrot.lane.b32.xlu0 %v1208, 40
      %v1543 = vpop.permute.xlu0 %1542
      %1544 = vrot.lane.b32.xlu0 %v1209, 40
      %v1545 = vpop.permute.xlu0 %1544
      %1546 = vrot.lane.b32.xlu0 %v1210, 40
      %v1547 = vpop.permute.xlu0 %1546
      %1548 = vrot.lane.b32.xlu0 %v1211, 40
      %v1549 = vpop.permute.xlu0 %1548
      %1550 = vrot.lane.b32.xlu0 %v1212, 40
      %v1551 = vpop.permute.xlu0 %1550
      %1552 = vrot.lane.b32.xlu0 %v1213, 40
      %v1553 = vpop.permute.xlu0 %1552
      %1554 = vrot.lane.b32.xlu0 %v1214, 40
      %v1555 = vpop.permute.xlu0 %1554
      %1556 = vrot.lane.b32.xlu0 %v1215, 40
      %v1557 = vpop.permute.xlu0 %1556
      %1574 = vrot.lane.b32.xlu0 %v1259, 48
      %v1575 = vpop.permute.xlu0 %1574
      %1576 = vrot.lane.b32.xlu0 %v1260, 48
      %v1577 = vpop.permute.xlu0 %1576
      %1578 = vrot.lane.b32.xlu0 %v1261, 48
      %v1579 = vpop.permute.xlu0 %1578
      %1580 = vrot.lane.b32.xlu0 %v1262, 48
      %v1581 = vpop.permute.xlu0 %1580
      %1582 = vrot.lane.b32.xlu0 %v1263, 48
      %v1583 = vpop.permute.xlu0 %1582
      %1584 = vrot.lane.b32.xlu0 %v1264, 48
      %v1585 = vpop.permute.xlu0 %1584
      %1586 = vrot.lane.b32.xlu0 %v1265, 48
      %v1587 = vpop.permute.xlu0 %1586
      %1588 = vrot.lane.b32.xlu0 %v1266, 48
      %v1589 = vpop.permute.xlu0 %1588
      %1590 = vrot.lane.b32.xlu0 %v1267, 48
      %v1591 = vpop.permute.xlu0 %1590
      %1592 = vrot.lane.b32.xlu0 %v1268, 48
      %v1593 = vpop.permute.xlu0 %1592
      %1594 = vrot.lane.b32.xlu0 %v1269, 48
      %v1595 = vpop.permute.xlu0 %1594
      %1596 = vrot.lane.b32.xlu0 %v1270, 48
      %v1597 = vpop.permute.xlu0 %1596
      %1598 = vrot.lane.b32.xlu0 %v1271, 48
      %v1599 = vpop.permute.xlu0 %1598
      %1600 = vrot.lane.b32.xlu0 %v1272, 48
      %v1601 = vpop.permute.xlu0 %1600
      %1602 = vrot.lane.b32.xlu0 %v1273, 48
      %v1603 = vpop.permute.xlu0 %1602
      %1604 = vrot.lane.b32.xlu0 %v1274, 48
      %v1605 = vpop.permute.xlu0 %1604
      %1607 = vrot.lane.b32.xlu0 %v779, 56
      %v1608 = vpop.permute.xlu0 %1607
      %1609 = vrot.lane.b32.xlu0 %v780, 56
      %v1610 = vpop.permute.xlu0 %1609
      %1611 = vrot.lane.b32.xlu0 %v781, 56
      %v1612 = vpop.permute.xlu0 %1611
      %1613 = vrot.lane.b32.xlu0 %v782, 56
      %v1614 = vpop.permute.xlu0 %1613
      %1615 = vrot.lane.b32.xlu0 %v783, 56
      %v1616 = vpop.permute.xlu0 %1615
      %1617 = vrot.lane.b32.xlu0 %v784, 56
      %v1618 = vpop.permute.xlu0 %1617
      %1619 = vrot.lane.b32.xlu0 %v785, 56
      %v1620 = vpop.permute.xlu0 %1619
      %1621 = vrot.lane.b32.xlu0 %v786, 56
      %v1622 = vpop.permute.xlu0 %1621
      %1623 = vrot.lane.b32.xlu0 %v787, 56
      %v1624 = vpop.permute.xlu0 %1623
      %1625 = vrot.lane.b32.xlu0 %v788, 56
      %v1626 = vpop.permute.xlu0 %1625
      %1627 = vrot.lane.b32.xlu0 %v789, 56
      %v1628 = vpop.permute.xlu0 %1627
      %1629 = vrot.lane.b32.xlu0 %v790, 56
      %v1630 = vpop.permute.xlu0 %1629
      %1631 = vrot.lane.b32.xlu0 %v791, 56
      %v1632 = vpop.permute.xlu0 %1631
      %1633 = vrot.lane.b32.xlu0 %v792, 56
      %v1634 = vpop.permute.xlu0 %1633
      %1635 = vrot.lane.b32.xlu0 %v1158, 56
      %v1636 = vpop.permute.xlu0 %1635
      %1637 = vrot.lane.b32.xlu0 %v1275, 56
      %v1638 = vpop.permute.xlu0 %1637
      %1655 = vrot.lane.b32.xlu0 %v1317, 64
      %v1656 = vpop.permute.xlu0 %1655
      %1657 = vrot.lane.b32.xlu0 %v1318, 64
      %v1658 = vpop.permute.xlu0 %1657
      %1659 = vrot.lane.b32.xlu0 %v1319, 64
      %v1660 = vpop.permute.xlu0 %1659
      %1661 = vrot.lane.b32.xlu0 %v1320, 64
      %v1662 = vpop.permute.xlu0 %1661
      %1663 = vrot.lane.b32.xlu0 %v1321, 64
      %v1664 = vpop.permute.xlu0 %1663
      %1665 = vrot.lane.b32.xlu0 %v1322, 64
      %v1666 = vpop.permute.xlu0 %1665
      %1667 = vrot.lane.b32.xlu0 %v1323, 64
      %v1668 = vpop.permute.xlu0 %1667
      %1669 = vrot.lane.b32.xlu0 %v1324, 64
      %v1670 = vpop.permute.xlu0 %1669
      %1671 = vrot.lane.b32.xlu0 %v1325, 64
      %v1672 = vpop.permute.xlu0 %1671
      %1673 = vrot.lane.b32.xlu0 %v1326, 64
      %v1674 = vpop.permute.xlu0 %1673
      %1675 = vrot.lane.b32.xlu0 %v1327, 64
      %v1676 = vpop.permute.xlu0 %1675
      %1677 = vrot.lane.b32.xlu0 %v1328, 64
      %v1678 = vpop.permute.xlu0 %1677
      %1679 = vrot.lane.b32.xlu0 %v1329, 64
      %v1680 = vpop.permute.xlu0 %1679
      %1681 = vrot.lane.b32.xlu0 %v1330, 64
      %v1682 = vpop.permute.xlu0 %1681
      %1683 = vrot.lane.b32.xlu0 %v1331, 64
      %v1684 = vpop.permute.xlu0 %1683
      %1685 = vrot.lane.b32.xlu0 %v1332, 64
      %v1686 = vpop.permute.xlu0 %1685
      %vm1687 = vcmask 64512
      %v1690 = vsel %vm1687, %v761, %v1350
      %v1693 = vsel %vm1687, %v762, %v1352
      %v1696 = vsel %vm1687, %v763, %v1354
      %v1699 = vsel %vm1687, %v764, %v1356
      %v1702 = vsel %vm1687, %v765, %v1358
      %v1705 = vsel %vm1687, %v766, %v1360
      %v1708 = vsel %vm1687, %v767, %v1362
      %v1711 = vsel %vm1687, %v768, %v1364
      %v1714 = vsel %vm1687, %v769, %v1366
      %v1717 = vsel %vm1687, %v770, %v1368
      %v1720 = vsel %vm1687, %v771, %v1370
      %v1723 = vsel %vm1687, %v772, %v1372
      %v1726 = vsel %vm1687, %v773, %v1374
      %v1729 = vsel %vm1687, %v774, %v1376
      %v1732 = vsel %vm1687, %v775, %v1378
      %v1735 = vsel %vm1687, %v776, %v1380
      %vm1736 = vcmask 130048
      %v1738 = vsel %vm1736, %v1690, %v1398
      %v1740 = vsel %vm1736, %v1693, %v1400
      %v1742 = vsel %vm1736, %v1696, %v1402
      %v1744 = vsel %vm1736, %v1699, %v1404
      %v1746 = vsel %vm1736, %v1702, %v1406
      %v1748 = vsel %vm1736, %v1705, %v1408
      %v1750 = vsel %vm1736, %v1708, %v1410
      %v1752 = vsel %vm1736, %v1711, %v1412
      %v1754 = vsel %vm1736, %v1714, %v1414
      %v1756 = vsel %vm1736, %v1717, %v1416
      %v1758 = vsel %vm1736, %v1720, %v1418
      %v1760 = vsel %vm1736, %v1723, %v1420
      %v1762 = vsel %vm1736, %v1726, %v1422
      %v1764 = vsel %vm1736, %v1729, %v1424
      %v1766 = vsel %vm1736, %v1732, %v1426
      %v1768 = vsel %vm1736, %v1735, %v1428
      %vm1769 = vcmask 195584
      %v1771 = vsel %vm1769, %v1738, %v1446
      %v1773 = vsel %vm1769, %v1740, %v1448
      %v1775 = vsel %vm1769, %v1742, %v1450
      %v1777 = vsel %vm1769, %v1744, %v1452
      %v1779 = vsel %vm1769, %v1746, %v1454
      %v1781 = vsel %vm1769, %v1748, %v1456
      %v1783 = vsel %vm1769, %v1750, %v1458
      %v1785 = vsel %vm1769, %v1752, %v1460
      %v1787 = vsel %vm1769, %v1754, %v1462
      %v1789 = vsel %vm1769, %v1756, %v1464
      %v1791 = vsel %vm1769, %v1758, %v1466
      %v1793 = vsel %vm1769, %v1760, %v1468
      %v1795 = vsel %vm1769, %v1762, %v1470
      %v1797 = vsel %vm1769, %v1764, %v1472
      %v1799 = vsel %vm1769, %v1766, %v1474
      %v1801 = vsel %vm1769, %v1768, %v1476
      %vm1802 = vcmask 261120
      %v1804 = vsel %vm1802, %v1771, %v1479
      %v1806 = vsel %vm1802, %v1773, %v1481
      %v1808 = vsel %vm1802, %v1775, %v1483
      %v1810 = vsel %vm1802, %v1777, %v1485
      %v1812 = vsel %vm1802, %v1779, %v1487
      %v1814 = vsel %vm1802, %v1781, %v1489
      %v1816 = vsel %vm1802, %v1783, %v1491
      %v1818 = vsel %vm1802, %v1785, %v1493
      %v1820 = vsel %vm1802, %v1787, %v1495
      %v1822 = vsel %vm1802, %v1789, %v1497
      %v1824 = vsel %vm1802, %v1791, %v1499
      %v1826 = vsel %vm1802, %v1793, %v1501
      %v1828 = vsel %vm1802, %v1795, %v1503
      %v1830 = vsel %vm1802, %v1797, %v1505
      %v1832 = vsel %vm1802, %v1799, %v1507
      %v1834 = vsel %vm1802, %v1801, %v1509
      %vm1835 = vcmask 326656
      %v1837 = vsel %vm1835, %v1804, %v1527
      %v1839 = vsel %vm1835, %v1806, %v1529
      %v1841 = vsel %vm1835, %v1808, %v1531
      %v1843 = vsel %vm1835, %v1810, %v1533
      %v1845 = vsel %vm1835, %v1812, %v1535
      %v1847 = vsel %vm1835, %v1814, %v1537
      %v1849 = vsel %vm1835, %v1816, %v1539
      %v1851 = vsel %vm1835, %v1818, %v1541
      %v1853 = vsel %vm1835, %v1820, %v1543
      %v1855 = vsel %vm1835, %v1822, %v1545
      %v1857 = vsel %vm1835, %v1824, %v1547
      %v1859 = vsel %vm1835, %v1826, %v1549
      %v1861 = vsel %vm1835, %v1828, %v1551
      %v1863 = vsel %vm1835, %v1830, %v1553
      %v1865 = vsel %vm1835, %v1832, %v1555
      %v1867 = vsel %vm1835, %v1834, %v1557
      %vm1868 = vcmask 392192
      %v1870 = vsel %vm1868, %v1837, %v1575
      %v1872 = vsel %vm1868, %v1839, %v1577
      %v1874 = vsel %vm1868, %v1841, %v1579
      %v1876 = vsel %vm1868, %v1843, %v1581
      %v1878 = vsel %vm1868, %v1845, %v1583
      %v1880 = vsel %vm1868, %v1847, %v1585
      %v1882 = vsel %vm1868, %v1849, %v1587
      %v1884 = vsel %vm1868, %v1851, %v1589
      %v1886 = vsel %vm1868, %v1853, %v1591
      %v1888 = vsel %vm1868, %v1855, %v1593
      %v1890 = vsel %vm1868, %v1857, %v1595
      %v1892 = vsel %vm1868, %v1859, %v1597
      %v1894 = vsel %vm1868, %v1861, %v1599
      %v1896 = vsel %vm1868, %v1863, %v1601
      %v1898 = vsel %vm1868, %v1865, %v1603
      %v1900 = vsel %vm1868, %v1867, %v1605
      %vm1901 = vcmask 457728
      %v1903 = vsel %vm1901, %v1870, %v1608
      %v1905 = vsel %vm1901, %v1872, %v1610
      %v1907 = vsel %vm1901, %v1874, %v1612
      %v1909 = vsel %vm1901, %v1876, %v1614
      %v1911 = vsel %vm1901, %v1878, %v1616
      %v1913 = vsel %vm1901, %v1880, %v1618
      %v1915 = vsel %vm1901, %v1882, %v1620
      %v1917 = vsel %vm1901, %v1884, %v1622
      %v1919 = vsel %vm1901, %v1886, %v1624
      %v1921 = vsel %vm1901, %v1888, %v1626
      %v1923 = vsel %vm1901, %v1890, %v1628
      %v1925 = vsel %vm1901, %v1892, %v1630
      %v1927 = vsel %vm1901, %v1894, %v1632
      %v1929 = vsel %vm1901, %v1896, %v1634
      %v1931 = vsel %vm1901, %v1898, %v1636
      %v1933 = vsel %vm1901, %v1900, %v1638
      %vm1934 = vcmask 523264
      %v1936 = vsel %vm1934, %v1903, %v1656
      %v1938 = vsel %vm1934, %v1905, %v1658
      %v1940 = vsel %vm1934, %v1907, %v1660
      %v1942 = vsel %vm1934, %v1909, %v1662
      %v1944 = vsel %vm1934, %v1911, %v1664
      %v1946 = vsel %vm1934, %v1913, %v1666
      %v1948 = vsel %vm1934, %v1915, %v1668
      %v1950 = vsel %vm1934, %v1917, %v1670
      %v1952 = vsel %vm1934, %v1919, %v1672
      %v1954 = vsel %vm1934, %v1921, %v1674
      %v1956 = vsel %vm1934, %v1923, %v1676
      %v1958 = vsel %vm1934, %v1925, %v1678
      %v1960 = vsel %vm1934, %v1927, %v1680
      %v1962 = vsel %vm1934, %v1929, %v1682
      %v1964 = vsel %vm1934, %v1931, %v1684
      %v1966 = vsel %vm1934, %v1933, %v1686
      %v1967 = vld [vmem:[%s2] sm:$0xf]
      %v1968 = vld [vmem:[%s2 + $0x4] sm:$0xf]
      %v1969 = vld [vmem:[%s2 + $0x8] sm:$0xf]
      %v1970 = vld [vmem:[%s2 + $0xc] sm:$0xf]
      %v1971 = vld [vmem:[%s2 + $0x10] sm:$0xf]
      %v1972 = vld [vmem:[%s2 + $0x14] sm:$0xf]
      %v1973 = vld [vmem:[%s2 + $0x18] sm:$0xf]
      %v1974 = vld [vmem:[%s2 + $0x1c] sm:$0xf]
      %v1975 = vld [vmem:[%s2 + $0x20] sm:$0xf]
      %v1985 = vunpack.c.l.b16 %v1967
      %v1986 = vunpack.c.l.b16 %v1968
      %v1987 = vunpack.c.l.b16 %v1969
      %v1988 = vunpack.c.l.b16 %v1970
      %v1989 = vunpack.c.l.b16 %v1971
      %v1990 = vunpack.c.l.b16 %v1972
      %v1991 = vunpack.c.l.b16 %v1973
      %v1992 = vunpack.c.l.b16 %v1974
      %v1993 = vunpack.c.l.b16 %v1975
      %v1994 = vpack.c.b16 %v1986, %v1985
      %v1995 = vpack.c.b16 %v1988, %v1987
      %v1996 = vpack.c.b16 %v1990, %v1989
      %v1997 = vpack.c.b16 %v1992, %v1991
      %v1998 = vpack.c.b16 %v1993, %v1993
      %vm2003 = vcmask 588800
      %v2004 = vsel %vm2003, %v1936, 0
      %v2006 = vsel %vm2003, %v1938, 0
      %v2008 = vsel %vm2003, %v1940, 0
      %v2010 = vsel %vm2003, %v1942, 0
      %v2012 = vsel %vm2003, %v1944, 0
      %v2014 = vsel %vm2003, %v1946, 0
      %v2016 = vsel %vm2003, %v1948, 0
      %v2018 = vsel %vm2003, %v1950, 0
      %v2020 = vsel %vm2003, %v1952, 0
      %v2022 = vsel %vm2003, %v1954, 0
      %v2024 = vsel %vm2003, %v1956, 0
      %v2026 = vsel %vm2003, %v1958, 0
      %v2028 = vsel %vm2003, %v1960, 0
      %v2030 = vsel %vm2003, %v1962, 0
      %v2032 = vsel %vm2003, %v1964, 0
      %v2034 = vsel %vm2003, %v1966, 0
      %vm2036 = vcmask 1043456
      %v2038 = vsel %vm2036, %v1998, 0
      %2040 = vmatprep.subr.bf16.mxu0 0
      %2041 = vmatpush1.bf16.msra.mxu0 0
      %2042 = vmatprep.subr.bf16.mxu0 0
      %2043 = vmatpush1.bf16.msra.mxu0 0
      %2044 = vmatprep.subr.bf16.mxu0 0
      %2045 = vmatpush1.bf16.msra.mxu0 0
      %2046 = vmatprep.subr.bf16.mxu0 0
      %2047 = vmatpush1.bf16.msra.mxu0 %v2038
      %2048 = vmatprep.subr.bf16.mxu0 0
      %2049 = vmatpush1.bf16.msra.mxu0 %v1997
      %2050 = vmatprep.subr.bf16.mxu0 0
      %2051 = vmatpush1.bf16.msra.mxu0 %v1996
      %2052 = vmatprep.subr.bf16.mxu0 0
      %2053 = vmatpush1.bf16.msra.mxu0 %v1995
      %2054 = vmatprep.subr.bf16.mxu0 0
      %2055 = vmatpush1.bf16.msra.mxu0 %v1994
      %2056 = vmatprep.subr.bf16.mxu0 0
      %2057 = vmatpush2.bf16.msra.mxu0 0
      %2058 = vmatprep.subr.bf16.mxu0 0
      %2059 = vmatpush2.bf16.msra.mxu0 0
      %2060 = vmatprep.subr.bf16.mxu0 0
      %2061 = vmatpush2.bf16.msra.mxu0 0
      %2062 = vmatprep.subr.bf16.mxu0 0
      %2063 = vmatpush2.bf16.msra.mxu0 0
      %2064 = vmatprep.subr.bf16.mxu0 0
      %2065 = vmatpush2.bf16.msra.mxu0 0
      %2066 = vmatprep.subr.bf16.mxu0 0
      %2067 = vmatpush2.bf16.msra.mxu0 0
      %2068 = vmatprep.subr.bf16.mxu0 0
      %2069 = vmatpush2.bf16.msra.mxu0 0
      %2070 = vmatprep.subr.bf16.mxu0 0
      %2071 = vmatpush2.bf16.msra.mxu0 0
      %2072 = vmatprep.mubr.bf16.mxu0 0
      %2073 = vmatmul.mubr.bf16.gmra.mxu0 %v2004
      %v2074 = vpop.f32.mrf.mxu0
      %v2075 = vadd.f32 0.0, %v2074
      %v2076 = vpop.f32.mrf.mxu0
      %v2077 = vpop.f32.mrf.mxu0
      %v2078 = vadd.f32 0.0, %v2077
      %v2079 = vpop.f32.mrf.mxu0
      %2080 = vmatprep.mubr.bf16.mxu0 0
      %2081 = vmatmul.mubr.bf16.gmra.mxu0 %v2006
      %v2082 = vpop.f32.mrf.mxu0
      %v2083 = vadd.f32 0.0, %v2082
      %v2084 = vpop.f32.mrf.mxu0
      %v2085 = vpop.f32.mrf.mxu0
      %v2086 = vadd.f32 0.0, %v2085
      %v2087 = vpop.f32.mrf.mxu0
      %2088 = vmatprep.mubr.bf16.mxu0 0
      %2089 = vmatmul.mubr.bf16.gmra.mxu0 %v2008
      %v2090 = vpop.f32.mrf.mxu0
      %v2091 = vadd.f32 0.0, %v2090
      %v2092 = vpop.f32.mrf.mxu0
      %v2093 = vpop.f32.mrf.mxu0
      %v2094 = vadd.f32 0.0, %v2093
      %v2095 = vpop.f32.mrf.mxu0
      %2096 = vmatprep.mubr.bf16.mxu0 0
      %2097 = vmatmul.mubr.bf16.gmra.mxu0 %v2010
      %v2098 = vpop.f32.mrf.mxu0
      %v2099 = vadd.f32 0.0, %v2098
      %v2100 = vpop.f32.mrf.mxu0
      %v2101 = vpop.f32.mrf.mxu0
      %v2102 = vadd.f32 0.0, %v2101
      %v2103 = vpop.f32.mrf.mxu0
      %2104 = vmatprep.mubr.bf16.mxu0 0
      %2105 = vmatmul.mubr.bf16.gmra.mxu0 %v2012
      %v2106 = vpop.f32.mrf.mxu0
      %v2107 = vadd.f32 0.0, %v2106
      %v2108 = vpop.f32.mrf.mxu0
      %v2109 = vpop.f32.mrf.mxu0
      %v2110 = vadd.f32 0.0, %v2109
      %v2111 = vpop.f32.mrf.mxu0
      %2112 = vmatprep.mubr.bf16.mxu0 0
      %2113 = vmatmul.mubr.bf16.gmra.mxu0 %v2014
      %v2114 = vpop.f32.mrf.mxu0
      %v2115 = vadd.f32 0.0, %v2114
      %v2116 = vpop.f32.mrf.mxu0
      %v2117 = vpop.f32.mrf.mxu0
      %v2118 = vadd.f32 0.0, %v2117
      %v2119 = vpop.f32.mrf.mxu0
      %2120 = vmatprep.mubr.bf16.mxu0 0
      %2121 = vmatmul.mubr.bf16.gmra.mxu0 %v2016
      %v2122 = vpop.f32.mrf.mxu0
      %v2123 = vadd.f32 0.0, %v2122
      %v2124 = vpop.f32.mrf.mxu0
      %v2125 = vpop.f32.mrf.mxu0
      %v2126 = vadd.f32 0.0, %v2125
      %v2127 = vpop.f32.mrf.mxu0
      %2128 = vmatprep.mubr.bf16.mxu0 0
      %2129 = vmatmul.mubr.bf16.gmra.mxu0 %v2018
      %v2130 = vpop.f32.mrf.mxu0
      %v2131 = vadd.f32 0.0, %v2130
      %v2132 = vpop.f32.mrf.mxu0
      %v2133 = vpop.f32.mrf.mxu0
      %v2134 = vadd.f32 0.0, %v2133
      %v2135 = vpop.f32.mrf.mxu0
      %2136 = vmatprep.mubr.bf16.mxu0 0
      %2137 = vmatmul.mubr.bf16.gmra.mxu0 %v2020
      %v2138 = vpop.f32.mrf.mxu0
      %v2139 = vadd.f32 0.0, %v2138
      %v2140 = vpop.f32.mrf.mxu0
      %v2141 = vpop.f32.mrf.mxu0
      %v2142 = vadd.f32 0.0, %v2141
      %v2143 = vpop.f32.mrf.mxu0
      %2144 = vmatprep.mubr.bf16.mxu0 0
      %2145 = vmatmul.mubr.bf16.gmra.mxu0 %v2022
      %v2146 = vpop.f32.mrf.mxu0
      %v2147 = vadd.f32 0.0, %v2146
      %v2148 = vpop.f32.mrf.mxu0
      %v2149 = vpop.f32.mrf.mxu0
      %v2150 = vadd.f32 0.0, %v2149
      %v2151 = vpop.f32.mrf.mxu0
      %2152 = vmatprep.mubr.bf16.mxu0 0
      %2153 = vmatmul.mubr.bf16.gmra.mxu0 %v2024
      %v2154 = vpop.f32.mrf.mxu0
      %v2155 = vadd.f32 0.0, %v2154
      %v2156 = vpop.f32.mrf.mxu0
      %v2157 = vpop.f32.mrf.mxu0
      %v2158 = vadd.f32 0.0, %v2157
      %v2159 = vpop.f32.mrf.mxu0
      %2160 = vmatprep.mubr.bf16.mxu0 0
      %2161 = vmatmul.mubr.bf16.gmra.mxu0 %v2026
      %v2162 = vpop.f32.mrf.mxu0
      %v2163 = vadd.f32 0.0, %v2162
      %v2164 = vpop.f32.mrf.mxu0
      %v2165 = vpop.f32.mrf.mxu0
      %v2166 = vadd.f32 0.0, %v2165
      %v2167 = vpop.f32.mrf.mxu0
      %2168 = vmatprep.mubr.bf16.mxu0 0
      %2169 = vmatmul.mubr.bf16.gmra.mxu0 %v2028
      %v2170 = vpop.f32.mrf.mxu0
      %v2171 = vadd.f32 0.0, %v2170
      %v2172 = vpop.f32.mrf.mxu0
      %v2173 = vpop.f32.mrf.mxu0
      %v2174 = vadd.f32 0.0, %v2173
      %v2175 = vpop.f32.mrf.mxu0
      %2176 = vmatprep.mubr.bf16.mxu0 0
      %2177 = vmatmul.mubr.bf16.gmra.mxu0 %v2030
      %v2178 = vpop.f32.mrf.mxu0
      %v2179 = vadd.f32 0.0, %v2178
      %v2180 = vpop.f32.mrf.mxu0
      %v2181 = vpop.f32.mrf.mxu0
      %v2182 = vadd.f32 0.0, %v2181
      %v2183 = vpop.f32.mrf.mxu0
      %2184 = vmatprep.mubr.bf16.mxu0 0
      %2185 = vmatmul.mubr.bf16.gmra.mxu0 %v2032
      %v2186 = vpop.f32.mrf.mxu0
      %v2187 = vadd.f32 0.0, %v2186
      %v2188 = vpop.f32.mrf.mxu0
      %v2189 = vpop.f32.mrf.mxu0
      %v2190 = vadd.f32 0.0, %v2189
      %v2191 = vpop.f32.mrf.mxu0
      %2192 = vmatprep.mubr.bf16.mxu0 0
      %2193 = vmatmul.mubr.bf16.gmra.mxu0 %v2034
      %v2194 = vpop.f32.mrf.mxu0
      %v2195 = vadd.f32 0.0, %v2194
      %v2196 = vpop.f32.mrf.mxu0
      %v2197 = vpop.f32.mrf.mxu0
      %v2198 = vadd.f32 0.0, %v2197
      %v2199 = vpop.f32.mrf.mxu0
      %2200 = vdwg.mxu0
      %v2201 = vld [vmem:[%s4] sm:$0x1]
      %v2203 = vlaneseq
      %v2204 = vshrl.u32 %v2203, 7
      %v2205 = vsub.s32 0, %v2204
      %v2206 = vrot.slane %v2201, %v2205
      %v2208 = vmul.f32 %v2075, %v2206
      %v2209 = vmul.f32 %v2078, %v2206
      %v2210 = vmul.f32 %v2083, %v2206
      %v2211 = vmul.f32 %v2086, %v2206
      %v2212 = vmul.f32 %v2091, %v2206
      %v2213 = vmul.f32 %v2094, %v2206
      %v2214 = vmul.f32 %v2099, %v2206
      %v2215 = vmul.f32 %v2102, %v2206
      %v2216 = vmul.f32 %v2107, %v2206
      %v2217 = vmul.f32 %v2110, %v2206
      %v2218 = vmul.f32 %v2115, %v2206
      %v2219 = vmul.f32 %v2118, %v2206
      %v2220 = vmul.f32 %v2123, %v2206
      %v2221 = vmul.f32 %v2126, %v2206
      %v2222 = vmul.f32 %v2131, %v2206
      %v2223 = vmul.f32 %v2134, %v2206
      %v2224 = vmul.f32 %v2139, %v2206
      %v2225 = vmul.f32 %v2142, %v2206
      %v2226 = vmul.f32 %v2147, %v2206
      %v2227 = vmul.f32 %v2150, %v2206
      %v2228 = vmul.f32 %v2155, %v2206
      %v2229 = vmul.f32 %v2158, %v2206
      %v2230 = vmul.f32 %v2163, %v2206
      %v2231 = vmul.f32 %v2166, %v2206
      %v2232 = vmul.f32 %v2171, %v2206
      %v2233 = vmul.f32 %v2174, %v2206
      %v2234 = vmul.f32 %v2179, %v2206
      %v2235 = vmul.f32 %v2182, %v2206
      %v2236 = vmul.f32 %v2187, %v2206
      %v2237 = vmul.f32 %v2190, %v2206
      %v2238 = vmul.f32 %v2195, %v2206
      %v2239 = vmul.f32 %v2198, %v2206
      %v2240 = vld [vmem:[%s5] sm:$0x1]
      %v2242 = vlaneseq
      %v2243 = vshrl.u32 %v2242, 7
      %v2244 = vsub.s32 0, %v2243
      %v2245 = vrot.slane %v2240, %v2244
      %v2247 = vadd.f32 %v2208, %v2245
      %v2248 = vadd.f32 %v2209, %v2245
      %v2249 = vadd.f32 %v2210, %v2245
      %v2250 = vadd.f32 %v2211, %v2245
      %v2251 = vadd.f32 %v2212, %v2245
      %v2252 = vadd.f32 %v2213, %v2245
      %v2253 = vadd.f32 %v2214, %v2245
      %v2254 = vadd.f32 %v2215, %v2245
      %v2255 = vadd.f32 %v2216, %v2245
      %v2256 = vadd.f32 %v2217, %v2245
      %v2257 = vadd.f32 %v2218, %v2245
      %v2258 = vadd.f32 %v2219, %v2245
      %v2259 = vadd.f32 %v2220, %v2245
      %v2260 = vadd.f32 %v2221, %v2245
      %v2261 = vadd.f32 %v2222, %v2245
      %v2262 = vadd.f32 %v2223, %v2245
      %v2263 = vadd.f32 %v2224, %v2245
      %v2264 = vadd.f32 %v2225, %v2245
      %v2265 = vadd.f32 %v2226, %v2245
      %v2266 = vadd.f32 %v2227, %v2245
      %v2267 = vadd.f32 %v2228, %v2245
      %v2268 = vadd.f32 %v2229, %v2245
      %v2269 = vadd.f32 %v2230, %v2245
      %v2270 = vadd.f32 %v2231, %v2245
      %v2271 = vadd.f32 %v2232, %v2245
      %v2272 = vadd.f32 %v2233, %v2245
      %v2273 = vadd.f32 %v2234, %v2245
      %v2274 = vadd.f32 %v2235, %v2245
      %v2275 = vadd.f32 %v2236, %v2245
      %v2276 = vadd.f32 %v2237, %v2245
      %v2277 = vadd.f32 %v2238, %v2245
      %v2278 = vadd.f32 %v2239, %v2245
      %v2279 = vmax.f32 %v2247, 0.0
      %v2280 = vmax.f32 %v2248, 0.0
      %v2281 = vmax.f32 %v2249, 0.0
      %v2282 = vmax.f32 %v2250, 0.0
      %v2283 = vmax.f32 %v2251, 0.0
      %v2284 = vmax.f32 %v2252, 0.0
      %v2285 = vmax.f32 %v2253, 0.0
      %v2286 = vmax.f32 %v2254, 0.0
      %v2287 = vmax.f32 %v2255, 0.0
      %v2288 = vmax.f32 %v2256, 0.0
      %v2289 = vmax.f32 %v2257, 0.0
      %v2290 = vmax.f32 %v2258, 0.0
      %v2291 = vmax.f32 %v2259, 0.0
      %v2292 = vmax.f32 %v2260, 0.0
      %v2293 = vmax.f32 %v2261, 0.0
      %v2294 = vmax.f32 %v2262, 0.0
      %v2295 = vmax.f32 %v2263, 0.0
      %v2296 = vmax.f32 %v2264, 0.0
      %v2297 = vmax.f32 %v2265, 0.0
      %v2298 = vmax.f32 %v2266, 0.0
      %v2299 = vmax.f32 %v2267, 0.0
      %v2300 = vmax.f32 %v2268, 0.0
      %v2301 = vmax.f32 %v2269, 0.0
      %v2302 = vmax.f32 %v2270, 0.0
      %v2303 = vmax.f32 %v2271, 0.0
      %v2304 = vmax.f32 %v2272, 0.0
      %v2305 = vmax.f32 %v2273, 0.0
      %v2306 = vmax.f32 %v2274, 0.0
      %v2307 = vmax.f32 %v2275, 0.0
      %v2308 = vmax.f32 %v2276, 0.0
      %v2309 = vmax.f32 %v2277, 0.0
      %v2310 = vmax.f32 %v2278, 0.0
      %v2312 = vrot.slane %v2308, 7
      %v2344 = vrot.slane 0.0, 7
      %v2345 = vsel %vm473, %v2344, %v2344
      %v2346 = vrot.slane %v2279, 7
      %v2347 = vsel %vm473, %v2344, %v2346
      %v2348 = vrot.slane %v2280, 7
      %v2349 = vsel %vm473, %v2346, %v2348
      %v2350 = vrot.slane %v2281, 7
      %v2351 = vsel %vm473, %v2348, %v2350
      %v2352 = vrot.slane %v2282, 7
      %v2353 = vsel %vm473, %v2350, %v2352
      %v2354 = vrot.slane %v2283, 7
      %v2355 = vsel %vm473, %v2352, %v2354
      %v2356 = vrot.slane %v2284, 7
      %v2357 = vsel %vm473, %v2354, %v2356
      %v2358 = vrot.slane %v2285, 7
      %v2359 = vsel %vm473, %v2356, %v2358
      %v2360 = vrot.slane %v2286, 7
      %v2361 = vsel %vm473, %v2358, %v2360
      %v2362 = vrot.slane %v2287, 7
      %v2363 = vsel %vm473, %v2360, %v2362
      %v2364 = vrot.slane %v2288, 7
      %v2365 = vsel %vm473, %v2362, %v2364
      %v2366 = vrot.slane %v2289, 7
      %v2367 = vsel %vm473, %v2364, %v2366
      %v2368 = vrot.slane %v2290, 7
      %v2369 = vsel %vm473, %v2366, %v2368
      %v2370 = vrot.slane %v2291, 7
      %v2371 = vsel %vm473, %v2368, %v2370
      %v2372 = vrot.slane %v2292, 7
      %v2373 = vsel %vm473, %v2370, %v2372
      %v2374 = vrot.slane %v2293, 7
      %v2375 = vsel %vm473, %v2372, %v2374
      %v2376 = vrot.slane %v2294, 7
      %v2377 = vsel %vm473, %v2374, %v2376
      %v2378 = vrot.slane %v2295, 7
      %v2379 = vsel %vm473, %v2376, %v2378
      %v2380 = vrot.slane %v2296, 7
      %v2381 = vsel %vm473, %v2378, %v2380
      %v2382 = vrot.slane %v2297, 7
      %v2383 = vsel %vm473, %v2380, %v2382
      %v2384 = vrot.slane %v2298, 7
      %v2385 = vsel %vm473, %v2382, %v2384
      %v2386 = vrot.slane %v2299, 7
      %v2387 = vsel %vm473, %v2384, %v2386
      %v2388 = vrot.slane %v2300, 7
      %v2389 = vsel %vm473, %v2386, %v2388
      %v2390 = vrot.slane %v2301, 7
      %v2391 = vsel %vm473, %v2388, %v2390
      %v2392 = vrot.slane %v2302, 7
      %v2393 = vsel %vm473, %v2390, %v2392
      %v2394 = vrot.slane %v2303, 7
      %v2395 = vsel %vm473, %v2392, %v2394
      %v2396 = vrot.slane %v2304, 7
      %v2397 = vsel %vm473, %v2394, %v2396
      %v2398 = vrot.slane %v2305, 7
      %v2399 = vsel %vm473, %v2396, %v2398
      %v2400 = vrot.slane %v2306, 7
      %v2401 = vsel %vm473, %v2398, %v2400
      %v2402 = vrot.slane %v2307, 7
      %v2403 = vsel %vm473, %v2400, %v2402
      %v2404 = vsel %vm473, %v2402, %v2312
      %v2437 = vsel %vm473, %v2312, %v2344
      %v2438 = vsel %vm697, %v2437, 0.0
      %v2439 = vsel %vm698, %v2345, 0.0
      %v2440 = vsel %vm699, %v2347, 0.0
      %v2441 = vsel %vm700, %v2349, 0.0
      %v2442 = vsel %vm701, %v2351, 0.0
      %v2443 = vsel %vm702, %v2353, 0.0
      %v2444 = vsel %vm703, %v2355, 0.0
      %v2445 = vsel %vm704, %v2357, 0.0
      %v2446 = vsel %vm705, %v2359, 0.0
      %v2447 = vsel %vm706, %v2361, 0.0
      %v2448 = vsel %vm707, %v2363, 0.0
      %v2449 = vsel %vm708, %v2365, 0.0
      %v2450 = vsel %vm709, %v2367, 0.0
      %v2451 = vsel %vm710, %v2369, 0.0
      %v2452 = vsel %vm711, %v2371, 0.0
      %v2453 = vsel %vm712, %v2373, 0.0
      %v2454 = vsel %vm713, %v2375, 0.0
      %v2455 = vsel %vm714, %v2377, 0.0
      %v2456 = vsel %vm715, %v2379, 0.0
      %v2457 = vsel %vm716, %v2381, 0.0
      %v2458 = vsel %vm717, %v2383, 0.0
      %v2459 = vsel %vm718, %v2385, 0.0
      %v2460 = vsel %vm719, %v2387, 0.0
      %v2461 = vsel %vm720, %v2389, 0.0
      %v2462 = vsel %vm721, %v2391, 0.0
      %v2463 = vsel %vm722, %v2393, 0.0
      %v2464 = vsel %vm723, %v2395, 0.0
      %v2465 = vsel %vm724, %v2397, 0.0
      %v2466 = vsel %vm725, %v2399, 0.0
      %v2467 = vsel %vm726, %v2401, 0.0
      %v2468 = vsel %vm727, %v2403, 0.0
      %v2469 = vsel %vm728, %v2404, 0.0
      %v2470 = vpack.c.bf16 %v2439, %v2438
      %v2471 = vpack.c.bf16 %v2441, %v2440
      %v2472 = vpack.c.bf16 %v2443, %v2442
      %v2473 = vpack.c.bf16 %v2445, %v2444
      %v2474 = vpack.c.bf16 %v2447, %v2446
      %v2475 = vpack.c.bf16 %v2449, %v2448
      %v2476 = vpack.c.bf16 %v2451, %v2450
      %v2477 = vpack.c.bf16 %v2453, %v2452
      %v2478 = vpack.c.bf16 %v2455, %v2454
      %v2479 = vpack.c.bf16 %v2457, %v2456
      %v2480 = vpack.c.bf16 %v2459, %v2458
      %v2481 = vpack.c.bf16 %v2461, %v2460
      %v2482 = vpack.c.bf16 %v2463, %v2462
      %v2483 = vpack.c.bf16 %v2465, %v2464
      %v2484 = vpack.c.bf16 %v2467, %v2466
      %v2485 = vpack.c.bf16 %v2469, %v2468
      %v2486 = vpack.c.bf16 0.0, 0.0
      %v2487 = vpack.c.bf16 %v2280, %v2279
      %v2488 = vpack.c.bf16 %v2282, %v2281
      %v2489 = vpack.c.bf16 %v2284, %v2283
      %v2490 = vpack.c.bf16 %v2286, %v2285
      %v2491 = vpack.c.bf16 %v2288, %v2287
      %v2492 = vpack.c.bf16 %v2290, %v2289
      %v2493 = vpack.c.bf16 %v2292, %v2291
      %v2494 = vpack.c.bf16 %v2294, %v2293
      %v2495 = vpack.c.bf16 %v2296, %v2295
      %v2496 = vpack.c.bf16 %v2298, %v2297
      %v2497 = vpack.c.bf16 %v2300, %v2299
      %v2498 = vpack.c.bf16 %v2302, %v2301
      %v2499 = vpack.c.bf16 %v2304, %v2303
      %v2500 = vpack.c.bf16 %v2306, %v2305
      %v2501 = vpack.c.bf16 %v2308, %v2307
      %v2502 = vrot.slane 0.0, 1
      %v2503 = vsel %vm793, %v2502, %v2502
      %v2504 = vrot.slane %v2279, 1
      %v2505 = vsel %vm793, %v2502, %v2504
      %v2506 = vrot.slane %v2280, 1
      %v2507 = vsel %vm793, %v2504, %v2506
      %v2508 = vrot.slane %v2281, 1
      %v2509 = vsel %vm793, %v2506, %v2508
      %v2510 = vrot.slane %v2282, 1
      %v2511 = vsel %vm793, %v2508, %v2510
      %v2512 = vrot.slane %v2283, 1
      %v2513 = vsel %vm793, %v2510, %v2512
      %v2514 = vrot.slane %v2284, 1
      %v2515 = vsel %vm793, %v2512, %v2514
      %v2516 = vrot.slane %v2285, 1
      %v2517 = vsel %vm793, %v2514, %v2516
      %v2518 = vrot.slane %v2286, 1
      %v2519 = vsel %vm793, %v2516, %v2518
      %v2520 = vrot.slane %v2287, 1
      %v2521 = vsel %vm793, %v2518, %v2520
      %v2522 = vrot.slane %v2288, 1
      %v2523 = vsel %vm793, %v2520, %v2522
      %v2524 = vrot.slane %v2289, 1
      %v2525 = vsel %vm793, %v2522, %v2524
      %v2526 = vrot.slane %v2290, 1
      %v2527 = vsel %vm793, %v2524, %v2526
      %v2528 = vrot.slane %v2291, 1
      %v2529 = vsel %vm793, %v2526, %v2528
      %v2530 = vrot.slane %v2292, 1
      %v2531 = vsel %vm793, %v2528, %v2530
      %v2532 = vrot.slane %v2293, 1
      %v2533 = vsel %vm793, %v2530, %v2532
      %v2534 = vrot.slane %v2294, 1
      %v2535 = vsel %vm793, %v2532, %v2534
      %v2536 = vrot.slane %v2295, 1
      %v2537 = vsel %vm793, %v2534, %v2536
      %v2538 = vrot.slane %v2296, 1
      %v2539 = vsel %vm793, %v2536, %v2538
      %v2540 = vrot.slane %v2297, 1
      %v2541 = vsel %vm793, %v2538, %v2540
      %v2542 = vrot.slane %v2298, 1
      %v2543 = vsel %vm793, %v2540, %v2542
      %v2544 = vrot.slane %v2299, 1
      %v2545 = vsel %vm793, %v2542, %v2544
      %v2546 = vrot.slane %v2300, 1
      %v2547 = vsel %vm793, %v2544, %v2546
      %v2548 = vrot.slane %v2301, 1
      %v2549 = vsel %vm793, %v2546, %v2548
      %v2550 = vrot.slane %v2302, 1
      %v2551 = vsel %vm793, %v2548, %v2550
      %v2552 = vrot.slane %v2303, 1
      %v2553 = vsel %vm793, %v2550, %v2552
      %v2554 = vrot.slane %v2304, 1
      %v2555 = vsel %vm793, %v2552, %v2554
      %v2556 = vrot.slane %v2305, 1
      %v2557 = vsel %vm793, %v2554, %v2556
      %v2558 = vrot.slane %v2306, 1
      %v2559 = vsel %vm793, %v2556, %v2558
      %v2560 = vrot.slane %v2307, 1
      %v2561 = vsel %vm793, %v2558, %v2560
      %v2562 = vrot.slane %v2308, 1
      %v2563 = vsel %vm793, %v2560, %v2562
      %v2597 = vsel %vm793, %v2562, %v2502
      %v2598 = vsel %vm1019, %v2503, 0.0
      %v2599 = vsel %vm1020, %v2505, 0.0
      %v2600 = vsel %vm1021, %v2507, 0.0
      %v2601 = vsel %vm1022, %v2509, 0.0
      %v2602 = vsel %vm1023, %v2511, 0.0
      %v2603 = vsel %vm1024, %v2513, 0.0
      %v2604 = vsel %vm1025, %v2515, 0.0
      %v2605 = vsel %vm1026, %v2517, 0.0
      %v2606 = vsel %vm1027, %v2519, 0.0
      %v2607 = vsel %vm1028, %v2521, 0.0
      %v2608 = vsel %vm1029, %v2523, 0.0
      %v2609 = vsel %vm1030, %v2525, 0.0
      %v2610 = vsel %vm1031, %v2527, 0.0
      %v2611 = vsel %vm1032, %v2529, 0.0
      %v2612 = vsel %vm1033, %v2531, 0.0
      %v2613 = vsel %vm1034, %v2533, 0.0
      %v2614 = vsel %vm1035, %v2535, 0.0
      %v2615 = vsel %vm1036, %v2537, 0.0
      %v2616 = vsel %vm1037, %v2539, 0.0
      %v2617 = vsel %vm1038, %v2541, 0.0
      %v2618 = vsel %vm1039, %v2543, 0.0
      %v2619 = vsel %vm1040, %v2545, 0.0
      %v2620 = vsel %vm1041, %v2547, 0.0
      %v2621 = vsel %vm1042, %v2549, 0.0
      %v2622 = vsel %vm1043, %v2551, 0.0
      %v2623 = vsel %vm1044, %v2553, 0.0
      %v2624 = vsel %vm1045, %v2555, 0.0
      %v2625 = vsel %vm1046, %v2557, 0.0
      %v2626 = vsel %vm1047, %v2559, 0.0
      %v2627 = vsel %vm1048, %v2561, 0.0
      %v2628 = vsel %vm1049, %v2563, 0.0
      %v2629 = vsel %vm1050, %v2597, 0.0
      %v2630 = vpack.c.bf16 %v2599, %v2598
      %v2631 = vpack.c.bf16 %v2601, %v2600
      %v2632 = vpack.c.bf16 %v2603, %v2602
      %v2633 = vpack.c.bf16 %v2605, %v2604
      %v2634 = vpack.c.bf16 %v2607, %v2606
      %v2635 = vpack.c.bf16 %v2609, %v2608
      %v2636 = vpack.c.bf16 %v2611, %v2610
      %v2637 = vpack.c.bf16 %v2613, %v2612
      %v2638 = vpack.c.bf16 %v2615, %v2614
      %v2639 = vpack.c.bf16 %v2617, %v2616
      %v2640 = vpack.c.bf16 %v2619, %v2618
      %v2641 = vpack.c.bf16 %v2621, %v2620
      %v2642 = vpack.c.bf16 %v2623, %v2622
      %v2643 = vpack.c.bf16 %v2625, %v2624
      %v2644 = vpack.c.bf16 %v2627, %v2626
      %v2645 = vpack.c.bf16 %v2629, %v2628
      %v2647 = vrot.slane %v2310, 7
      %v2650 = vrot.slane %v2309, 7
      %v2651 = vsel %vm473, %v2312, %v2650
      %v2652 = vsel %vm473, %v2650, %v2647
      %v2656 = vsel %vm473, %v2647, %v2346
      %v2657 = vsel %vm697, %v2656, 0.0
      %v2658 = vsel %vm698, %v2349, 0.0
      %v2659 = vsel %vm699, %v2351, 0.0
      %v2660 = vsel %vm700, %v2353, 0.0
      %v2661 = vsel %vm701, %v2355, 0.0
      %v2662 = vsel %vm702, %v2357, 0.0
      %v2663 = vsel %vm703, %v2359, 0.0
      %v2664 = vsel %vm704, %v2361, 0.0
      %v2665 = vsel %vm705, %v2363, 0.0
      %v2666 = vsel %vm706, %v2365, 0.0
      %v2667 = vsel %vm707, %v2367, 0.0
      %v2668 = vsel %vm708, %v2369, 0.0
      %v2669 = vsel %vm709, %v2371, 0.0
      %v2670 = vsel %vm710, %v2373, 0.0
      %v2671 = vsel %vm711, %v2375, 0.0
      %v2672 = vsel %vm712, %v2377, 0.0
      %v2673 = vsel %vm713, %v2379, 0.0
      %v2674 = vsel %vm714, %v2381, 0.0
      %v2675 = vsel %vm715, %v2383, 0.0
      %v2676 = vsel %vm716, %v2385, 0.0
      %v2677 = vsel %vm717, %v2387, 0.0
      %v2678 = vsel %vm718, %v2389, 0.0
      %v2679 = vsel %vm719, %v2391, 0.0
      %v2680 = vsel %vm720, %v2393, 0.0
      %v2681 = vsel %vm721, %v2395, 0.0
      %v2682 = vsel %vm722, %v2397, 0.0
      %v2683 = vsel %vm723, %v2399, 0.0
      %v2684 = vsel %vm724, %v2401, 0.0
      %v2685 = vsel %vm725, %v2403, 0.0
      %v2686 = vsel %vm726, %v2404, 0.0
      %v2687 = vsel %vm727, %v2651, 0.0
      %v2688 = vsel %vm728, %v2652, 0.0
      %v2689 = vpack.c.bf16 %v2658, %v2657
      %v2690 = vpack.c.bf16 %v2660, %v2659
      %v2691 = vpack.c.bf16 %v2662, %v2661
      %v2692 = vpack.c.bf16 %v2664, %v2663
      %v2693 = vpack.c.bf16 %v2666, %v2665
      %v2694 = vpack.c.bf16 %v2668, %v2667
      %v2695 = vpack.c.bf16 %v2670, %v2669
      %v2696 = vpack.c.bf16 %v2672, %v2671
      %v2697 = vpack.c.bf16 %v2674, %v2673
      %v2698 = vpack.c.bf16 %v2676, %v2675
      %v2699 = vpack.c.bf16 %v2678, %v2677
      %v2700 = vpack.c.bf16 %v2680, %v2679
      %v2701 = vpack.c.bf16 %v2682, %v2681
      %v2702 = vpack.c.bf16 %v2684, %v2683
      %v2703 = vpack.c.bf16 %v2686, %v2685
      %v2704 = vpack.c.bf16 %v2688, %v2687
      %v2705 = vpack.c.bf16 %v2310, %v2309
      %v2706 = vrot.slane %v2309, 1
      %v2707 = vsel %vm793, %v2562, %v2706
      %v2708 = vrot.slane %v2310, 1
      %v2709 = vsel %vm793, %v2706, %v2708
      %v2714 = vsel %vm793, %v2708, %v2504
      %v2715 = vsel %vm1019, %v2507, 0.0
      %v2716 = vsel %vm1020, %v2509, 0.0
      %v2717 = vsel %vm1021, %v2511, 0.0
      %v2718 = vsel %vm1022, %v2513, 0.0
      %v2719 = vsel %vm1023, %v2515, 0.0
      %v2720 = vsel %vm1024, %v2517, 0.0
      %v2721 = vsel %vm1025, %v2519, 0.0
      %v2722 = vsel %vm1026, %v2521, 0.0
      %v2723 = vsel %vm1027, %v2523, 0.0
      %v2724 = vsel %vm1028, %v2525, 0.0
      %v2725 = vsel %vm1029, %v2527, 0.0
      %v2726 = vsel %vm1030, %v2529, 0.0
      %v2727 = vsel %vm1031, %v2531, 0.0
      %v2728 = vsel %vm1032, %v2533, 0.0
      %v2729 = vsel %vm1033, %v2535, 0.0
      %v2730 = vsel %vm1034, %v2537, 0.0
      %v2731 = vsel %vm1035, %v2539, 0.0
      %v2732 = vsel %vm1036, %v2541, 0.0
      %v2733 = vsel %vm1037, %v2543, 0.0
      %v2734 = vsel %vm1038, %v2545, 0.0
      %v2735 = vsel %vm1039, %v2547, 0.0
      %v2736 = vsel %vm1040, %v2549, 0.0
      %v2737 = vsel %vm1041, %v2551, 0.0
      %v2738 = vsel %vm1042, %v2553, 0.0
      %v2739 = vsel %vm1043, %v2555, 0.0
      %v2740 = vsel %vm1044, %v2557, 0.0
      %v2741 = vsel %vm1045, %v2559, 0.0
      %v2742 = vsel %vm1046, %v2561, 0.0
      %v2743 = vsel %vm1047, %v2563, 0.0
      %v2744 = vsel %vm1048, %v2707, 0.0
      %v2745 = vsel %vm1049, %v2709, 0.0
      %v2746 = vsel %vm1050, %v2714, 0.0
      %v2747 = vpack.c.bf16 %v2716, %v2715
      %v2748 = vpack.c.bf16 %v2718, %v2717
      %v2749 = vpack.c.bf16 %v2720, %v2719
      %v2750 = vpack.c.bf16 %v2722, %v2721
      %v2751 = vpack.c.bf16 %v2724, %v2723
      %v2752 = vpack.c.bf16 %v2726, %v2725
      %v2753 = vpack.c.bf16 %v2728, %v2727
      %v2754 = vpack.c.bf16 %v2730, %v2729
      %v2755 = vpack.c.bf16 %v2732, %v2731
      %v2756 = vpack.c.bf16 %v2734, %v2733
      %v2757 = vpack.c.bf16 %v2736, %v2735
      %v2758 = vpack.c.bf16 %v2738, %v2737
      %v2759 = vpack.c.bf16 %v2740, %v2739
      %v2760 = vpack.c.bf16 %v2742, %v2741
      %v2761 = vpack.c.bf16 %v2744, %v2743
      %v2762 = vpack.c.bf16 %v2746, %v2745
      %v2763 = vsel %vm473, %v2647, %v2344
      %v2766 = vsel %vm473, %v2344, %v2350
      %v2767 = vsel %vm697, %v2766, 0.0
      %v2768 = vsel %vm698, %v2353, 0.0
      %v2769 = vsel %vm699, %v2355, 0.0
      %v2770 = vsel %vm700, %v2357, 0.0
      %v2771 = vsel %vm701, %v2359, 0.0
      %v2772 = vsel %vm702, %v2361, 0.0
      %v2773 = vsel %vm703, %v2363, 0.0
      %v2774 = vsel %vm704, %v2365, 0.0
      %v2775 = vsel %vm705, %v2367, 0.0
      %v2776 = vsel %vm706, %v2369, 0.0
      %v2777 = vsel %vm707, %v2371, 0.0
      %v2778 = vsel %vm708, %v2373, 0.0
      %v2779 = vsel %vm709, %v2375, 0.0
      %v2780 = vsel %vm710, %v2377, 0.0
      %v2781 = vsel %vm711, %v2379, 0.0
      %v2782 = vsel %vm712, %v2381, 0.0
      %v2783 = vsel %vm713, %v2383, 0.0
      %v2784 = vsel %vm714, %v2385, 0.0
      %v2785 = vsel %vm715, %v2387, 0.0
      %v2786 = vsel %vm716, %v2389, 0.0
      %v2787 = vsel %vm717, %v2391, 0.0
      %v2788 = vsel %vm718, %v2393, 0.0
      %v2789 = vsel %vm719, %v2395, 0.0
      %v2790 = vsel %vm720, %v2397, 0.0
      %v2791 = vsel %vm721, %v2399, 0.0
      %v2792 = vsel %vm722, %v2401, 0.0
      %v2793 = vsel %vm723, %v2403, 0.0
      %v2794 = vsel %vm724, %v2404, 0.0
      %v2795 = vsel %vm725, %v2651, 0.0
      %v2796 = vsel %vm726, %v2652, 0.0
      %v2797 = vsel %vm727, %v2763, 0.0
      %v2798 = vsel %vm728, %v2345, 0.0
      %v2799 = vpack.c.bf16 %v2768, %v2767
      %v2800 = vpack.c.bf16 %v2770, %v2769
      %v2801 = vpack.c.bf16 %v2772, %v2771
      %v2802 = vpack.c.bf16 %v2774, %v2773
      %v2803 = vpack.c.bf16 %v2776, %v2775
      %v2804 = vpack.c.bf16 %v2778, %v2777
      %v2805 = vpack.c.bf16 %v2780, %v2779
      %v2806 = vpack.c.bf16 %v2782, %v2781
      %v2807 = vpack.c.bf16 %v2784, %v2783
      %v2808 = vpack.c.bf16 %v2786, %v2785
      %v2809 = vpack.c.bf16 %v2788, %v2787
      %v2810 = vpack.c.bf16 %v2790, %v2789
      %v2811 = vpack.c.bf16 %v2792, %v2791
      %v2812 = vpack.c.bf16 %v2794, %v2793
      %v2813 = vpack.c.bf16 %v2796, %v2795
      %v2814 = vpack.c.bf16 %v2798, %v2797
      %v2815 = vsel %vm793, %v2708, %v2502
      %v2818 = vsel %vm793, %v2502, %v2508
      %v2819 = vsel %vm1019, %v2511, 0.0
      %v2820 = vsel %vm1020, %v2513, 0.0
      %v2821 = vsel %vm1021, %v2515, 0.0
      %v2822 = vsel %vm1022, %v2517, 0.0
      %v2823 = vsel %vm1023, %v2519, 0.0
      %v2824 = vsel %vm1024, %v2521, 0.0
      %v2825 = vsel %vm1025, %v2523, 0.0
      %v2826 = vsel %vm1026, %v2525, 0.0
      %v2827 = vsel %vm1027, %v2527, 0.0
      %v2828 = vsel %vm1028, %v2529, 0.0
      %v2829 = vsel %vm1029, %v2531, 0.0
      %v2830 = vsel %vm1030, %v2533, 0.0
      %v2831 = vsel %vm1031, %v2535, 0.0
      %v2832 = vsel %vm1032, %v2537, 0.0
      %v2833 = vsel %vm1033, %v2539, 0.0
      %v2834 = vsel %vm1034, %v2541, 0.0
      %v2835 = vsel %vm1035, %v2543, 0.0
      %v2836 = vsel %vm1036, %v2545, 0.0
      %v2837 = vsel %vm1037, %v2547, 0.0
      %v2838 = vsel %vm1038, %v2549, 0.0
      %v2839 = vsel %vm1039, %v2551, 0.0
      %v2840 = vsel %vm1040, %v2553, 0.0
      %v2841 = vsel %vm1041, %v2555, 0.0
      %v2842 = vsel %vm1042, %v2557, 0.0
      %v2843 = vsel %vm1043, %v2559, 0.0
      %v2844 = vsel %vm1044, %v2561, 0.0
      %v2845 = vsel %vm1045, %v2563, 0.0
      %v2846 = vsel %vm1046, %v2707, 0.0
      %v2847 = vsel %vm1047, %v2709, 0.0
      %v2848 = vsel %vm1048, %v2815, 0.0
      %v2849 = vsel %vm1049, %v2503, 0.0
      %v2850 = vsel %vm1050, %v2818, 0.0
      %v2851 = vpack.c.bf16 %v2820, %v2819
      %v2852 = vpack.c.bf16 %v2822, %v2821
      %v2853 = vpack.c.bf16 %v2824, %v2823
      %v2854 = vpack.c.bf16 %v2826, %v2825
      %v2855 = vpack.c.bf16 %v2828, %v2827
      %v2856 = vpack.c.bf16 %v2830, %v2829
      %v2857 = vpack.c.bf16 %v2832, %v2831
      %v2858 = vpack.c.bf16 %v2834, %v2833
      %v2859 = vpack.c.bf16 %v2836, %v2835
      %v2860 = vpack.c.bf16 %v2838, %v2837
      %v2861 = vpack.c.bf16 %v2840, %v2839
      %v2862 = vpack.c.bf16 %v2842, %v2841
      %v2863 = vpack.c.bf16 %v2844, %v2843
      %v2864 = vpack.c.bf16 %v2846, %v2845
      %v2865 = vpack.c.bf16 %v2848, %v2847
      %v2866 = vpack.c.bf16 %v2850, %v2849
      %2883 = vrot.lane.b32.xlu0 %v2486, 8
      %v2884 = vpop.permute.xlu0 %2883
      %2885 = vrot.lane.b32.xlu0 %v2487, 8
      %v2886 = vpop.permute.xlu0 %2885
      %2887 = vrot.lane.b32.xlu0 %v2488, 8
      %v2888 = vpop.permute.xlu0 %2887
      %2889 = vrot.lane.b32.xlu0 %v2489, 8
      %v2890 = vpop.permute.xlu0 %2889
      %2891 = vrot.lane.b32.xlu0 %v2490, 8
      %v2892 = vpop.permute.xlu0 %2891
      %2893 = vrot.lane.b32.xlu0 %v2491, 8
      %v2894 = vpop.permute.xlu0 %2893
      %2895 = vrot.lane.b32.xlu0 %v2492, 8
      %v2896 = vpop.permute.xlu0 %2895
      %2897 = vrot.lane.b32.xlu0 %v2493, 8
      %v2898 = vpop.permute.xlu0 %2897
      %2899 = vrot.lane.b32.xlu0 %v2494, 8
      %v2900 = vpop.permute.xlu0 %2899
      %2901 = vrot.lane.b32.xlu0 %v2495, 8
      %v2902 = vpop.permute.xlu0 %2901
      %2903 = vrot.lane.b32.xlu0 %v2496, 8
      %v2904 = vpop.permute.xlu0 %2903
      %2905 = vrot.lane.b32.xlu0 %v2497, 8
      %v2906 = vpop.permute.xlu0 %2905
      %2907 = vrot.lane.b32.xlu0 %v2498, 8
      %v2908 = vpop.permute.xlu0 %2907
      %2909 = vrot.lane.b32.xlu0 %v2499, 8
      %v2910 = vpop.permute.xlu0 %2909
      %2911 = vrot.lane.b32.xlu0 %v2500, 8
      %v2912 = vpop.permute.xlu0 %2911
      %2913 = vrot.lane.b32.xlu0 %v2501, 8
      %v2914 = vpop.permute.xlu0 %2913
      %2931 = vrot.lane.b32.xlu0 %v2630, 16
      %v2932 = vpop.permute.xlu0 %2931
      %2933 = vrot.lane.b32.xlu0 %v2631, 16
      %v2934 = vpop.permute.xlu0 %2933
      %2935 = vrot.lane.b32.xlu0 %v2632, 16
      %v2936 = vpop.permute.xlu0 %2935
      %2937 = vrot.lane.b32.xlu0 %v2633, 16
      %v2938 = vpop.permute.xlu0 %2937
      %2939 = vrot.lane.b32.xlu0 %v2634, 16
      %v2940 = vpop.permute.xlu0 %2939
      %2941 = vrot.lane.b32.xlu0 %v2635, 16
      %v2942 = vpop.permute.xlu0 %2941
      %2943 = vrot.lane.b32.xlu0 %v2636, 16
      %v2944 = vpop.permute.xlu0 %2943
      %2945 = vrot.lane.b32.xlu0 %v2637, 16
      %v2946 = vpop.permute.xlu0 %2945
      %2947 = vrot.lane.b32.xlu0 %v2638, 16
      %v2948 = vpop.permute.xlu0 %2947
      %2949 = vrot.lane.b32.xlu0 %v2639, 16
      %v2950 = vpop.permute.xlu0 %2949
      %2951 = vrot.lane.b32.xlu0 %v2640, 16
      %v2952 = vpop.permute.xlu0 %2951
      %2953 = vrot.lane.b32.xlu0 %v2641, 16
      %v2954 = vpop.permute.xlu0 %2953
      %2955 = vrot.lane.b32.xlu0 %v2642, 16
      %v2956 = vpop.permute.xlu0 %2955
      %2957 = vrot.lane.b32.xlu0 %v2643, 16
      %v2958 = vpop.permute.xlu0 %2957
      %2959 = vrot.lane.b32.xlu0 %v2644, 16
      %v2960 = vpop.permute.xlu0 %2959
      %2961 = vrot.lane.b32.xlu0 %v2645, 16
      %v2962 = vpop.permute.xlu0 %2961
      %2979 = vrot.lane.b32.xlu0 %v2689, 24
      %v2980 = vpop.permute.xlu0 %2979
      %2981 = vrot.lane.b32.xlu0 %v2690, 24
      %v2982 = vpop.permute.xlu0 %2981
      %2983 = vrot.lane.b32.xlu0 %v2691, 24
      %v2984 = vpop.permute.xlu0 %2983
      %2985 = vrot.lane.b32.xlu0 %v2692, 24
      %v2986 = vpop.permute.xlu0 %2985
      %2987 = vrot.lane.b32.xlu0 %v2693, 24
      %v2988 = vpop.permute.xlu0 %2987
      %2989 = vrot.lane.b32.xlu0 %v2694, 24
      %v2990 = vpop.permute.xlu0 %2989
      %2991 = vrot.lane.b32.xlu0 %v2695, 24
      %v2992 = vpop.permute.xlu0 %2991
      %2993 = vrot.lane.b32.xlu0 %v2696, 24
      %v2994 = vpop.permute.xlu0 %2993
      %2995 = vrot.lane.b32.xlu0 %v2697, 24
      %v2996 = vpop.permute.xlu0 %2995
      %2997 = vrot.lane.b32.xlu0 %v2698, 24
      %v2998 = vpop.permute.xlu0 %2997
      %2999 = vrot.lane.b32.xlu0 %v2699, 24
      %v3000 = vpop.permute.xlu0 %2999
      %3001 = vrot.lane.b32.xlu0 %v2700, 24
      %v3002 = vpop.permute.xlu0 %3001
      %3003 = vrot.lane.b32.xlu0 %v2701, 24
      %v3004 = vpop.permute.xlu0 %3003
      %3005 = vrot.lane.b32.xlu0 %v2702, 24
      %v3006 = vpop.permute.xlu0 %3005
      %3007 = vrot.lane.b32.xlu0 %v2703, 24
      %v3008 = vpop.permute.xlu0 %3007
      %3009 = vrot.lane.b32.xlu0 %v2704, 24
      %v3010 = vpop.permute.xlu0 %3009
      %3012 = vrot.lane.b32.xlu0 %v2487, 32
      %v3013 = vpop.permute.xlu0 %3012
      %3014 = vrot.lane.b32.xlu0 %v2488, 32
      %v3015 = vpop.permute.xlu0 %3014
      %3016 = vrot.lane.b32.xlu0 %v2489, 32
      %v3017 = vpop.permute.xlu0 %3016
      %3018 = vrot.lane.b32.xlu0 %v2490, 32
      %v3019 = vpop.permute.xlu0 %3018
      %3020 = vrot.lane.b32.xlu0 %v2491, 32
      %v3021 = vpop.permute.xlu0 %3020
      %3022 = vrot.lane.b32.xlu0 %v2492, 32
      %v3023 = vpop.permute.xlu0 %3022
      %3024 = vrot.lane.b32.xlu0 %v2493, 32
      %v3025 = vpop.permute.xlu0 %3024
      %3026 = vrot.lane.b32.xlu0 %v2494, 32
      %v3027 = vpop.permute.xlu0 %3026
      %3028 = vrot.lane.b32.xlu0 %v2495, 32
      %v3029 = vpop.permute.xlu0 %3028
      %3030 = vrot.lane.b32.xlu0 %v2496, 32
      %v3031 = vpop.permute.xlu0 %3030
      %3032 = vrot.lane.b32.xlu0 %v2497, 32
      %v3033 = vpop.permute.xlu0 %3032
      %3034 = vrot.lane.b32.xlu0 %v2498, 32
      %v3035 = vpop.permute.xlu0 %3034
      %3036 = vrot.lane.b32.xlu0 %v2499, 32
      %v3037 = vpop.permute.xlu0 %3036
      %3038 = vrot.lane.b32.xlu0 %v2500, 32
      %v3039 = vpop.permute.xlu0 %3038
      %3040 = vrot.lane.b32.xlu0 %v2501, 32
      %v3041 = vpop.permute.xlu0 %3040
      %3042 = vrot.lane.b32.xlu0 %v2705, 32
      %v3043 = vpop.permute.xlu0 %3042
      %3060 = vrot.lane.b32.xlu0 %v2747, 40
      %v3061 = vpop.permute.xlu0 %3060
      %3062 = vrot.lane.b32.xlu0 %v2748, 40
      %v3063 = vpop.permute.xlu0 %3062
      %3064 = vrot.lane.b32.xlu0 %v2749, 40
      %v3065 = vpop.permute.xlu0 %3064
      %3066 = vrot.lane.b32.xlu0 %v2750, 40
      %v3067 = vpop.permute.xlu0 %3066
      %3068 = vrot.lane.b32.xlu0 %v2751, 40
      %v3069 = vpop.permute.xlu0 %3068
      %3070 = vrot.lane.b32.xlu0 %v2752, 40
      %v3071 = vpop.permute.xlu0 %3070
      %3072 = vrot.lane.b32.xlu0 %v2753, 40
      %v3073 = vpop.permute.xlu0 %3072
      %3074 = vrot.lane.b32.xlu0 %v2754, 40
      %v3075 = vpop.permute.xlu0 %3074
      %3076 = vrot.lane.b32.xlu0 %v2755, 40
      %v3077 = vpop.permute.xlu0 %3076
      %3078 = vrot.lane.b32.xlu0 %v2756, 40
      %v3079 = vpop.permute.xlu0 %3078
      %3080 = vrot.lane.b32.xlu0 %v2757, 40
      %v3081 = vpop.permute.xlu0 %3080
      %3082 = vrot.lane.b32.xlu0 %v2758, 40
      %v3083 = vpop.permute.xlu0 %3082
      %3084 = vrot.lane.b32.xlu0 %v2759, 40
      %v3085 = vpop.permute.xlu0 %3084
      %3086 = vrot.lane.b32.xlu0 %v2760, 40
      %v3087 = vpop.permute.xlu0 %3086
      %3088 = vrot.lane.b32.xlu0 %v2761, 40
      %v3089 = vpop.permute.xlu0 %3088
      %3090 = vrot.lane.b32.xlu0 %v2762, 40
      %v3091 = vpop.permute.xlu0 %3090
      %3108 = vrot.lane.b32.xlu0 %v2799, 48
      %v3109 = vpop.permute.xlu0 %3108
      %3110 = vrot.lane.b32.xlu0 %v2800, 48
      %v3111 = vpop.permute.xlu0 %3110
      %3112 = vrot.lane.b32.xlu0 %v2801, 48
      %v3113 = vpop.permute.xlu0 %3112
      %3114 = vrot.lane.b32.xlu0 %v2802, 48
      %v3115 = vpop.permute.xlu0 %3114
      %3116 = vrot.lane.b32.xlu0 %v2803, 48
      %v3117 = vpop.permute.xlu0 %3116
      %3118 = vrot.lane.b32.xlu0 %v2804, 48
      %v3119 = vpop.permute.xlu0 %3118
      %3120 = vrot.lane.b32.xlu0 %v2805, 48
      %v3121 = vpop.permute.xlu0 %3120
      %3122 = vrot.lane.b32.xlu0 %v2806, 48
      %v3123 = vpop.permute.xlu0 %3122
      %3124 = vrot.lane.b32.xlu0 %v2807, 48
      %v3125 = vpop.permute.xlu0 %3124
      %3126 = vrot.lane.b32.xlu0 %v2808, 48
      %v3127 = vpop.permute.xlu0 %3126
      %3128 = vrot.lane.b32.xlu0 %v2809, 48
      %v3129 = vpop.permute.xlu0 %3128
      %3130 = vrot.lane.b32.xlu0 %v2810, 48
      %v3131 = vpop.permute.xlu0 %3130
      %3132 = vrot.lane.b32.xlu0 %v2811, 48
      %v3133 = vpop.permute.xlu0 %3132
      %3134 = vrot.lane.b32.xlu0 %v2812, 48
      %v3135 = vpop.permute.xlu0 %3134
      %3136 = vrot.lane.b32.xlu0 %v2813, 48
      %v3137 = vpop.permute.xlu0 %3136
      %3138 = vrot.lane.b32.xlu0 %v2814, 48
      %v3139 = vpop.permute.xlu0 %3138
      %3140 = vrot.lane.b32.xlu0 %v2488, 56
      %v3141 = vpop.permute.xlu0 %3140
      %3142 = vrot.lane.b32.xlu0 %v2489, 56
      %v3143 = vpop.permute.xlu0 %3142
      %3144 = vrot.lane.b32.xlu0 %v2490, 56
      %v3145 = vpop.permute.xlu0 %3144
      %3146 = vrot.lane.b32.xlu0 %v2491, 56
      %v3147 = vpop.permute.xlu0 %3146
      %3148 = vrot.lane.b32.xlu0 %v2492, 56
      %v3149 = vpop.permute.xlu0 %3148
      %3150 = vrot.lane.b32.xlu0 %v2493, 56
      %v3151 = vpop.permute.xlu0 %3150
      %3152 = vrot.lane.b32.xlu0 %v2494, 56
      %v3153 = vpop.permute.xlu0 %3152
      %3154 = vrot.lane.b32.xlu0 %v2495, 56
      %v3155 = vpop.permute.xlu0 %3154
      %3156 = vrot.lane.b32.xlu0 %v2496, 56
      %v3157 = vpop.permute.xlu0 %3156
      %3158 = vrot.lane.b32.xlu0 %v2497, 56
      %v3159 = vpop.permute.xlu0 %3158
      %3160 = vrot.lane.b32.xlu0 %v2498, 56
      %v3161 = vpop.permute.xlu0 %3160
      %3162 = vrot.lane.b32.xlu0 %v2499, 56
      %v3163 = vpop.permute.xlu0 %3162
      %3164 = vrot.lane.b32.xlu0 %v2500, 56
      %v3165 = vpop.permute.xlu0 %3164
      %3166 = vrot.lane.b32.xlu0 %v2501, 56
      %v3167 = vpop.permute.xlu0 %3166
      %3168 = vrot.lane.b32.xlu0 %v2705, 56
      %v3169 = vpop.permute.xlu0 %3168
      %3170 = vrot.lane.b32.xlu0 %v2486, 56
      %v3171 = vpop.permute.xlu0 %3170
      %3188 = vrot.lane.b32.xlu0 %v2851, 64
      %v3189 = vpop.permute.xlu0 %3188
      %3190 = vrot.lane.b32.xlu0 %v2852, 64
      %v3191 = vpop.permute.xlu0 %3190
      %3192 = vrot.lane.b32.xlu0 %v2853, 64
      %v3193 = vpop.permute.xlu0 %3192
      %3194 = vrot.lane.b32.xlu0 %v2854, 64
      %v3195 = vpop.permute.xlu0 %3194
      %3196 = vrot.lane.b32.xlu0 %v2855, 64
      %v3197 = vpop.permute.xlu0 %3196
      %3198 = vrot.lane.b32.xlu0 %v2856, 64
      %v3199 = vpop.permute.xlu0 %3198
      %3200 = vrot.lane.b32.xlu0 %v2857, 64
      %v3201 = vpop.permute.xlu0 %3200
      %3202 = vrot.lane.b32.xlu0 %v2858, 64
      %v3203 = vpop.permute.xlu0 %3202
      %3204 = vrot.lane.b32.xlu0 %v2859, 64
      %v3205 = vpop.permute.xlu0 %3204
      %3206 = vrot.lane.b32.xlu0 %v2860, 64
      %v3207 = vpop.permute.xlu0 %3206
      %3208 = vrot.lane.b32.xlu0 %v2861, 64
      %v3209 = vpop.permute.xlu0 %3208
      %3210 = vrot.lane.b32.xlu0 %v2862, 64
      %v3211 = vpop.permute.xlu0 %3210
      %3212 = vrot.lane.b32.xlu0 %v2863, 64
      %v3213 = vpop.permute.xlu0 %3212
      %3214 = vrot.lane.b32.xlu0 %v2864, 64
      %v3215 = vpop.permute.xlu0 %3214
      %3216 = vrot.lane.b32.xlu0 %v2865, 64
      %v3217 = vpop.permute.xlu0 %3216
      %3218 = vrot.lane.b32.xlu0 %v2866, 64
      %v3219 = vpop.permute.xlu0 %3218
      %v3222 = vsel %vm1687, %v2470, %v2884
      %v3225 = vsel %vm1687, %v2471, %v2886
      %v3228 = vsel %vm1687, %v2472, %v2888
      %v3231 = vsel %vm1687, %v2473, %v2890
      %v3234 = vsel %vm1687, %v2474, %v2892
      %v3237 = vsel %vm1687, %v2475, %v2894
      %v3240 = vsel %vm1687, %v2476, %v2896
      %v3243 = vsel %vm1687, %v2477, %v2898
      %v3246 = vsel %vm1687, %v2478, %v2900
      %v3249 = vsel %vm1687, %v2479, %v2902
      %v3252 = vsel %vm1687, %v2480, %v2904
      %v3255 = vsel %vm1687, %v2481, %v2906
      %v3258 = vsel %vm1687, %v2482, %v2908
      %v3261 = vsel %vm1687, %v2483, %v2910
      %v3264 = vsel %vm1687, %v2484, %v2912
      %v3267 = vsel %vm1687, %v2485, %v2914
      %v3269 = vsel %vm1736, %v3222, %v2932
      %v3271 = vsel %vm1736, %v3225, %v2934
      %v3273 = vsel %vm1736, %v3228, %v2936
      %v3275 = vsel %vm1736, %v3231, %v2938
      %v3277 = vsel %vm1736, %v3234, %v2940
      %v3279 = vsel %vm1736, %v3237, %v2942
      %v3281 = vsel %vm1736, %v3240, %v2944
      %v3283 = vsel %vm1736, %v3243, %v2946
      %v3285 = vsel %vm1736, %v3246, %v2948
      %v3287 = vsel %vm1736, %v3249, %v2950
      %v3289 = vsel %vm1736, %v3252, %v2952
      %v3291 = vsel %vm1736, %v3255, %v2954
      %v3293 = vsel %vm1736, %v3258, %v2956
      %v3295 = vsel %vm1736, %v3261, %v2958
      %v3297 = vsel %vm1736, %v3264, %v2960
      %v3299 = vsel %vm1736, %v3267, %v2962
      %v3301 = vsel %vm1769, %v3269, %v2980
      %v3303 = vsel %vm1769, %v3271, %v2982
      %v3305 = vsel %vm1769, %v3273, %v2984
      %v3307 = vsel %vm1769, %v3275, %v2986
      %v3309 = vsel %vm1769, %v3277, %v2988
      %v3311 = vsel %vm1769, %v3279, %v2990
      %v3313 = vsel %vm1769, %v3281, %v2992
      %v3315 = vsel %vm1769, %v3283, %v2994
      %v3317 = vsel %vm1769, %v3285, %v2996
      %v3319 = vsel %vm1769, %v3287, %v2998
      %v3321 = vsel %vm1769, %v3289, %v3000
      %v3323 = vsel %vm1769, %v3291, %v3002
      %v3325 = vsel %vm1769, %v3293, %v3004
      %v3327 = vsel %vm1769, %v3295, %v3006
      %v3329 = vsel %vm1769, %v3297, %v3008
      %v3331 = vsel %vm1769, %v3299, %v3010
      %v3333 = vsel %vm1802, %v3301, %v3013
      %v3335 = vsel %vm1802, %v3303, %v3015
      %v3337 = vsel %vm1802, %v3305, %v3017
      %v3339 = vsel %vm1802, %v3307, %v3019
      %v3341 = vsel %vm1802, %v3309, %v3021
      %v3343 = vsel %vm1802, %v3311, %v3023
      %v3345 = vsel %vm1802, %v3313, %v3025
      %v3347 = vsel %vm1802, %v3315, %v3027
      %v3349 = vsel %vm1802, %v3317, %v3029
      %v3351 = vsel %vm1802, %v3319, %v3031
      %v3353 = vsel %vm1802, %v3321, %v3033
      %v3355 = vsel %vm1802, %v3323, %v3035
      %v3357 = vsel %vm1802, %v3325, %v3037
      %v3359 = vsel %vm1802, %v3327, %v3039
      %v3361 = vsel %vm1802, %v3329, %v3041
      %v3363 = vsel %vm1802, %v3331, %v3043
      %v3365 = vsel %vm1835, %v3333, %v3061
      %v3367 = vsel %vm1835, %v3335, %v3063
      %v3369 = vsel %vm1835, %v3337, %v3065
      %v3371 = vsel %vm1835, %v3339, %v3067
      %v3373 = vsel %vm1835, %v3341, %v3069
      %v3375 = vsel %vm1835, %v3343, %v3071
      %v3377 = vsel %vm1835, %v3345, %v3073
      %v3379 = vsel %vm1835, %v3347, %v3075
      %v3381 = vsel %vm1835, %v3349, %v3077
      %v3383 = vsel %vm1835, %v3351, %v3079
      %v3385 = vsel %vm1835, %v3353, %v3081
      %v3387 = vsel %vm1835, %v3355, %v3083
      %v3389 = vsel %vm1835, %v3357, %v3085
      %v3391 = vsel %vm1835, %v3359, %v3087
      %v3393 = vsel %vm1835, %v3361, %v3089
      %v3395 = vsel %vm1835, %v3363, %v3091
      %v3397 = vsel %vm1868, %v3365, %v3109
      %v3399 = vsel %vm1868, %v3367, %v3111
      %v3401 = vsel %vm1868, %v3369, %v3113
      %v3403 = vsel %vm1868, %v3371, %v3115
      %v3405 = vsel %vm1868, %v3373, %v3117
      %v3407 = vsel %vm1868, %v3375, %v3119
      %v3409 = vsel %vm1868, %v3377, %v3121
      %v3411 = vsel %vm1868, %v3379, %v3123
      %v3413 = vsel %vm1868, %v3381, %v3125
      %v3415 = vsel %vm1868, %v3383, %v3127
      %v3417 = vsel %vm1868, %v3385, %v3129
      %v3419 = vsel %vm1868, %v3387, %v3131
      %v3421 = vsel %vm1868, %v3389, %v3133
      %v3423 = vsel %vm1868, %v3391, %v3135
      %v3425 = vsel %vm1868, %v3393, %v3137
      %v3427 = vsel %vm1868, %v3395, %v3139
      %v3429 = vsel %vm1901, %v3397, %v3141
      %v3431 = vsel %vm1901, %v3399, %v3143
      %v3433 = vsel %vm1901, %v3401, %v3145
      %v3435 = vsel %vm1901, %v3403, %v3147
      %v3437 = vsel %vm1901, %v3405, %v3149
      %v3439 = vsel %vm1901, %v3407, %v3151
      %v3441 = vsel %vm1901, %v3409, %v3153
      %v3443 = vsel %vm1901, %v3411, %v3155
      %v3445 = vsel %vm1901, %v3413, %v3157
      %v3447 = vsel %vm1901, %v3415, %v3159
      %v3449 = vsel %vm1901, %v3417, %v3161
      %v3451 = vsel %vm1901, %v3419, %v3163
      %v3453 = vsel %vm1901, %v3421, %v3165
      %v3455 = vsel %vm1901, %v3423, %v3167
      %v3457 = vsel %vm1901, %v3425, %v3169
      %v3459 = vsel %vm1901, %v3427, %v3171
      %v3461 = vsel %vm1934, %v3429, %v3189
      %v3463 = vsel %vm1934, %v3431, %v3191
      %v3465 = vsel %vm1934, %v3433, %v3193
      %v3467 = vsel %vm1934, %v3435, %v3195
      %v3469 = vsel %vm1934, %v3437, %v3197
      %v3471 = vsel %vm1934, %v3439, %v3199
      %v3473 = vsel %vm1934, %v3441, %v3201
      %v3475 = vsel %vm1934, %v3443, %v3203
      %v3477 = vsel %vm1934, %v3445, %v3205
      %v3479 = vsel %vm1934, %v3447, %v3207
      %v3481 = vsel %vm1934, %v3449, %v3209
      %v3483 = vsel %vm1934, %v3451, %v3211
      %v3485 = vsel %vm1934, %v3453, %v3213
      %v3487 = vsel %vm1934, %v3455, %v3215
      %v3489 = vsel %vm1934, %v3457, %v3217
      %v3491 = vsel %vm1934, %v3459, %v3219
      %v3492 = vld [vmem:[%s3] sm:$0xf]
      %v3493 = vld [vmem:[%s3 + $0x4] sm:$0xf]
      %v3494 = vld [vmem:[%s3 + $0x8] sm:$0xf]
      %v3495 = vld [vmem:[%s3 + $0xc] sm:$0xf]
      %v3496 = vld [vmem:[%s3 + $0x10] sm:$0xf]
      %v3497 = vld [vmem:[%s3 + $0x14] sm:$0xf]
      %v3498 = vld [vmem:[%s3 + $0x18] sm:$0xf]
      %v3499 = vld [vmem:[%s3 + $0x1c] sm:$0xf]
      %v3500 = vld [vmem:[%s3 + $0x20] sm:$0xf]
      %v3510 = vunpack.c.l.b16 %v3492
      %v3511 = vunpack.c.l.b16 %v3493
      %v3512 = vunpack.c.l.b16 %v3494
      %v3513 = vunpack.c.l.b16 %v3495
      %v3514 = vunpack.c.l.b16 %v3496
      %v3515 = vunpack.c.l.b16 %v3497
      %v3516 = vunpack.c.l.b16 %v3498
      %v3517 = vunpack.c.l.b16 %v3499
      %v3518 = vunpack.c.l.b16 %v3500
      %v3519 = vpack.c.b16 %v3511, %v3510
      %v3520 = vpack.c.b16 %v3513, %v3512
      %v3521 = vpack.c.b16 %v3515, %v3514
      %v3522 = vpack.c.b16 %v3517, %v3516
      %v3523 = vpack.c.b16 %v3518, %v3518
      %v3528 = vsel %vm2003, %v3461, 0
      %v3530 = vsel %vm2003, %v3463, 0
      %v3532 = vsel %vm2003, %v3465, 0
      %v3534 = vsel %vm2003, %v3467, 0
      %v3536 = vsel %vm2003, %v3469, 0
      %v3538 = vsel %vm2003, %v3471, 0
      %v3540 = vsel %vm2003, %v3473, 0
      %v3542 = vsel %vm2003, %v3475, 0
      %v3544 = vsel %vm2003, %v3477, 0
      %v3546 = vsel %vm2003, %v3479, 0
      %v3548 = vsel %vm2003, %v3481, 0
      %v3550 = vsel %vm2003, %v3483, 0
      %v3552 = vsel %vm2003, %v3485, 0
      %v3554 = vsel %vm2003, %v3487, 0
      %v3556 = vsel %vm2003, %v3489, 0
      %v3558 = vsel %vm2003, %v3491, 0
      %v3561 = vsel %vm2036, %v3523, 0
      %3563 = vmatprep.subr.bf16.mxu0 0
      %3564 = vmatpush1.bf16.msra.mxu0 0
      %3565 = vmatprep.subr.bf16.mxu0 0
      %3566 = vmatpush1.bf16.msra.mxu0 0
      %3567 = vmatprep.subr.bf16.mxu0 0
      %3568 = vmatpush1.bf16.msra.mxu0 0
      %3569 = vmatprep.subr.bf16.mxu0 0
      %3570 = vmatpush1.bf16.msra.mxu0 %v3561
      %3571 = vmatprep.subr.bf16.mxu0 0
      %3572 = vmatpush1.bf16.msra.mxu0 %v3522
      %3573 = vmatprep.subr.bf16.mxu0 0
      %3574 = vmatpush1.bf16.msra.mxu0 %v3521
      %3575 = vmatprep.subr.bf16.mxu0 0
      %3576 = vmatpush1.bf16.msra.mxu0 %v3520
      %3577 = vmatprep.subr.bf16.mxu0 0
      %3578 = vmatpush1.bf16.msra.mxu0 %v3519
      %3579 = vmatprep.subr.bf16.mxu0 0
      %3580 = vmatpush2.bf16.msra.mxu0 0
      %3581 = vmatprep.subr.bf16.mxu0 0
      %3582 = vmatpush2.bf16.msra.mxu0 0
      %3583 = vmatprep.subr.bf16.mxu0 0
      %3584 = vmatpush2.bf16.msra.mxu0 0
      %3585 = vmatprep.subr.bf16.mxu0 0
      %3586 = vmatpush2.bf16.msra.mxu0 0
      %3587 = vmatprep.subr.bf16.mxu0 0
      %3588 = vmatpush2.bf16.msra.mxu0 0
      %3589 = vmatprep.subr.bf16.mxu0 0
      %3590 = vmatpush2.bf16.msra.mxu0 0
      %3591 = vmatprep.subr.bf16.mxu0 0
      %3592 = vmatpush2.bf16.msra.mxu0 0
      %3593 = vmatprep.subr.bf16.mxu0 0
      %3594 = vmatpush2.bf16.msra.mxu0 0
      %3595 = vmatprep.mubr.bf16.mxu0 0
      %3596 = vmatmul.mubr.bf16.gmra.mxu0 %v3528
      %v3597 = vpop.f32.mrf.mxu0
      %v3598 = vadd.f32 0.0, %v3597
      %v3599 = vpop.f32.mrf.mxu0
      %v3600 = vpop.f32.mrf.mxu0
      %v3601 = vadd.f32 0.0, %v3600
      %v3602 = vpop.f32.mrf.mxu0
      %3603 = vmatprep.mubr.bf16.mxu0 0
      %3604 = vmatmul.mubr.bf16.gmra.mxu0 %v3530
      %v3605 = vpop.f32.mrf.mxu0
      %v3606 = vadd.f32 0.0, %v3605
      %v3607 = vpop.f32.mrf.mxu0
      %v3608 = vpop.f32.mrf.mxu0
      %v3609 = vadd.f32 0.0, %v3608
      %v3610 = vpop.f32.mrf.mxu0
      %3611 = vmatprep.mubr.bf16.mxu0 0
      %3612 = vmatmul.mubr.bf16.gmra.mxu0 %v3532
      %v3613 = vpop.f32.mrf.mxu0
      %v3614 = vadd.f32 0.0, %v3613
      %v3615 = vpop.f32.mrf.mxu0
      %v3616 = vpop.f32.mrf.mxu0
      %v3617 = vadd.f32 0.0, %v3616
      %v3618 = vpop.f32.mrf.mxu0
      %3619 = vmatprep.mubr.bf16.mxu0 0
      %3620 = vmatmul.mubr.bf16.gmra.mxu0 %v3534
      %v3621 = vpop.f32.mrf.mxu0
      %v3622 = vadd.f32 0.0, %v3621
      %v3623 = vpop.f32.mrf.mxu0
      %v3624 = vpop.f32.mrf.mxu0
      %v3625 = vadd.f32 0.0, %v3624
      %v3626 = vpop.f32.mrf.mxu0
      %3627 = vmatprep.mubr.bf16.mxu0 0
      %3628 = vmatmul.mubr.bf16.gmra.mxu0 %v3536
      %v3629 = vpop.f32.mrf.mxu0
      %v3630 = vadd.f32 0.0, %v3629
      %v3631 = vpop.f32.mrf.mxu0
      %v3632 = vpop.f32.mrf.mxu0
      %v3633 = vadd.f32 0.0, %v3632
      %v3634 = vpop.f32.mrf.mxu0
      %3635 = vmatprep.mubr.bf16.mxu0 0
      %3636 = vmatmul.mubr.bf16.gmra.mxu0 %v3538
      %v3637 = vpop.f32.mrf.mxu0
      %v3638 = vadd.f32 0.0, %v3637
      %v3639 = vpop.f32.mrf.mxu0
      %v3640 = vpop.f32.mrf.mxu0
      %v3641 = vadd.f32 0.0, %v3640
      %v3642 = vpop.f32.mrf.mxu0
      %3643 = vmatprep.mubr.bf16.mxu0 0
      %3644 = vmatmul.mubr.bf16.gmra.mxu0 %v3540
      %v3645 = vpop.f32.mrf.mxu0
      %v3646 = vadd.f32 0.0, %v3645
      %v3647 = vpop.f32.mrf.mxu0
      %v3648 = vpop.f32.mrf.mxu0
      %v3649 = vadd.f32 0.0, %v3648
      %v3650 = vpop.f32.mrf.mxu0
      %3651 = vmatprep.mubr.bf16.mxu0 0
      %3652 = vmatmul.mubr.bf16.gmra.mxu0 %v3542
      %v3653 = vpop.f32.mrf.mxu0
      %v3654 = vadd.f32 0.0, %v3653
      %v3655 = vpop.f32.mrf.mxu0
      %v3656 = vpop.f32.mrf.mxu0
      %v3657 = vadd.f32 0.0, %v3656
      %v3658 = vpop.f32.mrf.mxu0
      %3659 = vmatprep.mubr.bf16.mxu0 0
      %3660 = vmatmul.mubr.bf16.gmra.mxu0 %v3544
      %v3661 = vpop.f32.mrf.mxu0
      %v3662 = vadd.f32 0.0, %v3661
      %v3663 = vpop.f32.mrf.mxu0
      %v3664 = vpop.f32.mrf.mxu0
      %v3665 = vadd.f32 0.0, %v3664
      %v3666 = vpop.f32.mrf.mxu0
      %3667 = vmatprep.mubr.bf16.mxu0 0
      %3668 = vmatmul.mubr.bf16.gmra.mxu0 %v3546
      %v3669 = vpop.f32.mrf.mxu0
      %v3670 = vadd.f32 0.0, %v3669
      %v3671 = vpop.f32.mrf.mxu0
      %v3672 = vpop.f32.mrf.mxu0
      %v3673 = vadd.f32 0.0, %v3672
      %v3674 = vpop.f32.mrf.mxu0
      %3675 = vmatprep.mubr.bf16.mxu0 0
      %3676 = vmatmul.mubr.bf16.gmra.mxu0 %v3548
      %v3677 = vpop.f32.mrf.mxu0
      %v3678 = vadd.f32 0.0, %v3677
      %v3679 = vpop.f32.mrf.mxu0
      %v3680 = vpop.f32.mrf.mxu0
      %v3681 = vadd.f32 0.0, %v3680
      %v3682 = vpop.f32.mrf.mxu0
      %3683 = vmatprep.mubr.bf16.mxu0 0
      %3684 = vmatmul.mubr.bf16.gmra.mxu0 %v3550
      %v3685 = vpop.f32.mrf.mxu0
      %v3686 = vadd.f32 0.0, %v3685
      %v3687 = vpop.f32.mrf.mxu0
      %v3688 = vpop.f32.mrf.mxu0
      %v3689 = vadd.f32 0.0, %v3688
      %v3690 = vpop.f32.mrf.mxu0
      %3691 = vmatprep.mubr.bf16.mxu0 0
      %3692 = vmatmul.mubr.bf16.gmra.mxu0 %v3552
      %v3693 = vpop.f32.mrf.mxu0
      %v3694 = vadd.f32 0.0, %v3693
      %v3695 = vpop.f32.mrf.mxu0
      %v3696 = vpop.f32.mrf.mxu0
      %v3697 = vadd.f32 0.0, %v3696
      %v3698 = vpop.f32.mrf.mxu0
      %3699 = vmatprep.mubr.bf16.mxu0 0
      %3700 = vmatmul.mubr.bf16.gmra.mxu0 %v3554
      %v3701 = vpop.f32.mrf.mxu0
      %v3702 = vadd.f32 0.0, %v3701
      %v3703 = vpop.f32.mrf.mxu0
      %v3704 = vpop.f32.mrf.mxu0
      %v3705 = vadd.f32 0.0, %v3704
      %v3706 = vpop.f32.mrf.mxu0
      %3707 = vmatprep.mubr.bf16.mxu0 0
      %3708 = vmatmul.mubr.bf16.gmra.mxu0 %v3556
      %v3709 = vpop.f32.mrf.mxu0
      %v3710 = vadd.f32 0.0, %v3709
      %v3711 = vpop.f32.mrf.mxu0
      %v3712 = vpop.f32.mrf.mxu0
      %v3713 = vadd.f32 0.0, %v3712
      %v3714 = vpop.f32.mrf.mxu0
      %3715 = vmatprep.mubr.bf16.mxu0 0
      %3716 = vmatmul.mubr.bf16.gmra.mxu0 %v3558
      %v3717 = vpop.f32.mrf.mxu0
      %v3718 = vadd.f32 0.0, %v3717
      %v3719 = vpop.f32.mrf.mxu0
      %v3720 = vpop.f32.mrf.mxu0
      %v3721 = vadd.f32 0.0, %v3720
      %v3722 = vpop.f32.mrf.mxu0
      %3723 = vdwg.mxu0
      %v3724 = vld [vmem:[%s6] sm:$0x1]
      %v3726 = vlaneseq
      %v3727 = vshrl.u32 %v3726, 7
      %v3728 = vsub.s32 0, %v3727
      %v3729 = vrot.slane %v3724, %v3728
      %v3731 = vmul.f32 %v3598, %v3729
      %v3732 = vmul.f32 %v3601, %v3729
      %v3733 = vmul.f32 %v3606, %v3729
      %v3734 = vmul.f32 %v3609, %v3729
      %v3735 = vmul.f32 %v3614, %v3729
      %v3736 = vmul.f32 %v3617, %v3729
      %v3737 = vmul.f32 %v3622, %v3729
      %v3738 = vmul.f32 %v3625, %v3729
      %v3739 = vmul.f32 %v3630, %v3729
      %v3740 = vmul.f32 %v3633, %v3729
      %v3741 = vmul.f32 %v3638, %v3729
      %v3742 = vmul.f32 %v3641, %v3729
      %v3743 = vmul.f32 %v3646, %v3729
      %v3744 = vmul.f32 %v3649, %v3729
      %v3745 = vmul.f32 %v3654, %v3729
      %v3746 = vmul.f32 %v3657, %v3729
      %v3747 = vmul.f32 %v3662, %v3729
      %v3748 = vmul.f32 %v3665, %v3729
      %v3749 = vmul.f32 %v3670, %v3729
      %v3750 = vmul.f32 %v3673, %v3729
      %v3751 = vmul.f32 %v3678, %v3729
      %v3752 = vmul.f32 %v3681, %v3729
      %v3753 = vmul.f32 %v3686, %v3729
      %v3754 = vmul.f32 %v3689, %v3729
      %v3755 = vmul.f32 %v3694, %v3729
      %v3756 = vmul.f32 %v3697, %v3729
      %v3757 = vmul.f32 %v3702, %v3729
      %v3758 = vmul.f32 %v3705, %v3729
      %v3759 = vmul.f32 %v3710, %v3729
      %v3760 = vmul.f32 %v3713, %v3729
      %v3761 = vmul.f32 %v3718, %v3729
      %v3762 = vmul.f32 %v3721, %v3729
      %v3763 = vld [vmem:[%s7] sm:$0x1]
      %v3765 = vlaneseq
      %v3766 = vshrl.u32 %v3765, 7
      %v3767 = vsub.s32 0, %v3766
      %v3768 = vrot.slane %v3763, %v3767
      %v3770 = vadd.f32 %v3731, %v3768
      %v3771 = vadd.f32 %v3732, %v3768
      %v3772 = vadd.f32 %v3733, %v3768
      %v3773 = vadd.f32 %v3734, %v3768
      %v3774 = vadd.f32 %v3735, %v3768
      %v3775 = vadd.f32 %v3736, %v3768
      %v3776 = vadd.f32 %v3737, %v3768
      %v3777 = vadd.f32 %v3738, %v3768
      %v3778 = vadd.f32 %v3739, %v3768
      %v3779 = vadd.f32 %v3740, %v3768
      %v3780 = vadd.f32 %v3741, %v3768
      %v3781 = vadd.f32 %v3742, %v3768
      %v3782 = vadd.f32 %v3743, %v3768
      %v3783 = vadd.f32 %v3744, %v3768
      %v3784 = vadd.f32 %v3745, %v3768
      %v3785 = vadd.f32 %v3746, %v3768
      %v3786 = vadd.f32 %v3747, %v3768
      %v3787 = vadd.f32 %v3748, %v3768
      %v3788 = vadd.f32 %v3749, %v3768
      %v3789 = vadd.f32 %v3750, %v3768
      %v3790 = vadd.f32 %v3751, %v3768
      %v3791 = vadd.f32 %v3752, %v3768
      %v3792 = vadd.f32 %v3753, %v3768
      %v3793 = vadd.f32 %v3754, %v3768
      %v3794 = vadd.f32 %v3755, %v3768
      %v3795 = vadd.f32 %v3756, %v3768
      %v3796 = vadd.f32 %v3757, %v3768
      %v3797 = vadd.f32 %v3758, %v3768
      %v3798 = vadd.f32 %v3759, %v3768
      %v3799 = vadd.f32 %v3760, %v3768
      %v3800 = vadd.f32 %v3761, %v3768
      %v3801 = vadd.f32 %v3762, %v3768
      %v3802 = vadd.f32 %v3770, %v309
      %v3803 = vadd.f32 %v3771, %v310
      %v3804 = vadd.f32 %v3772, %v311
      %v3805 = vadd.f32 %v3773, %v312
      %v3806 = vadd.f32 %v3774, %v313
      %v3807 = vadd.f32 %v3775, %v314
      %v3808 = vadd.f32 %v3776, %v315
      %v3809 = vadd.f32 %v3777, %v316
      %v3810 = vadd.f32 %v3778, %v317
      %v3811 = vadd.f32 %v3779, %v318
      %v3812 = vadd.f32 %v3780, %v319
      %v3813 = vadd.f32 %v3781, %v320
      %v3814 = vadd.f32 %v3782, %v321
      %v3815 = vadd.f32 %v3783, %v322
      %v3816 = vadd.f32 %v3784, %v323
      %v3817 = vadd.f32 %v3785, %v324
      %v3818 = vadd.f32 %v3786, %v325
      %v3819 = vadd.f32 %v3787, %v326
      %v3820 = vadd.f32 %v3788, %v327
      %v3821 = vadd.f32 %v3789, %v328
      %v3822 = vadd.f32 %v3790, %v329
      %v3823 = vadd.f32 %v3791, %v330
      %v3824 = vadd.f32 %v3792, %v331
      %v3825 = vadd.f32 %v3793, %v332
      %v3826 = vadd.f32 %v3794, %v333
      %v3827 = vadd.f32 %v3795, %v334
      %v3828 = vadd.f32 %v3796, %v335
      %v3829 = vadd.f32 %v3797, %v336
      %v3830 = vadd.f32 %v3798, %v337
      %v3831 = vadd.f32 %v3799, %v338
      %v3832 = vadd.f32 %v3800, %v339
      %v3833 = vadd.f32 %v3801, %v340
      %v3834 = vmax.f32 %v3802, 0.0
      %v3835 = vmax.f32 %v3803, 0.0
      %v3836 = vmax.f32 %v3804, 0.0
      %v3837 = vmax.f32 %v3805, 0.0
      %v3838 = vmax.f32 %v3806, 0.0
      %v3839 = vmax.f32 %v3807, 0.0
      %v3840 = vmax.f32 %v3808, 0.0
      %v3841 = vmax.f32 %v3809, 0.0
      %v3842 = vmax.f32 %v3810, 0.0
      %v3843 = vmax.f32 %v3811, 0.0
      %v3844 = vmax.f32 %v3812, 0.0
      %v3845 = vmax.f32 %v3813, 0.0
      %v3846 = vmax.f32 %v3814, 0.0
      %v3847 = vmax.f32 %v3815, 0.0
      %v3848 = vmax.f32 %v3816, 0.0
      %v3849 = vmax.f32 %v3817, 0.0
      %v3850 = vmax.f32 %v3818, 0.0
      %v3851 = vmax.f32 %v3819, 0.0
      %v3852 = vmax.f32 %v3820, 0.0
      %v3853 = vmax.f32 %v3821, 0.0
      %v3854 = vmax.f32 %v3822, 0.0
      %v3855 = vmax.f32 %v3823, 0.0
      %v3856 = vmax.f32 %v3824, 0.0
      %v3857 = vmax.f32 %v3825, 0.0
      %v3858 = vmax.f32 %v3826, 0.0
      %v3859 = vmax.f32 %v3827, 0.0
      %v3860 = vmax.f32 %v3828, 0.0
      %v3861 = vmax.f32 %v3829, 0.0
      %v3862 = vmax.f32 %v3830, 0.0
      %v3863 = vmax.f32 %v3831, 0.0
      %v3864 = vmax.f32 %v3832, 0.0
      %v3865 = vmax.f32 %v3833, 0.0
      %3866 = vst.msk [vmem:[%s305] sm:$0xff] %vm1687, %v3834
      %3867 = vst.msk [vmem:[%s305 + $0x8] sm:$0xff] %vm1687, %v3835
      %3868 = vst.msk [vmem:[%s305 + $0x10] sm:$0xff] %vm1687, %v3836
      %3869 = vst.msk [vmem:[%s305 + $0x18] sm:$0xff] %vm1687, %v3837
      %3870 = vst.msk [vmem:[%s305 + $0x20] sm:$0xff] %vm1687, %v3838
      %3871 = vst.msk [vmem:[%s305 + $0x28] sm:$0xff] %vm1687, %v3839
      %3872 = vst.msk [vmem:[%s305 + $0x30] sm:$0xff] %vm1687, %v3840
      %3873 = vst.msk [vmem:[%s305 + $0x38] sm:$0xff] %vm1687, %v3841
      %3874 = vst.msk [vmem:[%s305 + $0x40] sm:$0xff] %vm1687, %v3842
      %3875 = vst.msk [vmem:[%s305 + $0x48] sm:$0xff] %vm1687, %v3843
      %3876 = vst.msk [vmem:[%s305 + $0x50] sm:$0xff] %vm1687, %v3844
      %3877 = vst.msk [vmem:[%s305 + $0x58] sm:$0xff] %vm1687, %v3845
      %3878 = vst.msk [vmem:[%s305 + $0x60] sm:$0xff] %vm1687, %v3846
      %3879 = vst.msk [vmem:[%s305 + $0x68] sm:$0xff] %vm1687, %v3847
      %3880 = vst.msk [vmem:[%s305 + $0x70] sm:$0xff] %vm1687, %v3848
      %3881 = vst.msk [vmem:[%s305 + $0x78] sm:$0xff] %vm1687, %v3849
      %3882 = vst.msk [vmem:[%s305 + $0x80] sm:$0xff] %vm1687, %v3850
      %3883 = vst.msk [vmem:[%s305 + $0x88] sm:$0xff] %vm1687, %v3851
      %3884 = vst.msk [vmem:[%s305 + $0x90] sm:$0xff] %vm1687, %v3852
      %3885 = vst.msk [vmem:[%s305 + $0x98] sm:$0xff] %vm1687, %v3853
      %3886 = vst.msk [vmem:[%s305 + $0xa0] sm:$0xff] %vm1687, %v3854
      %3887 = vst.msk [vmem:[%s305 + $0xa8] sm:$0xff] %vm1687, %v3855
      %3888 = vst.msk [vmem:[%s305 + $0xb0] sm:$0xff] %vm1687, %v3856
      %3889 = vst.msk [vmem:[%s305 + $0xb8] sm:$0xff] %vm1687, %v3857
      %3890 = vst.msk [vmem:[%s305 + $0xc0] sm:$0xff] %vm1687, %v3858
      %3891 = vst.msk [vmem:[%s305 + $0xc8] sm:$0xff] %vm1687, %v3859
      %3892 = vst.msk [vmem:[%s305 + $0xd0] sm:$0xff] %vm1687, %v3860
      %3893 = vst.msk [vmem:[%s305 + $0xd8] sm:$0xff] %vm1687, %v3861
      %3894 = vst.msk [vmem:[%s305 + $0xe0] sm:$0xff] %vm1687, %v3862
      %3895 = vst.msk [vmem:[%s305 + $0xe8] sm:$0xff] %vm1687, %v3863
      %3896 = vst.msk [vmem:[%s305 + $0xf0] sm:$0xff] %vm1687, %v3864
      %3897 = vst.msk [vmem:[%s305 + $0xf8] sm:$0xff] %vm1687, %v3865
      %p3898 = scmp.lt.s32.totalorder %s19, 1
      %s3899 = scalar_select %p3898, %s19, 1
      %s3900 = smul.addr %s3899, 32
      %s3901 = smul.addr %s3900, 8
      %s3902 = scalar_lea.vmem %s8, %s3901
      // Predicated region
      $region53: #{tpu_custom_call.1} parent=51 // pred_check
        %p3903 = pneg %p210
      $region54: #{tpu_custom_call.1} parent=51 // pred_check_branch
        %3905 = sbr.rel (%p3903) target = $region56
      $region55: #{tpu_custom_call.1} parent=51 // pred_region
        _
      $region56: #{tpu_custom_call.1} parent=51 // pred_fallthru
        _
    $region52: #{tpu_custom_call.1} parent=5 // pred_fallthru
      _
    %p3906 = scmp.le.s32.totalorder 2, %s14
    // Predicated region
    $region57: #{tpu_custom_call.1} parent=5 // pred_check
      %p3907 = pneg %p3906
    $region58: #{tpu_custom_call.1} parent=5 // pred_check_branch
      %3909 = sbr.rel (%p3907) target = $region60
    $region59: #{tpu_custom_call.1} parent=5 // pred_region
      %s3910 = ssub.s32 %s14, 2
      // Predicated region
      $region61: #{tpu_custom_call.1} parent=59 // pred_check
        %p3911 = pneg %p216
      $region62: #{tpu_custom_call.1} parent=59 // pred_check_branch
        %3913 = sbr.rel (%p3911) target = $region64
      $region63: #{tpu_custom_call.1} parent=59 // pred_region
        %p3914 = scmp.lt.s32.totalorder %s20, 1
        %s3915 = scalar_select %p3914, %s20, 1
        %s3916 = smul.addr %s3915, 32
        %s3917 = smul.addr %s3916, 8
        %s3918 = scalar_lea.vmem %s8, %s3917
      $region64: #{tpu_custom_call.1} parent=59 // pred_fallthru
        _
    $region60: #{tpu_custom_call.1} parent=5 // pred_fallthru
      _
  $region6: #{tpu_custom_call.1} parent=0 // loop_footer
    %s18 = sadd.s32 1, %s14
  $region7: #{tpu_custom_call.1} parent=0 // loop_footer_branch
    %13 = sbr.rel target = $region3
  $region8: #{tpu_custom_call.1} parent=0 // loop_exit
    _

</llo_original>
